<compile_context>
chip_gen: v7x
topology: tpu7x:2x2x1
jax: 0.10.0
libtpu: 0.0.40
codegen_flags: <defaults>
</compile_context>

<pallas_src>
import functools

import jax
import jax.numpy as jnp
from jax import lax
from jax.experimental import pallas as pl
from jax.experimental.pallas import tpu as pltpu


def _round_up(x, m):
    return ((x + m - 1) // m) * m


def _choose_toh(OH, OW, OWp, KKC, OC, budget_bytes=12 * 1024 * 1024):
    """Largest OH tile whose per-tile VMEM footprint fits the budget, divides OH,
    and keeps the flat (OC, TOH*OW) output block lane-tile aligned."""
    per_row = KKC * OWp * 2 + 2 * OC * OW * 4 + OC * OWp * 4
    cap = max(1, budget_bytes // max(per_row, 1))
    if OH <= cap:
        return OH
    cands = [d for d in range(1, min(OH, cap) + 1)
             if OH % d == 0 and (d * OW) % 128 == 0]
    if not cands:
        # TODO(synk): ragged / non-divisor OH tiling for awkward (OH, OW) combos.
        return OH
    return max(cands)


def _make_conv_kernel(*, C, OC, K, S, TOH, OW, OWp, static_rows):
    """Kernel closure over the static conv geometry."""
    KKC = K * K * C

    def kernel(x_ref, w_ref, b_ref, o_ref, p_ref):
        # x_ref: (Hs, S*S*C, Ws)  bf16 — whole phase-deinterleaved padded image
        #        (block index ignores the OH-tile axis -> fetched once per image)
        # w_ref: (OC, K*K*C)      bf16 — rows ordered (kh, kw, c), c minor
        # b_ref: (OC, 1)          f32
        # o_ref: (OC, TOH*OW)     f32  — flat, lane-dense output tile
        # p_ref: (KKC, TOH*OWp)   bf16 — patch matrix; per-row lane extent padded
        #        to a multiple of 128 so every scatter store is lane-aligned.
        r0 = pl.program_id(1) * TOH  # first output row of this OH tile

        # ---------------- in-VMEM im2col (aligned slab scatter) ----------------
        for kh in range(K):
            for kw in range(K):
                tap = kh * K + kw
                dh, dw = kh // S, kw // S
                base = ((kh % S) * S + (kw % S)) * C
                row0 = r0 + dh
                if static_rows:
                    for toh in range(TOH):
                        p_ref[tap * C:(tap + 1) * C,
                              toh * OWp:(toh + 1) * OWp] = (
                            x_ref[row0 + toh, base:base + C, dw:dw + OWp])
                else:
                    def body(toh, carry, row0=row0, tap=tap, base=base, dw=dw):
                        lane0 = pl.multiple_of(toh * OWp, 128)
                        p_ref[pl.ds(tap * C, C), pl.ds(lane0, OWp)] = (
                            x_ref[row0 + toh, base:base + C, dw:dw + OWp])
                        return carry
                    lax.fori_loop(0, TOH, body, 0, unroll=min(TOH, 8))

        # -------- one MXU matmul per tile: (OC, KKC) @ (KKC, TOH*OWp) ---------
        # TODO(synk): per-(kh,kw) accumulated matmuls would overlap the gather
        # with the MXU and shrink the scratch K^2-fold, at the cost of a shorter
        # contraction per matmul.
        acc = jnp.dot(w_ref[...], p_ref[...],
                      preferred_element_type=jnp.float32)        # (OC, TOH*OWp)
        acc = acc + b_ref[...]

        # ------------------------------ writeback ------------------------------
        if OWp == OW:
            # Padded and true row widths coincide: one full, unmasked store.
            o_ref[...] = acc.astype(o_ref.dtype)
        elif static_rows:
            for toh in range(TOH):
                o_ref[:, toh * OW:(toh + 1) * OW] = (
                    acc[:, toh * OWp:toh * OWp + OW].astype(o_ref.dtype))
        else:
            def out_body(toh, carry):
                src0 = pl.multiple_of(toh * OWp, 128)
                row = lax.dynamic_slice_in_dim(acc, src0, OW, axis=1)
                o_ref[:, pl.ds(toh * OW, OW)] = row.astype(o_ref.dtype)
                return carry
            lax.fori_loop(0, TOH, out_body, 0, unroll=min(TOH, 8))

    return kernel


def conv_layer_forward(x, weight, bias, *, kernel_size, stride):
    """Forward pass of ConvLayer (ReflectionPad2d(K//2) + Conv2d(K, stride)).

    x:      (N, C, H, W)   float32, NCHW
    weight: (OC, C, K, K)  float32
    bias:   (OC,)          float32
    returns (N, OC, OH, OW) float32
    """
    N, C, H, W = x.shape
    OC = weight.shape[0]
    K = int(kernel_size)
    S = int(stride)
    pad = K // 2  # int(np.floor(kernel_size / 2))

    # ---- JAX glue: reflection pad, stride-phase deinterleave, relayout. ----
    xp = jnp.pad(x, ((0, 0), (0, 0), (pad, pad), (pad, pad)),
                 mode="reflect").astype(jnp.bfloat16)
    Hp, Wp = H + 2 * pad, W + 2 * pad
    OH = (Hp - K) // S + 1
    OW = (Wp - K) // S + 1
    OWp = _round_up(OW, 128)      # lane-padded output-row width
    DH = (K - 1) // S             # max in-kernel row offset (phase space)
    DW = (K - 1) // S             # max in-kernel col offset (phase space)
    Hs = OH + DH
    Ws = OWp + DW
    KKC = C * K * K

    # Deinterleave into stride x stride phases so all in-kernel slices are
    # unit-stride; layout (N, Hs, S*S*C, Ws): rows leading, (phase, channel) on
    # sublanes, width on lanes.
    phases = []
    for ph in range(S):
        for pw in range(S):
            sub = xp[:, :, ph::S, pw::S]                       # (N, C, hs, ws)
            hs, ws = sub.shape[2], sub.shape[3]
            sub = jnp.pad(sub, ((0, 0), (0, 0),
                                (0, max(0, Hs - hs)), (0, max(0, Ws - ws))))
            phases.append(sub[:, :, :Hs, :Ws])
    xph = jnp.stack(phases, axis=1)                            # (N, S*S, C, Hs, Ws)
    xk = xph.transpose(0, 3, 1, 2, 4).reshape(N, Hs, S * S * C, Ws)

    # NOTE: for repeated calls, hoist the (tiny) weight relayout/cast out of the
    # per-call forward; kept inline so this stays a drop-in module forward.
    w_t = weight.transpose(0, 2, 3, 1).reshape(OC, KKC).astype(jnp.bfloat16)
    b2 = bias.reshape(OC, 1).astype(jnp.float32)

    TOH = _choose_toh(OH, OW, OWp, KKC, OC)
    T = OH // TOH
    static_rows = (K * K * TOH) <= 512
    kernel = _make_conv_kernel(C=C, OC=OC, K=K, S=S, TOH=TOH, OW=OW, OWp=OWp,
                               static_rows=static_rows)

    # VMEM limit from the actual block footprint (double-buffered ins/outs).
    img_bytes = Hs * S * S * C * Ws * 2
    tile_bytes = (KKC * TOH * OWp * 2        # patch scratch
                  + OC * TOH * OWp * 4       # matmul result temp
                  + 2 * OC * TOH * OW * 4)   # double-buffered output block
    vmem_bytes = 2 * img_bytes + 2 * OC * KKC * 2 + tile_bytes + (4 << 20)
    vmem_bytes = int(min(max(vmem_bytes, 32 << 20), 96 << 20))
    # TODO(synk): on v7x (64 MiB VMEM/TC) shrink the TOH budget if vmem_bytes
    # ever lands above ~56 MiB for very large images.

    y = pl.pallas_call(
        kernel,
        out_shape=jax.ShapeDtypeStruct((N, OC, OH * OW), jnp.float32),
        grid_spec=pltpu.PrefetchScalarGridSpec(
            num_scalar_prefetch=0,
            grid=(N, T),
            in_specs=[
                pl.BlockSpec((None, Hs, S * S * C, Ws), lambda n, t: (n, 0, 0, 0)),
                pl.BlockSpec((OC, KKC), lambda n, t: (0, 0)),
                pl.BlockSpec((OC, 1), lambda n, t: (0, 0)),
            ],
            out_specs=pl.BlockSpec((None, OC, TOH * OW), lambda n, t: (n, 0, t)),
            scratch_shapes=[pltpu.VMEM((KKC, TOH * OWp), jnp.bfloat16)],
        ),
        compiler_params=pltpu.CompilerParams(
            dimension_semantics=("parallel", "parallel"),
            vmem_limit_bytes=vmem_bytes,
        ),
    )(xk, w_t, b2)

    # (N, OC, OH*OW) -> NCHW; row-major reshape, no data movement.
    return y.reshape(N, OC, OH, OW)


if __name__ == "__main__":
    # Deterministic synthetic parameters (shapes from the module's __init__).
    in_channels, out_channels, kernel_size = 4, 8, 3
    N, H, W = 2, 16, 16

    key = jax.random.PRNGKey(0)
    kx, kw_key, kb_key = jax.random.split(key, 3)

    x = jax.random.normal(kx, (N, in_channels, H, W), dtype=jnp.float32)
    fan_in = in_channels * kernel_size * kernel_size
    bound = 1.0 / (fan_in ** 0.5)
    weight = jax.random.uniform(
        kw_key, (out_channels, in_channels, kernel_size, kernel_size),
        minval=-bound, maxval=bound, dtype=jnp.float32)
    bias = jax.random.uniform(
        kb_key, (out_channels,), minval=-bound, maxval=bound, dtype=jnp.float32)

    def reference(x, weight, bias, stride):
        # Reflection pad + VALID conv; inputs rounded to bf16 to match the
        # kernel's operand precision, accumulation is f32 in both.
        pad = kernel_size // 2
        xp = jnp.pad(x, ((0, 0), (0, 0), (pad, pad), (pad, pad)), mode="reflect")
        xb = xp.astype(jnp.bfloat16).astype(jnp.float32)
        wb = weight.astype(jnp.bfloat16).astype(jnp.float32)
        out = jax.lax.conv_general_dilated(
            xb, wb, window_strides=(stride, stride), padding="VALID",
            dimension_numbers=("NCHW", "OIHW", "NCHW"),
            precision=jax.lax.Precision.HIGHEST)
        return out + bias.reshape(1, -1, 1, 1)

    for stride in (1, 2):
        fwd = jax.jit(functools.partial(
            conv_layer_forward, kernel_size=kernel_size, stride=stride))
        out = jax.block_until_ready(fwd(x, weight, bias))
        ref = reference(x, weight, bias, stride)
        assert out.shape == ref.shape, (stride, out.shape, ref.shape)
        err = float(jnp.max(jnp.abs(out - ref)))
        assert err < 2e-3, (stride, err)

    print("KERNEL_OK")
</pallas_src>

<mosaic_0001>
module attributes {stable_mosaic.version = 11 : i64} {
  func.func @kernel(%arg0: i32, %arg1: i32, %arg2: memref<1x18x4x130xbf16, #tpu.memory_space<vmem>>, %arg3: memref<8x36xbf16, #tpu.memory_space<vmem>>, %arg4: memref<8x1xf32, #tpu.memory_space<vmem>>, %arg5: memref<1x8x256xf32, #tpu.memory_space<vmem>>, %arg6: memref<36x2048xbf16, #tpu.memory_space<vmem>>) attributes {dimension_semantics = [#tpu.dimension_semantics<parallel>, #tpu.dimension_semantics<parallel>], iteration_bounds = array<i64: 2, 1>, scalar_prefetch = 0 : i64, scratch_operands = 1 : i64, tpu.core_type = #tpu.core_type<tc>, window_params = [{transform_indices = @transform_0, window_bounds = array<i64: 1, 18, 4, 130>}, {pipeline_mode = #tpu.pipeline_mode<synchronous>, transform_indices = @transform_1, window_bounds = array<i64: 8, 36>}, {pipeline_mode = #tpu.pipeline_mode<synchronous>, transform_indices = @transform_2, window_bounds = array<i64: 8, 1>}, {transform_indices = @transform_3, window_bounds = array<i64: 1, 8, 256>}]} {
    %c16_i32 = arith.constant 16 : i32
    %0 = arith.muli %arg1, %c16_i32 : i32
    %c0_i32 = arith.constant 0 : i32
    %1 = arith.addi %0, %c0_i32 : i32
    %c0_i32_0 = arith.constant 0 : i32
    %2 = arith.addi %1, %c0_i32_0 : i32
    %c0 = arith.constant 0 : index
    %3 = arith.index_cast %2 : i32 to index
    %c0_1 = arith.constant 0 : index
    %c0_2 = arith.constant 0 : index
    %4 = vector.load %arg2[%c0, %3, %c0_1, %c0_2] : memref<1x18x4x130xbf16, #tpu.memory_space<vmem>>, vector<1x1x4x128xbf16>
    %5 = vector.shape_cast %4 : vector<1x1x4x128xbf16> to vector<4x128xbf16>
    %c0_3 = arith.constant 0 : index
    %c0_4 = arith.constant 0 : index
    %6 = vector.load %arg6[%c0_3, %c0_4] : memref<36x2048xbf16, #tpu.memory_space<vmem>>, vector<4x128xbf16>
    tpu.vector_store %arg6[%c0_3, %c0_4], %5 {strides = array<i32>} : memref<36x2048xbf16, #tpu.memory_space<vmem>>, vector<4x128xbf16>,
    %c1_i32 = arith.constant 1 : i32
    %7 = arith.addi %1, %c1_i32 : i32
    %c0_5 = arith.constant 0 : index
    %8 = arith.index_cast %7 : i32 to index
    %c0_6 = arith.constant 0 : index
    %c0_7 = arith.constant 0 : index
    %9 = vector.load %arg2[%c0_5, %8, %c0_6, %c0_7] : memref<1x18x4x130xbf16, #tpu.memory_space<vmem>>, vector<1x1x4x128xbf16>
    %10 = vector.shape_cast %9 : vector<1x1x4x128xbf16> to vector<4x128xbf16>
    %c0_8 = arith.constant 0 : index
    %c128 = arith.constant 128 : index
    %11 = vector.load %arg6[%c0_8, %c128] : memref<36x2048xbf16, #tpu.memory_space<vmem>>, vector<4x128xbf16>
    tpu.vector_store %arg6[%c0_8, %c128], %10 {strides = array<i32>} : memref<36x2048xbf16, #tpu.memory_space<vmem>>, vector<4x128xbf16>,
    %c2_i32 = arith.constant 2 : i32
    %12 = arith.addi %1, %c2_i32 : i32
    %c0_9 = arith.constant 0 : index
    %13 = arith.index_cast %12 : i32 to index
    %c0_10 = arith.constant 0 : index
    %c0_11 = arith.constant 0 : index
    %14 = vector.load %arg2[%c0_9, %13, %c0_10, %c0_11] : memref<1x18x4x130xbf16, #tpu.memory_space<vmem>>, vector<1x1x4x128xbf16>
    %15 = vector.shape_cast %14 : vector<1x1x4x128xbf16> to vector<4x128xbf16>
    %c0_12 = arith.constant 0 : index
    %c256 = arith.constant 256 : index
    %16 = vector.load %arg6[%c0_12, %c256] : memref<36x2048xbf16, #tpu.memory_space<vmem>>, vector<4x128xbf16>
    tpu.vector_store %arg6[%c0_12, %c256], %15 {strides = array<i32>} : memref<36x2048xbf16, #tpu.memory_space<vmem>>, vector<4x128xbf16>,
    %c3_i32 = arith.constant 3 : i32
    %17 = arith.addi %1, %c3_i32 : i32
    %c0_13 = arith.constant 0 : index
    %18 = arith.index_cast %17 : i32 to index
    %c0_14 = arith.constant 0 : index
    %c0_15 = arith.constant 0 : index
    %19 = vector.load %arg2[%c0_13, %18, %c0_14, %c0_15] : memref<1x18x4x130xbf16, #tpu.memory_space<vmem>>, vector<1x1x4x128xbf16>
    %20 = vector.shape_cast %19 : vector<1x1x4x128xbf16> to vector<4x128xbf16>
    %c0_16 = arith.constant 0 : index
    %c384 = arith.constant 384 : index
    %21 = vector.load %arg6[%c0_16, %c384] : memref<36x2048xbf16, #tpu.memory_space<vmem>>, vector<4x128xbf16>
    tpu.vector_store %arg6[%c0_16, %c384], %20 {strides = array<i32>} : memref<36x2048xbf16, #tpu.memory_space<vmem>>, vector<4x128xbf16>,
    %c4_i32 = arith.constant 4 : i32
    %22 = arith.addi %1, %c4_i32 : i32
    %c0_17 = arith.constant 0 : index
    %23 = arith.index_cast %22 : i32 to index
    %c0_18 = arith.constant 0 : index
    %c0_19 = arith.constant 0 : index
    %24 = vector.load %arg2[%c0_17, %23, %c0_18, %c0_19] : memref<1x18x4x130xbf16, #tpu.memory_space<vmem>>, vector<1x1x4x128xbf16>
    %25 = vector.shape_cast %24 : vector<1x1x4x128xbf16> to vector<4x128xbf16>
    %c0_20 = arith.constant 0 : index
    %c512 = arith.constant 512 : index
    %26 = vector.load %arg6[%c0_20, %c512] : memref<36x2048xbf16, #tpu.memory_space<vmem>>, vector<4x128xbf16>
    tpu.vector_store %arg6[%c0_20, %c512], %25 {strides = array<i32>} : memref<36x2048xbf16, #tpu.memory_space<vmem>>, vector<4x128xbf16>,
    %c5_i32 = arith.constant 5 : i32
    %27 = arith.addi %1, %c5_i32 : i32
    %c0_21 = arith.constant 0 : index
    %28 = arith.index_cast %27 : i32 to index
    %c0_22 = arith.constant 0 : index
    %c0_23 = arith.constant 0 : index
    %29 = vector.load %arg2[%c0_21, %28, %c0_22, %c0_23] : memref<1x18x4x130xbf16, #tpu.memory_space<vmem>>, vector<1x1x4x128xbf16>
    %30 = vector.shape_cast %29 : vector<1x1x4x128xbf16> to vector<4x128xbf16>
    %c0_24 = arith.constant 0 : index
    %c640 = arith.constant 640 : index
    %31 = vector.load %arg6[%c0_24, %c640] : memref<36x2048xbf16, #tpu.memory_space<vmem>>, vector<4x128xbf16>
    tpu.vector_store %arg6[%c0_24, %c640], %30 {strides = array<i32>} : memref<36x2048xbf16, #tpu.memory_space<vmem>>, vector<4x128xbf16>,
    %c6_i32 = arith.constant 6 : i32
    %32 = arith.addi %1, %c6_i32 : i32
    %c0_25 = arith.constant 0 : index
    %33 = arith.index_cast %32 : i32 to index
    %c0_26 = arith.constant 0 : index
    %c0_27 = arith.constant 0 : index
    %34 = vector.load %arg2[%c0_25, %33, %c0_26, %c0_27] : memref<1x18x4x130xbf16, #tpu.memory_space<vmem>>, vector<1x1x4x128xbf16>
    %35 = vector.shape_cast %34 : vector<1x1x4x128xbf16> to vector<4x128xbf16>
    %c0_28 = arith.constant 0 : index
    %c768 = arith.constant 768 : index
    %36 = vector.load %arg6[%c0_28, %c768] : memref<36x2048xbf16, #tpu.memory_space<vmem>>, vector<4x128xbf16>
    tpu.vector_store %arg6[%c0_28, %c768], %35 {strides = array<i32>} : memref<36x2048xbf16, #tpu.memory_space<vmem>>, vector<4x128xbf16>,
    %c7_i32 = arith.constant 7 : i32
    %37 = arith.addi %1, %c7_i32 : i32
    %c0_29 = arith.constant 0 : index
    %38 = arith.index_cast %37 : i32 to index
    %c0_30 = arith.constant 0 : index
    %c0_31 = arith.constant 0 : index
    %39 = vector.load %arg2[%c0_29, %38, %c0_30, %c0_31] : memref<1x18x4x130xbf16, #tpu.memory_space<vmem>>, vector<1x1x4x128xbf16>
    %40 = vector.shape_cast %39 : vector<1x1x4x128xbf16> to vector<4x128xbf16>
    %c0_32 = arith.constant 0 : index
    %c896 = arith.constant 896 : index
    %41 = vector.load %arg6[%c0_32, %c896] : memref<36x2048xbf16, #tpu.memory_space<vmem>>, vector<4x128xbf16>
    tpu.vector_store %arg6[%c0_32, %c896], %40 {strides = array<i32>} : memref<36x2048xbf16, #tpu.memory_space<vmem>>, vector<4x128xbf16>,
    %c8_i32 = arith.constant 8 : i32
    %42 = arith.addi %1, %c8_i32 : i32
    %c0_33 = arith.constant 0 : index
    %43 = arith.index_cast %42 : i32 to index
    %c0_34 = arith.constant 0 : index
    %c0_35 = arith.constant 0 : index
    %44 = vector.load %arg2[%c0_33, %43, %c0_34, %c0_35] : memref<1x18x4x130xbf16, #tpu.memory_space<vmem>>, vector<1x1x4x128xbf16>
    %45 = vector.shape_cast %44 : vector<1x1x4x128xbf16> to vector<4x128xbf16>
    %c0_36 = arith.constant 0 : index
    %c1024 = arith.constant 1024 : index
    %46 = vector.load %arg6[%c0_36, %c1024] : memref<36x2048xbf16, #tpu.memory_space<vmem>>, vector<4x128xbf16>
    tpu.vector_store %arg6[%c0_36, %c1024], %45 {strides = array<i32>} : memref<36x2048xbf16, #tpu.memory_space<vmem>>, vector<4x128xbf16>,
    %c9_i32 = arith.constant 9 : i32
    %47 = arith.addi %1, %c9_i32 : i32
    %c0_37 = arith.constant 0 : index
    %48 = arith.index_cast %47 : i32 to index
    %c0_38 = arith.constant 0 : index
    %c0_39 = arith.constant 0 : index
    %49 = vector.load %arg2[%c0_37, %48, %c0_38, %c0_39] : memref<1x18x4x130xbf16, #tpu.memory_space<vmem>>, vector<1x1x4x128xbf16>
    %50 = vector.shape_cast %49 : vector<1x1x4x128xbf16> to vector<4x128xbf16>
    %c0_40 = arith.constant 0 : index
    %c1152 = arith.constant 1152 : index
    %51 = vector.load %arg6[%c0_40, %c1152] : memref<36x2048xbf16, #tpu.memory_space<vmem>>, vector<4x128xbf16>
    tpu.vector_store %arg6[%c0_40, %c1152], %50 {strides = array<i32>} : memref<36x2048xbf16, #tpu.memory_space<vmem>>, vector<4x128xbf16>,
    %c10_i32 = arith.constant 10 : i32
    %52 = arith.addi %1, %c10_i32 : i32
    %c0_41 = arith.constant 0 : index
    %53 = arith.index_cast %52 : i32 to index
    %c0_42 = arith.constant 0 : index
    %c0_43 = arith.constant 0 : index
    %54 = vector.load %arg2[%c0_41, %53, %c0_42, %c0_43] : memref<1x18x4x130xbf16, #tpu.memory_space<vmem>>, vector<1x1x4x128xbf16>
    %55 = vector.shape_cast %54 : vector<1x1x4x128xbf16> to vector<4x128xbf16>
    %c0_44 = arith.constant 0 : index
    %c1280 = arith.constant 1280 : index
    %56 = vector.load %arg6[%c0_44, %c1280] : memref<36x2048xbf16, #tpu.memory_space<vmem>>, vector<4x128xbf16>
    tpu.vector_store %arg6[%c0_44, %c1280], %55 {strides = array<i32>} : memref<36x2048xbf16, #tpu.memory_space<vmem>>, vector<4x128xbf16>,
    %c11_i32 = arith.constant 11 : i32
    %57 = arith.addi %1, %c11_i32 : i32
    %c0_45 = arith.constant 0 : index
    %58 = arith.index_cast %57 : i32 to index
    %c0_46 = arith.constant 0 : index
    %c0_47 = arith.constant 0 : index
    %59 = vector.load %arg2[%c0_45, %58, %c0_46, %c0_47] : memref<1x18x4x130xbf16, #tpu.memory_space<vmem>>, vector<1x1x4x128xbf16>
    %60 = vector.shape_cast %59 : vector<1x1x4x128xbf16> to vector<4x128xbf16>
    %c0_48 = arith.constant 0 : index
    %c1408 = arith.constant 1408 : index
    %61 = vector.load %arg6[%c0_48, %c1408] : memref<36x2048xbf16, #tpu.memory_space<vmem>>, vector<4x128xbf16>
    tpu.vector_store %arg6[%c0_48, %c1408], %60 {strides = array<i32>} : memref<36x2048xbf16, #tpu.memory_space<vmem>>, vector<4x128xbf16>,
    %c12_i32 = arith.constant 12 : i32
    %62 = arith.addi %1, %c12_i32 : i32
    %c0_49 = arith.constant 0 : index
    %63 = arith.index_cast %62 : i32 to index
    %c0_50 = arith.constant 0 : index
    %c0_51 = arith.constant 0 : index
    %64 = vector.load %arg2[%c0_49, %63, %c0_50, %c0_51] : memref<1x18x4x130xbf16, #tpu.memory_space<vmem>>, vector<1x1x4x128xbf16>
    %65 = vector.shape_cast %64 : vector<1x1x4x128xbf16> to vector<4x128xbf16>
    %c0_52 = arith.constant 0 : index
    %c1536 = arith.constant 1536 : index
    %66 = vector.load %arg6[%c0_52, %c1536] : memref<36x2048xbf16, #tpu.memory_space<vmem>>, vector<4x128xbf16>
    tpu.vector_store %arg6[%c0_52, %c1536], %65 {strides = array<i32>} : memref<36x2048xbf16, #tpu.memory_space<vmem>>, vector<4x128xbf16>,
    %c13_i32 = arith.constant 13 : i32
    %67 = arith.addi %1, %c13_i32 : i32
    %c0_53 = arith.constant 0 : index
    %68 = arith.index_cast %67 : i32 to index
    %c0_54 = arith.constant 0 : index
    %c0_55 = arith.constant 0 : index
    %69 = vector.load %arg2[%c0_53, %68, %c0_54, %c0_55] : memref<1x18x4x130xbf16, #tpu.memory_space<vmem>>, vector<1x1x4x128xbf16>
    %70 = vector.shape_cast %69 : vector<1x1x4x128xbf16> to vector<4x128xbf16>
    %c0_56 = arith.constant 0 : index
    %c1664 = arith.constant 1664 : index
    %71 = vector.load %arg6[%c0_56, %c1664] : memref<36x2048xbf16, #tpu.memory_space<vmem>>, vector<4x128xbf16>
    tpu.vector_store %arg6[%c0_56, %c1664], %70 {strides = array<i32>} : memref<36x2048xbf16, #tpu.memory_space<vmem>>, vector<4x128xbf16>,
    %c14_i32 = arith.constant 14 : i32
    %72 = arith.addi %1, %c14_i32 : i32
    %c0_57 = arith.constant 0 : index
    %73 = arith.index_cast %72 : i32 to index
    %c0_58 = arith.constant 0 : index
    %c0_59 = arith.constant 0 : index
    %74 = vector.load %arg2[%c0_57, %73, %c0_58, %c0_59] : memref<1x18x4x130xbf16, #tpu.memory_space<vmem>>, vector<1x1x4x128xbf16>
    %75 = vector.shape_cast %74 : vector<1x1x4x128xbf16> to vector<4x128xbf16>
    %c0_60 = arith.constant 0 : index
    %c1792 = arith.constant 1792 : index
    %76 = vector.load %arg6[%c0_60, %c1792] : memref<36x2048xbf16, #tpu.memory_space<vmem>>, vector<4x128xbf16>
    tpu.vector_store %arg6[%c0_60, %c1792], %75 {strides = array<i32>} : memref<36x2048xbf16, #tpu.memory_space<vmem>>, vector<4x128xbf16>,
    %c15_i32 = arith.constant 15 : i32
    %77 = arith.addi %1, %c15_i32 : i32
    %c0_61 = arith.constant 0 : index
    %78 = arith.index_cast %77 : i32 to index
    %c0_62 = arith.constant 0 : index
    %c0_63 = arith.constant 0 : index
    %79 = vector.load %arg2[%c0_61, %78, %c0_62, %c0_63] : memref<1x18x4x130xbf16, #tpu.memory_space<vmem>>, vector<1x1x4x128xbf16>
    %80 = vector.shape_cast %79 : vector<1x1x4x128xbf16> to vector<4x128xbf16>
    %c0_64 = arith.constant 0 : index
    %c1920 = arith.constant 1920 : index
    %81 = vector.load %arg6[%c0_64, %c1920] : memref<36x2048xbf16, #tpu.memory_space<vmem>>, vector<4x128xbf16>
    tpu.vector_store %arg6[%c0_64, %c1920], %80 {strides = array<i32>} : memref<36x2048xbf16, #tpu.memory_space<vmem>>, vector<4x128xbf16>,
    %c0_i32_65 = arith.constant 0 : i32
    %82 = arith.addi %0, %c0_i32_65 : i32
    %c0_i32_66 = arith.constant 0 : i32
    %83 = arith.addi %82, %c0_i32_66 : i32
    %c0_67 = arith.constant 0 : index
    %84 = arith.index_cast %83 : i32 to index
    %c0_68 = arith.constant 0 : index
    %c1 = arith.constant 1 : index
    %85 = vector.load %arg2[%c0_67, %84, %c0_68, %c1] : memref<1x18x4x130xbf16, #tpu.memory_space<vmem>>, vector<1x1x4x128xbf16>
    %86 = vector.shape_cast %85 : vector<1x1x4x128xbf16> to vector<4x128xbf16>
    %c4 = arith.constant 4 : index
    %c0_69 = arith.constant 0 : index
    %87 = vector.load %arg6[%c4, %c0_69] : memref<36x2048xbf16, #tpu.memory_space<vmem>>, vector<4x128xbf16>
    tpu.vector_store %arg6[%c4, %c0_69], %86 {strides = array<i32>} : memref<36x2048xbf16, #tpu.memory_space<vmem>>, vector<4x128xbf16>,
    %c1_i32_70 = arith.constant 1 : i32
    %88 = arith.addi %82, %c1_i32_70 : i32
    %c0_71 = arith.constant 0 : index
    %89 = arith.index_cast %88 : i32 to index
    %c0_72 = arith.constant 0 : index
    %c1_73 = arith.constant 1 : index
    %90 = vector.load %arg2[%c0_71, %89, %c0_72, %c1_73] : memref<1x18x4x130xbf16, #tpu.memory_space<vmem>>, vector<1x1x4x128xbf16>
    %91 = vector.shape_cast %90 : vector<1x1x4x128xbf16> to vector<4x128xbf16>
    %c4_74 = arith.constant 4 : index
    %c128_75 = arith.constant 128 : index
    %92 = vector.load %arg6[%c4_74, %c128_75] : memref<36x2048xbf16, #tpu.memory_space<vmem>>, vector<4x128xbf16>
    tpu.vector_store %arg6[%c4_74, %c128_75], %91 {strides = array<i32>} : memref<36x2048xbf16, #tpu.memory_space<vmem>>, vector<4x128xbf16>,
    %c2_i32_76 = arith.constant 2 : i32
    %93 = arith.addi %82, %c2_i32_76 : i32
    %c0_77 = arith.constant 0 : index
    %94 = arith.index_cast %93 : i32 to index
    %c0_78 = arith.constant 0 : index
    %c1_79 = arith.constant 1 : index
    %95 = vector.load %arg2[%c0_77, %94, %c0_78, %c1_79] : memref<1x18x4x130xbf16, #tpu.memory_space<vmem>>, vector<1x1x4x128xbf16>
    %96 = vector.shape_cast %95 : vector<1x1x4x128xbf16> to vector<4x128xbf16>
    %c4_80 = arith.constant 4 : index
    %c256_81 = arith.constant 256 : index
    %97 = vector.load %arg6[%c4_80, %c256_81] : memref<36x2048xbf16, #tpu.memory_space<vmem>>, vector<4x128xbf16>
    tpu.vector_store %arg6[%c4_80, %c256_81], %96 {strides = array<i32>} : memref<36x2048xbf16, #tpu.memory_space<vmem>>, vector<4x128xbf16>,
    %c3_i32_82 = arith.constant 3 : i32
    %98 = arith.addi %82, %c3_i32_82 : i32
    %c0_83 = arith.constant 0 : index
    %99 = arith.index_cast %98 : i32 to index
    %c0_84 = arith.constant 0 : index
    %c1_85 = arith.constant 1 : index
    %100 = vector.load %arg2[%c0_83, %99, %c0_84, %c1_85] : memref<1x18x4x130xbf16, #tpu.memory_space<vmem>>, vector<1x1x4x128xbf16>
    %101 = vector.shape_cast %100 : vector<1x1x4x128xbf16> to vector<4x128xbf16>
    %c4_86 = arith.constant 4 : index
    %c384_87 = arith.constant 384 : index
    %102 = vector.load %arg6[%c4_86, %c384_87] : memref<36x2048xbf16, #tpu.memory_space<vmem>>, vector<4x128xbf16>
    tpu.vector_store %arg6[%c4_86, %c384_87], %101 {strides = array<i32>} : memref<36x2048xbf16, #tpu.memory_space<vmem>>, vector<4x128xbf16>,
    %c4_i32_88 = arith.constant 4 : i32
    %103 = arith.addi %82, %c4_i32_88 : i32
    %c0_89 = arith.constant 0 : index
    %104 = arith.index_cast %103 : i32 to index
    %c0_90 = arith.constant 0 : index
    %c1_91 = arith.constant 1 : index
    %105 = vector.load %arg2[%c0_89, %104, %c0_90, %c1_91] : memref<1x18x4x130xbf16, #tpu.memory_space<vmem>>, vector<1x1x4x128xbf16>
    %106 = vector.shape_cast %105 : vector<1x1x4x128xbf16> to vector<4x128xbf16>
    %c4_92 = arith.constant 4 : index
    %c512_93 = arith.constant 512 : index
    %107 = vector.load %arg6[%c4_92, %c512_93] : memref<36x2048xbf16, #tpu.memory_space<vmem>>, vector<4x128xbf16>
    tpu.vector_store %arg6[%c4_92, %c512_93], %106 {strides = array<i32>} : memref<36x2048xbf16, #tpu.memory_space<vmem>>, vector<4x128xbf16>,
    %c5_i32_94 = arith.constant 5 : i32
    %108 = arith.addi %82, %c5_i32_94 : i32
    %c0_95 = arith.constant 0 : index
    %109 = arith.index_cast %108 : i32 to index
    %c0_96 = arith.constant 0 : index
    %c1_97 = arith.constant 1 : index
    %110 = vector.load %arg2[%c0_95, %109, %c0_96, %c1_97] : memref<1x18x4x130xbf16, #tpu.memory_space<vmem>>, vector<1x1x4x128xbf16>
    %111 = vector.shape_cast %110 : vector<1x1x4x128xbf16> to vector<4x128xbf16>
    %c4_98 = arith.constant 4 : index
    %c640_99 = arith.constant 640 : index
    %112 = vector.load %arg6[%c4_98, %c640_99] : memref<36x2048xbf16, #tpu.memory_space<vmem>>, vector<4x128xbf16>
    tpu.vector_store %arg6[%c4_98, %c640_99], %111 {strides = array<i32>} : memref<36x2048xbf16, #tpu.memory_space<vmem>>, vector<4x128xbf16>,
    %c6_i32_100 = arith.constant 6 : i32
    %113 = arith.addi %82, %c6_i32_100 : i32
    %c0_101 = arith.constant 0 : index
    %114 = arith.index_cast %113 : i32 to index
    %c0_102 = arith.constant 0 : index
    %c1_103 = arith.constant 1 : index
    %115 = vector.load %arg2[%c0_101, %114, %c0_102, %c1_103] : memref<1x18x4x130xbf16, #tpu.memory_space<vmem>>, vector<1x1x4x128xbf16>
    %116 = vector.shape_cast %115 : vector<1x1x4x128xbf16> to vector<4x128xbf16>
    %c4_104 = arith.constant 4 : index
    %c768_105 = arith.constant 768 : index
    %117 = vector.load %arg6[%c4_104, %c768_105] : memref<36x2048xbf16, #tpu.memory_space<vmem>>, vector<4x128xbf16>
    tpu.vector_store %arg6[%c4_104, %c768_105], %116 {strides = array<i32>} : memref<36x2048xbf16, #tpu.memory_space<vmem>>, vector<4x128xbf16>,
    %c7_i32_106 = arith.constant 7 : i32
    %118 = arith.addi %82, %c7_i32_106 : i32
    %c0_107 = arith.constant 0 : index
    %119 = arith.index_cast %118 : i32 to index
    %c0_108 = arith.constant 0 : index
    %c1_109 = arith.constant 1 : index
    %120 = vector.load %arg2[%c0_107, %119, %c0_108, %c1_109] : memref<1x18x4x130xbf16, #tpu.memory_space<vmem>>, vector<1x1x4x128xbf16>
    %121 = vector.shape_cast %120 : vector<1x1x4x128xbf16> to vector<4x128xbf16>
    %c4_110 = arith.constant 4 : index
    %c896_111 = arith.constant 896 : index
    %122 = vector.load %arg6[%c4_110, %c896_111] : memref<36x2048xbf16, #tpu.memory_space<vmem>>, vector<4x128xbf16>
    tpu.vector_store %arg6[%c4_110, %c896_111], %121 {strides = array<i32>} : memref<36x2048xbf16, #tpu.memory_space<vmem>>, vector<4x128xbf16>,
    %c8_i32_112 = arith.constant 8 : i32
    %123 = arith.addi %82, %c8_i32_112 : i32
    %c0_113 = arith.constant 0 : index
    %124 = arith.index_cast %123 : i32 to index
    %c0_114 = arith.constant 0 : index
    %c1_115 = arith.constant 1 : index
    %125 = vector.load %arg2[%c0_113, %124, %c0_114, %c1_115] : memref<1x18x4x130xbf16, #tpu.memory_space<vmem>>, vector<1x1x4x128xbf16>
    %126 = vector.shape_cast %125 : vector<1x1x4x128xbf16> to vector<4x128xbf16>
    %c4_116 = arith.constant 4 : index
    %c1024_117 = arith.constant 1024 : index
    %127 = vector.load %arg6[%c4_116, %c1024_117] : memref<36x2048xbf16, #tpu.memory_space<vmem>>, vector<4x128xbf16>
    tpu.vector_store %arg6[%c4_116, %c1024_117], %126 {strides = array<i32>} : memref<36x2048xbf16, #tpu.memory_space<vmem>>, vector<4x128xbf16>,
    %c9_i32_118 = arith.constant 9 : i32
    %128 = arith.addi %82, %c9_i32_118 : i32
    %c0_119 = arith.constant 0 : index
    %129 = arith.index_cast %128 : i32 to index
    %c0_120 = arith.constant 0 : index
    %c1_121 = arith.constant 1 : index
    %130 = vector.load %arg2[%c0_119, %129, %c0_120, %c1_121] : memref<1x18x4x130xbf16, #tpu.memory_space<vmem>>, vector<1x1x4x128xbf16>
    %131 = vector.shape_cast %130 : vector<1x1x4x128xbf16> to vector<4x128xbf16>
    %c4_122 = arith.constant 4 : index
    %c1152_123 = arith.constant 1152 : index
    %132 = vector.load %arg6[%c4_122, %c1152_123] : memref<36x2048xbf16, #tpu.memory_space<vmem>>, vector<4x128xbf16>
    tpu.vector_store %arg6[%c4_122, %c1152_123], %131 {strides = array<i32>} : memref<36x2048xbf16, #tpu.memory_space<vmem>>, vector<4x128xbf16>,
    %c10_i32_124 = arith.constant 10 : i32
    %133 = arith.addi %82, %c10_i32_124 : i32
    %c0_125 = arith.constant 0 : index
    %134 = arith.index_cast %133 : i32 to index
    %c0_126 = arith.constant 0 : index
    %c1_127 = arith.constant 1 : index
    %135 = vector.load %arg2[%c0_125, %134, %c0_126, %c1_127] : memref<1x18x4x130xbf16, #tpu.memory_space<vmem>>, vector<1x1x4x128xbf16>
    %136 = vector.shape_cast %135 : vector<1x1x4x128xbf16> to vector<4x128xbf16>
    %c4_128 = arith.constant 4 : index
    %c1280_129 = arith.constant 1280 : index
    %137 = vector.load %arg6[%c4_128, %c1280_129] : memref<36x2048xbf16, #tpu.memory_space<vmem>>, vector<4x128xbf16>
    tpu.vector_store %arg6[%c4_128, %c1280_129], %136 {strides = array<i32>} : memref<36x2048xbf16, #tpu.memory_space<vmem>>, vector<4x128xbf16>,
    %c11_i32_130 = arith.constant 11 : i32
    %138 = arith.addi %82, %c11_i32_130 : i32
    %c0_131 = arith.constant 0 : index
    %139 = arith.index_cast %138 : i32 to index
    %c0_132 = arith.constant 0 : index
    %c1_133 = arith.constant 1 : index
    %140 = vector.load %arg2[%c0_131, %139, %c0_132, %c1_133] : memref<1x18x4x130xbf16, #tpu.memory_space<vmem>>, vector<1x1x4x128xbf16>
    %141 = vector.shape_cast %140 : vector<1x1x4x128xbf16> to vector<4x128xbf16>
    %c4_134 = arith.constant 4 : index
    %c1408_135 = arith.constant 1408 : index
    %142 = vector.load %arg6[%c4_134, %c1408_135] : memref<36x2048xbf16, #tpu.memory_space<vmem>>, vector<4x128xbf16>
    tpu.vector_store %arg6[%c4_134, %c1408_135], %141 {strides = array<i32>} : memref<36x2048xbf16, #tpu.memory_space<vmem>>, vector<4x128xbf16>,
    %c12_i32_136 = arith.constant 12 : i32
    %143 = arith.addi %82, %c12_i32_136 : i32
    %c0_137 = arith.constant 0 : index
    %144 = arith.index_cast %143 : i32 to index
    %c0_138 = arith.constant 0 : index
    %c1_139 = arith.constant 1 : index
    %145 = vector.load %arg2[%c0_137, %144, %c0_138, %c1_139] : memref<1x18x4x130xbf16, #tpu.memory_space<vmem>>, vector<1x1x4x128xbf16>
    %146 = vector.shape_cast %145 : vector<1x1x4x128xbf16> to vector<4x128xbf16>
    %c4_140 = arith.constant 4 : index
    %c1536_141 = arith.constant 1536 : index
    %147 = vector.load %arg6[%c4_140, %c1536_141] : memref<36x2048xbf16, #tpu.memory_space<vmem>>, vector<4x128xbf16>
    tpu.vector_store %arg6[%c4_140, %c1536_141], %146 {strides = array<i32>} : memref<36x2048xbf16, #tpu.memory_space<vmem>>, vector<4x128xbf16>,
    %c13_i32_142 = arith.constant 13 : i32
    %148 = arith.addi %82, %c13_i32_142 : i32
    %c0_143 = arith.constant 0 : index
    %149 = arith.index_cast %148 : i32 to index
    %c0_144 = arith.constant 0 : index
    %c1_145 = arith.constant 1 : index
    %150 = vector.load %arg2[%c0_143, %149, %c0_144, %c1_145] : memref<1x18x4x130xbf16, #tpu.memory_space<vmem>>, vector<1x1x4x128xbf16>
    %151 = vector.shape_cast %150 : vector<1x1x4x128xbf16> to vector<4x128xbf16>
    %c4_146 = arith.constant 4 : index
    %c1664_147 = arith.constant 1664 : index
    %152 = vector.load %arg6[%c4_146, %c1664_147] : memref<36x2048xbf16, #tpu.memory_space<vmem>>, vector<4x128xbf16>
    tpu.vector_store %arg6[%c4_146, %c1664_147], %151 {strides = array<i32>} : memref<36x2048xbf16, #tpu.memory_space<vmem>>, vector<4x128xbf16>,
    %c14_i32_148 = arith.constant 14 : i32
    %153 = arith.addi %82, %c14_i32_148 : i32
    %c0_149 = arith.constant 0 : index
    %154 = arith.index_cast %153 : i32 to index
    %c0_150 = arith.constant 0 : index
    %c1_151 = arith.constant 1 : index
    %155 = vector.load %arg2[%c0_149, %154, %c0_150, %c1_151] : memref<1x18x4x130xbf16, #tpu.memory_space<vmem>>, vector<1x1x4x128xbf16>
    %156 = vector.shape_cast %155 : vector<1x1x4x128xbf16> to vector<4x128xbf16>
    %c4_152 = arith.constant 4 : index
    %c1792_153 = arith.constant 1792 : index
    %157 = vector.load %arg6[%c4_152, %c1792_153] : memref<36x2048xbf16, #tpu.memory_space<vmem>>, vector<4x128xbf16>
    tpu.vector_store %arg6[%c4_152, %c1792_153], %156 {strides = array<i32>} : memref<36x2048xbf16, #tpu.memory_space<vmem>>, vector<4x128xbf16>,
    %c15_i32_154 = arith.constant 15 : i32
    %158 = arith.addi %82, %c15_i32_154 : i32
    %c0_155 = arith.constant 0 : index
    %159 = arith.index_cast %158 : i32 to index
    %c0_156 = arith.constant 0 : index
    %c1_157 = arith.constant 1 : index
    %160 = vector.load %arg2[%c0_155, %159, %c0_156, %c1_157] : memref<1x18x4x130xbf16, #tpu.memory_space<vmem>>, vector<1x1x4x128xbf16>
    %161 = vector.shape_cast %160 : vector<1x1x4x128xbf16> to vector<4x128xbf16>
    %c4_158 = arith.constant 4 : index
    %c1920_159 = arith.constant 1920 : index
    %162 = vector.load %arg6[%c4_158, %c1920_159] : memref<36x2048xbf16, #tpu.memory_space<vmem>>, vector<4x128xbf16>
    tpu.vector_store %arg6[%c4_158, %c1920_159], %161 {strides = array<i32>} : memref<36x2048xbf16, #tpu.memory_space<vmem>>, vector<4x128xbf16>,
    %c0_i32_160 = arith.constant 0 : i32
    %163 = arith.addi %0, %c0_i32_160 : i32
    %c0_i32_161 = arith.constant 0 : i32
    %164 = arith.addi %163, %c0_i32_161 : i32
    %c0_162 = arith.constant 0 : index
    %165 = arith.index_cast %164 : i32 to index
    %c0_163 = arith.constant 0 : index
    %c2 = arith.constant 2 : index
    %166 = vector.load %arg2[%c0_162, %165, %c0_163, %c2] : memref<1x18x4x130xbf16, #tpu.memory_space<vmem>>, vector<1x1x4x128xbf16>
    %167 = vector.shape_cast %166 : vector<1x1x4x128xbf16> to vector<4x128xbf16>
    %c8 = arith.constant 8 : index
    %c0_164 = arith.constant 0 : index
    %168 = vector.load %arg6[%c8, %c0_164] : memref<36x2048xbf16, #tpu.memory_space<vmem>>, vector<4x128xbf16>
    tpu.vector_store %arg6[%c8, %c0_164], %167 {strides = array<i32>} : memref<36x2048xbf16, #tpu.memory_space<vmem>>, vector<4x128xbf16>,
    %c1_i32_165 = arith.constant 1 : i32
    %169 = arith.addi %163, %c1_i32_165 : i32
    %c0_166 = arith.constant 0 : index
    %170 = arith.index_cast %169 : i32 to index
    %c0_167 = arith.constant 0 : index
    %c2_168 = arith.constant 2 : index
    %171 = vector.load %arg2[%c0_166, %170, %c0_167, %c2_168] : memref<1x18x4x130xbf16, #tpu.memory_space<vmem>>, vector<1x1x4x128xbf16>
    %172 = vector.shape_cast %171 : vector<1x1x4x128xbf16> to vector<4x128xbf16>
    %c8_169 = arith.constant 8 : index
    %c128_170 = arith.constant 128 : index
    %173 = vector.load %arg6[%c8_169, %c128_170] : memref<36x2048xbf16, #tpu.memory_space<vmem>>, vector<4x128xbf16>
    tpu.vector_store %arg6[%c8_169, %c128_170], %172 {strides = array<i32>} : memref<36x2048xbf16, #tpu.memory_space<vmem>>, vector<4x128xbf16>,
    %c2_i32_171 = arith.constant 2 : i32
    %174 = arith.addi %163, %c2_i32_171 : i32
    %c0_172 = arith.constant 0 : index
    %175 = arith.index_cast %174 : i32 to index
    %c0_173 = arith.constant 0 : index
    %c2_174 = arith.constant 2 : index
    %176 = vector.load %arg2[%c0_172, %175, %c0_173, %c2_174] : memref<1x18x4x130xbf16, #tpu.memory_space<vmem>>, vector<1x1x4x128xbf16>
    %177 = vector.shape_cast %176 : vector<1x1x4x128xbf16> to vector<4x128xbf16>
    %c8_175 = arith.constant 8 : index
    %c256_176 = arith.constant 256 : index
    %178 = vector.load %arg6[%c8_175, %c256_176] : memref<36x2048xbf16, #tpu.memory_space<vmem>>, vector<4x128xbf16>
    tpu.vector_store %arg6[%c8_175, %c256_176], %177 {strides = array<i32>} : memref<36x2048xbf16, #tpu.memory_space<vmem>>, vector<4x128xbf16>,
    %c3_i32_177 = arith.constant 3 : i32
    %179 = arith.addi %163, %c3_i32_177 : i32
    %c0_178 = arith.constant 0 : index
    %180 = arith.index_cast %179 : i32 to index
    %c0_179 = arith.constant 0 : index
    %c2_180 = arith.constant 2 : index
    %181 = vector.load %arg2[%c0_178, %180, %c0_179, %c2_180] : memref<1x18x4x130xbf16, #tpu.memory_space<vmem>>, vector<1x1x4x128xbf16>
    %182 = vector.shape_cast %181 : vector<1x1x4x128xbf16> to vector<4x128xbf16>
    %c8_181 = arith.constant 8 : index
    %c384_182 = arith.constant 384 : index
    %183 = vector.load %arg6[%c8_181, %c384_182] : memref<36x2048xbf16, #tpu.memory_space<vmem>>, vector<4x128xbf16>
    tpu.vector_store %arg6[%c8_181, %c384_182], %182 {strides = array<i32>} : memref<36x2048xbf16, #tpu.memory_space<vmem>>, vector<4x128xbf16>,
    %c4_i32_183 = arith.constant 4 : i32
    %184 = arith.addi %163, %c4_i32_183 : i32
    %c0_184 = arith.constant 0 : index
    %185 = arith.index_cast %184 : i32 to index
    %c0_185 = arith.constant 0 : index
    %c2_186 = arith.constant 2 : index
    %186 = vector.load %arg2[%c0_184, %185, %c0_185, %c2_186] : memref<1x18x4x130xbf16, #tpu.memory_space<vmem>>, vector<1x1x4x128xbf16>
    %187 = vector.shape_cast %186 : vector<1x1x4x128xbf16> to vector<4x128xbf16>
    %c8_187 = arith.constant 8 : index
    %c512_188 = arith.constant 512 : index
    %188 = vector.load %arg6[%c8_187, %c512_188] : memref<36x2048xbf16, #tpu.memory_space<vmem>>, vector<4x128xbf16>
    tpu.vector_store %arg6[%c8_187, %c512_188], %187 {strides = array<i32>} : memref<36x2048xbf16, #tpu.memory_space<vmem>>, vector<4x128xbf16>,
    %c5_i32_189 = arith.constant 5 : i32
    %189 = arith.addi %163, %c5_i32_189 : i32
    %c0_190 = arith.constant 0 : index
    %190 = arith.index_cast %189 : i32 to index
    %c0_191 = arith.constant 0 : index
    %c2_192 = arith.constant 2 : index
    %191 = vector.load %arg2[%c0_190, %190, %c0_191, %c2_192] : memref<1x18x4x130xbf16, #tpu.memory_space<vmem>>, vector<1x1x4x128xbf16>
    %192 = vector.shape_cast %191 : vector<1x1x4x128xbf16> to vector<4x128xbf16>
    %c8_193 = arith.constant 8 : index
    %c640_194 = arith.constant 640 : index
    %193 = vector.load %arg6[%c8_193, %c640_194] : memref<36x2048xbf16, #tpu.memory_space<vmem>>, vector<4x128xbf16>
    tpu.vector_store %arg6[%c8_193, %c640_194], %192 {strides = array<i32>} : memref<36x2048xbf16, #tpu.memory_space<vmem>>, vector<4x128xbf16>,
    %c6_i32_195 = arith.constant 6 : i32
    %194 = arith.addi %163, %c6_i32_195 : i32
    %c0_196 = arith.constant 0 : index
    %195 = arith.index_cast %194 : i32 to index
    %c0_197 = arith.constant 0 : index
    %c2_198 = arith.constant 2 : index
    %196 = vector.load %arg2[%c0_196, %195, %c0_197, %c2_198] : memref<1x18x4x130xbf16, #tpu.memory_space<vmem>>, vector<1x1x4x128xbf16>
    %197 = vector.shape_cast %196 : vector<1x1x4x128xbf16> to vector<4x128xbf16>
    %c8_199 = arith.constant 8 : index
    %c768_200 = arith.constant 768 : index
    %198 = vector.load %arg6[%c8_199, %c768_200] : memref<36x2048xbf16, #tpu.memory_space<vmem>>, vector<4x128xbf16>
    tpu.vector_store %arg6[%c8_199, %c768_200], %197 {strides = array<i32>} : memref<36x2048xbf16, #tpu.memory_space<vmem>>, vector<4x128xbf16>,
    %c7_i32_201 = arith.constant 7 : i32
    %199 = arith.addi %163, %c7_i32_201 : i32
    %c0_202 = arith.constant 0 : index
    %200 = arith.index_cast %199 : i32 to index
    %c0_203 = arith.constant 0 : index
    %c2_204 = arith.constant 2 : index
    %201 = vector.load %arg2[%c0_202, %200, %c0_203, %c2_204] : memref<1x18x4x130xbf16, #tpu.memory_space<vmem>>, vector<1x1x4x128xbf16>
    %202 = vector.shape_cast %201 : vector<1x1x4x128xbf16> to vector<4x128xbf16>
    %c8_205 = arith.constant 8 : index
    %c896_206 = arith.constant 896 : index
    %203 = vector.load %arg6[%c8_205, %c896_206] : memref<36x2048xbf16, #tpu.memory_space<vmem>>, vector<4x128xbf16>
    tpu.vector_store %arg6[%c8_205, %c896_206], %202 {strides = array<i32>} : memref<36x2048xbf16, #tpu.memory_space<vmem>>, vector<4x128xbf16>,
    %c8_i32_207 = arith.constant 8 : i32
    %204 = arith.addi %163, %c8_i32_207 : i32
    %c0_208 = arith.constant 0 : index
    %205 = arith.index_cast %204 : i32 to index
    %c0_209 = arith.constant 0 : index
    %c2_210 = arith.constant 2 : index
    %206 = vector.load %arg2[%c0_208, %205, %c0_209, %c2_210] : memref<1x18x4x130xbf16, #tpu.memory_space<vmem>>, vector<1x1x4x128xbf16>
    %207 = vector.shape_cast %206 : vector<1x1x4x128xbf16> to vector<4x128xbf16>
    %c8_211 = arith.constant 8 : index
    %c1024_212 = arith.constant 1024 : index
    %208 = vector.load %arg6[%c8_211, %c1024_212] : memref<36x2048xbf16, #tpu.memory_space<vmem>>, vector<4x128xbf16>
    tpu.vector_store %arg6[%c8_211, %c1024_212], %207 {strides = array<i32>} : memref<36x2048xbf16, #tpu.memory_space<vmem>>, vector<4x128xbf16>,
    %c9_i32_213 = arith.constant 9 : i32
    %209 = arith.addi %163, %c9_i32_213 : i32
    %c0_214 = arith.constant 0 : index
    %210 = arith.index_cast %209 : i32 to index
    %c0_215 = arith.constant 0 : index
    %c2_216 = arith.constant 2 : index
    %211 = vector.load %arg2[%c0_214, %210, %c0_215, %c2_216] : memref<1x18x4x130xbf16, #tpu.memory_space<vmem>>, vector<1x1x4x128xbf16>
    %212 = vector.shape_cast %211 : vector<1x1x4x128xbf16> to vector<4x128xbf16>
    %c8_217 = arith.constant 8 : index
    %c1152_218 = arith.constant 1152 : index
    %213 = vector.load %arg6[%c8_217, %c1152_218] : memref<36x2048xbf16, #tpu.memory_space<vmem>>, vector<4x128xbf16>
    tpu.vector_store %arg6[%c8_217, %c1152_218], %212 {strides = array<i32>} : memref<36x2048xbf16, #tpu.memory_space<vmem>>, vector<4x128xbf16>,
    %c10_i32_219 = arith.constant 10 : i32
    %214 = arith.addi %163, %c10_i32_219 : i32
    %c0_220 = arith.constant 0 : index
    %215 = arith.index_cast %214 : i32 to index
    %c0_221 = arith.constant 0 : index
    %c2_222 = arith.constant 2 : index
    %216 = vector.load %arg2[%c0_220, %215, %c0_221, %c2_222] : memref<1x18x4x130xbf16, #tpu.memory_space<vmem>>, vector<1x1x4x128xbf16>
    %217 = vector.shape_cast %216 : vector<1x1x4x128xbf16> to vector<4x128xbf16>
    %c8_223 = arith.constant 8 : index
    %c1280_224 = arith.constant 1280 : index
    %218 = vector.load %arg6[%c8_223, %c1280_224] : memref<36x2048xbf16, #tpu.memory_space<vmem>>, vector<4x128xbf16>
    tpu.vector_store %arg6[%c8_223, %c1280_224], %217 {strides = array<i32>} : memref<36x2048xbf16, #tpu.memory_space<vmem>>, vector<4x128xbf16>,
    %c11_i32_225 = arith.constant 11 : i32
    %219 = arith.addi %163, %c11_i32_225 : i32
    %c0_226 = arith.constant 0 : index
    %220 = arith.index_cast %219 : i32 to index
    %c0_227 = arith.constant 0 : index
    %c2_228 = arith.constant 2 : index
    %221 = vector.load %arg2[%c0_226, %220, %c0_227, %c2_228] : memref<1x18x4x130xbf16, #tpu.memory_space<vmem>>, vector<1x1x4x128xbf16>
    %222 = vector.shape_cast %221 : vector<1x1x4x128xbf16> to vector<4x128xbf16>
    %c8_229 = arith.constant 8 : index
    %c1408_230 = arith.constant 1408 : index
    %223 = vector.load %arg6[%c8_229, %c1408_230] : memref<36x2048xbf16, #tpu.memory_space<vmem>>, vector<4x128xbf16>
    tpu.vector_store %arg6[%c8_229, %c1408_230], %222 {strides = array<i32>} : memref<36x2048xbf16, #tpu.memory_space<vmem>>, vector<4x128xbf16>,
    %c12_i32_231 = arith.constant 12 : i32
    %224 = arith.addi %163, %c12_i32_231 : i32
    %c0_232 = arith.constant 0 : index
    %225 = arith.index_cast %224 : i32 to index
    %c0_233 = arith.constant 0 : index
    %c2_234 = arith.constant 2 : index
    %226 = vector.load %arg2[%c0_232, %225, %c0_233, %c2_234] : memref<1x18x4x130xbf16, #tpu.memory_space<vmem>>, vector<1x1x4x128xbf16>
    %227 = vector.shape_cast %226 : vector<1x1x4x128xbf16> to vector<4x128xbf16>
    %c8_235 = arith.constant 8 : index
    %c1536_236 = arith.constant 1536 : index
    %228 = vector.load %arg6[%c8_235, %c1536_236] : memref<36x2048xbf16, #tpu.memory_space<vmem>>, vector<4x128xbf16>
    tpu.vector_store %arg6[%c8_235, %c1536_236], %227 {strides = array<i32>} : memref<36x2048xbf16, #tpu.memory_space<vmem>>, vector<4x128xbf16>,
    %c13_i32_237 = arith.constant 13 : i32
    %229 = arith.addi %163, %c13_i32_237 : i32
    %c0_238 = arith.constant 0 : index
    %230 = arith.index_cast %229 : i32 to index
    %c0_239 = arith.constant 0 : index
    %c2_240 = arith.constant 2 : index
    %231 = vector.load %arg2[%c0_238, %230, %c0_239, %c2_240] : memref<1x18x4x130xbf16, #tpu.memory_space<vmem>>, vector<1x1x4x128xbf16>
    %232 = vector.shape_cast %231 : vector<1x1x4x128xbf16> to vector<4x128xbf16>
    %c8_241 = arith.constant 8 : index
    %c1664_242 = arith.constant 1664 : index
    %233 = vector.load %arg6[%c8_241, %c1664_242] : memref<36x2048xbf16, #tpu.memory_space<vmem>>, vector<4x128xbf16>
    tpu.vector_store %arg6[%c8_241, %c1664_242], %232 {strides = array<i32>} : memref<36x2048xbf16, #tpu.memory_space<vmem>>, vector<4x128xbf16>,
    %c14_i32_243 = arith.constant 14 : i32
    %234 = arith.addi %163, %c14_i32_243 : i32
    %c0_244 = arith.constant 0 : index
    %235 = arith.index_cast %234 : i32 to index
    %c0_245 = arith.constant 0 : index
    %c2_246 = arith.constant 2 : index
    %236 = vector.load %arg2[%c0_244, %235, %c0_245, %c2_246] : memref<1x18x4x130xbf16, #tpu.memory_space<vmem>>, vector<1x1x4x128xbf16>
    %237 = vector.shape_cast %236 : vector<1x1x4x128xbf16> to vector<4x128xbf16>
    %c8_247 = arith.constant 8 : index
    %c1792_248 = arith.constant 1792 : index
    %238 = vector.load %arg6[%c8_247, %c1792_248] : memref<36x2048xbf16, #tpu.memory_space<vmem>>, vector<4x128xbf16>
    tpu.vector_store %arg6[%c8_247, %c1792_248], %237 {strides = array<i32>} : memref<36x2048xbf16, #tpu.memory_space<vmem>>, vector<4x128xbf16>,
    %c15_i32_249 = arith.constant 15 : i32
    %239 = arith.addi %163, %c15_i32_249 : i32
    %c0_250 = arith.constant 0 : index
    %240 = arith.index_cast %239 : i32 to index
    %c0_251 = arith.constant 0 : index
    %c2_252 = arith.constant 2 : index
    %241 = vector.load %arg2[%c0_250, %240, %c0_251, %c2_252] : memref<1x18x4x130xbf16, #tpu.memory_space<vmem>>, vector<1x1x4x128xbf16>
    %242 = vector.shape_cast %241 : vector<1x1x4x128xbf16> to vector<4x128xbf16>
    %c8_253 = arith.constant 8 : index
    %c1920_254 = arith.constant 1920 : index
    %243 = vector.load %arg6[%c8_253, %c1920_254] : memref<36x2048xbf16, #tpu.memory_space<vmem>>, vector<4x128xbf16>
    tpu.vector_store %arg6[%c8_253, %c1920_254], %242 {strides = array<i32>} : memref<36x2048xbf16, #tpu.memory_space<vmem>>, vector<4x128xbf16>,
    %c1_i32_255 = arith.constant 1 : i32
    %244 = arith.addi %0, %c1_i32_255 : i32
    %c0_i32_256 = arith.constant 0 : i32
    %245 = arith.addi %244, %c0_i32_256 : i32
    %c0_257 = arith.constant 0 : index
    %246 = arith.index_cast %245 : i32 to index
    %c0_258 = arith.constant 0 : index
    %c0_259 = arith.constant 0 : index
    %247 = vector.load %arg2[%c0_257, %246, %c0_258, %c0_259] : memref<1x18x4x130xbf16, #tpu.memory_space<vmem>>, vector<1x1x4x128xbf16>
    %248 = vector.shape_cast %247 : vector<1x1x4x128xbf16> to vector<4x128xbf16>
    %c12 = arith.constant 12 : index
    %c0_260 = arith.constant 0 : index
    %249 = vector.load %arg6[%c12, %c0_260] : memref<36x2048xbf16, #tpu.memory_space<vmem>>, vector<4x128xbf16>
    tpu.vector_store %arg6[%c12, %c0_260], %248 {strides = array<i32>} : memref<36x2048xbf16, #tpu.memory_space<vmem>>, vector<4x128xbf16>,
    %c1_i32_261 = arith.constant 1 : i32
    %250 = arith.addi %244, %c1_i32_261 : i32
    %c0_262 = arith.constant 0 : index
    %251 = arith.index_cast %250 : i32 to index
    %c0_263 = arith.constant 0 : index
    %c0_264 = arith.constant 0 : index
    %252 = vector.load %arg2[%c0_262, %251, %c0_263, %c0_264] : memref<1x18x4x130xbf16, #tpu.memory_space<vmem>>, vector<1x1x4x128xbf16>
    %253 = vector.shape_cast %252 : vector<1x1x4x128xbf16> to vector<4x128xbf16>
    %c12_265 = arith.constant 12 : index
    %c128_266 = arith.constant 128 : index
    %254 = vector.load %arg6[%c12_265, %c128_266] : memref<36x2048xbf16, #tpu.memory_space<vmem>>, vector<4x128xbf16>
    tpu.vector_store %arg6[%c12_265, %c128_266], %253 {strides = array<i32>} : memref<36x2048xbf16, #tpu.memory_space<vmem>>, vector<4x128xbf16>,
    %c2_i32_267 = arith.constant 2 : i32
    %255 = arith.addi %244, %c2_i32_267 : i32
    %c0_268 = arith.constant 0 : index
    %256 = arith.index_cast %255 : i32 to index
    %c0_269 = arith.constant 0 : index
    %c0_270 = arith.constant 0 : index
    %257 = vector.load %arg2[%c0_268, %256, %c0_269, %c0_270] : memref<1x18x4x130xbf16, #tpu.memory_space<vmem>>, vector<1x1x4x128xbf16>
    %258 = vector.shape_cast %257 : vector<1x1x4x128xbf16> to vector<4x128xbf16>
    %c12_271 = arith.constant 12 : index
    %c256_272 = arith.constant 256 : index
    %259 = vector.load %arg6[%c12_271, %c256_272] : memref<36x2048xbf16, #tpu.memory_space<vmem>>, vector<4x128xbf16>
    tpu.vector_store %arg6[%c12_271, %c256_272], %258 {strides = array<i32>} : memref<36x2048xbf16, #tpu.memory_space<vmem>>, vector<4x128xbf16>,
    %c3_i32_273 = arith.constant 3 : i32
    %260 = arith.addi %244, %c3_i32_273 : i32
    %c0_274 = arith.constant 0 : index
    %261 = arith.index_cast %260 : i32 to index
    %c0_275 = arith.constant 0 : index
    %c0_276 = arith.constant 0 : index
    %262 = vector.load %arg2[%c0_274, %261, %c0_275, %c0_276] : memref<1x18x4x130xbf16, #tpu.memory_space<vmem>>, vector<1x1x4x128xbf16>
    %263 = vector.shape_cast %262 : vector<1x1x4x128xbf16> to vector<4x128xbf16>
    %c12_277 = arith.constant 12 : index
    %c384_278 = arith.constant 384 : index
    %264 = vector.load %arg6[%c12_277, %c384_278] : memref<36x2048xbf16, #tpu.memory_space<vmem>>, vector<4x128xbf16>
    tpu.vector_store %arg6[%c12_277, %c384_278], %263 {strides = array<i32>} : memref<36x2048xbf16, #tpu.memory_space<vmem>>, vector<4x128xbf16>,
    %c4_i32_279 = arith.constant 4 : i32
    %265 = arith.addi %244, %c4_i32_279 : i32
    %c0_280 = arith.constant 0 : index
    %266 = arith.index_cast %265 : i32 to index
    %c0_281 = arith.constant 0 : index
    %c0_282 = arith.constant 0 : index
    %267 = vector.load %arg2[%c0_280, %266, %c0_281, %c0_282] : memref<1x18x4x130xbf16, #tpu.memory_space<vmem>>, vector<1x1x4x128xbf16>
    %268 = vector.shape_cast %267 : vector<1x1x4x128xbf16> to vector<4x128xbf16>
    %c12_283 = arith.constant 12 : index
    %c512_284 = arith.constant 512 : index
    %269 = vector.load %arg6[%c12_283, %c512_284] : memref<36x2048xbf16, #tpu.memory_space<vmem>>, vector<4x128xbf16>
    tpu.vector_store %arg6[%c12_283, %c512_284], %268 {strides = array<i32>} : memref<36x2048xbf16, #tpu.memory_space<vmem>>, vector<4x128xbf16>,
    %c5_i32_285 = arith.constant 5 : i32
    %270 = arith.addi %244, %c5_i32_285 : i32
    %c0_286 = arith.constant 0 : index
    %271 = arith.index_cast %270 : i32 to index
    %c0_287 = arith.constant 0 : index
    %c0_288 = arith.constant 0 : index
    %272 = vector.load %arg2[%c0_286, %271, %c0_287, %c0_288] : memref<1x18x4x130xbf16, #tpu.memory_space<vmem>>, vector<1x1x4x128xbf16>
    %273 = vector.shape_cast %272 : vector<1x1x4x128xbf16> to vector<4x128xbf16>
    %c12_289 = arith.constant 12 : index
    %c640_290 = arith.constant 640 : index
    %274 = vector.load %arg6[%c12_289, %c640_290] : memref<36x2048xbf16, #tpu.memory_space<vmem>>, vector<4x128xbf16>
    tpu.vector_store %arg6[%c12_289, %c640_290], %273 {strides = array<i32>} : memref<36x2048xbf16, #tpu.memory_space<vmem>>, vector<4x128xbf16>,
    %c6_i32_291 = arith.constant 6 : i32
    %275 = arith.addi %244, %c6_i32_291 : i32
    %c0_292 = arith.constant 0 : index
    %276 = arith.index_cast %275 : i32 to index
    %c0_293 = arith.constant 0 : index
    %c0_294 = arith.constant 0 : index
    %277 = vector.load %arg2[%c0_292, %276, %c0_293, %c0_294] : memref<1x18x4x130xbf16, #tpu.memory_space<vmem>>, vector<1x1x4x128xbf16>
    %278 = vector.shape_cast %277 : vector<1x1x4x128xbf16> to vector<4x128xbf16>
    %c12_295 = arith.constant 12 : index
    %c768_296 = arith.constant 768 : index
    %279 = vector.load %arg6[%c12_295, %c768_296] : memref<36x2048xbf16, #tpu.memory_space<vmem>>, vector<4x128xbf16>
    tpu.vector_store %arg6[%c12_295, %c768_296], %278 {strides = array<i32>} : memref<36x2048xbf16, #tpu.memory_space<vmem>>, vector<4x128xbf16>,
    %c7_i32_297 = arith.constant 7 : i32
    %280 = arith.addi %244, %c7_i32_297 : i32
    %c0_298 = arith.constant 0 : index
    %281 = arith.index_cast %280 : i32 to index
    %c0_299 = arith.constant 0 : index
    %c0_300 = arith.constant 0 : index
    %282 = vector.load %arg2[%c0_298, %281, %c0_299, %c0_300] : memref<1x18x4x130xbf16, #tpu.memory_space<vmem>>, vector<1x1x4x128xbf16>
    %283 = vector.shape_cast %282 : vector<1x1x4x128xbf16> to vector<4x128xbf16>
    %c12_301 = arith.constant 12 : index
    %c896_302 = arith.constant 896 : index
    %284 = vector.load %arg6[%c12_301, %c896_302] : memref<36x2048xbf16, #tpu.memory_space<vmem>>, vector<4x128xbf16>
    tpu.vector_store %arg6[%c12_301, %c896_302], %283 {strides = array<i32>} : memref<36x2048xbf16, #tpu.memory_space<vmem>>, vector<4x128xbf16>,
    %c8_i32_303 = arith.constant 8 : i32
    %285 = arith.addi %244, %c8_i32_303 : i32
    %c0_304 = arith.constant 0 : index
    %286 = arith.index_cast %285 : i32 to index
    %c0_305 = arith.constant 0 : index
    %c0_306 = arith.constant 0 : index
    %287 = vector.load %arg2[%c0_304, %286, %c0_305, %c0_306] : memref<1x18x4x130xbf16, #tpu.memory_space<vmem>>, vector<1x1x4x128xbf16>
    %288 = vector.shape_cast %287 : vector<1x1x4x128xbf16> to vector<4x128xbf16>
    %c12_307 = arith.constant 12 : index
    %c1024_308 = arith.constant 1024 : index
    %289 = vector.load %arg6[%c12_307, %c1024_308] : memref<36x2048xbf16, #tpu.memory_space<vmem>>, vector<4x128xbf16>
    tpu.vector_store %arg6[%c12_307, %c1024_308], %288 {strides = array<i32>} : memref<36x2048xbf16, #tpu.memory_space<vmem>>, vector<4x128xbf16>,
    %c9_i32_309 = arith.constant 9 : i32
    %290 = arith.addi %244, %c9_i32_309 : i32
    %c0_310 = arith.constant 0 : index
    %291 = arith.index_cast %290 : i32 to index
    %c0_311 = arith.constant 0 : index
    %c0_312 = arith.constant 0 : index
    %292 = vector.load %arg2[%c0_310, %291, %c0_311, %c0_312] : memref<1x18x4x130xbf16, #tpu.memory_space<vmem>>, vector<1x1x4x128xbf16>
    %293 = vector.shape_cast %292 : vector<1x1x4x128xbf16> to vector<4x128xbf16>
    %c12_313 = arith.constant 12 : index
    %c1152_314 = arith.constant 1152 : index
    %294 = vector.load %arg6[%c12_313, %c1152_314] : memref<36x2048xbf16, #tpu.memory_space<vmem>>, vector<4x128xbf16>
    tpu.vector_store %arg6[%c12_313, %c1152_314], %293 {strides = array<i32>} : memref<36x2048xbf16, #tpu.memory_space<vmem>>, vector<4x128xbf16>,
    %c10_i32_315 = arith.constant 10 : i32
    %295 = arith.addi %244, %c10_i32_315 : i32
    %c0_316 = arith.constant 0 : index
    %296 = arith.index_cast %295 : i32 to index
    %c0_317 = arith.constant 0 : index
    %c0_318 = arith.constant 0 : index
    %297 = vector.load %arg2[%c0_316, %296, %c0_317, %c0_318] : memref<1x18x4x130xbf16, #tpu.memory_space<vmem>>, vector<1x1x4x128xbf16>
    %298 = vector.shape_cast %297 : vector<1x1x4x128xbf16> to vector<4x128xbf16>
    %c12_319 = arith.constant 12 : index
    %c1280_320 = arith.constant 1280 : index
    %299 = vector.load %arg6[%c12_319, %c1280_320] : memref<36x2048xbf16, #tpu.memory_space<vmem>>, vector<4x128xbf16>
    tpu.vector_store %arg6[%c12_319, %c1280_320], %298 {strides = array<i32>} : memref<36x2048xbf16, #tpu.memory_space<vmem>>, vector<4x128xbf16>,
    %c11_i32_321 = arith.constant 11 : i32
    %300 = arith.addi %244, %c11_i32_321 : i32
    %c0_322 = arith.constant 0 : index
    %301 = arith.index_cast %300 : i32 to index
    %c0_323 = arith.constant 0 : index
    %c0_324 = arith.constant 0 : index
    %302 = vector.load %arg2[%c0_322, %301, %c0_323, %c0_324] : memref<1x18x4x130xbf16, #tpu.memory_space<vmem>>, vector<1x1x4x128xbf16>
    %303 = vector.shape_cast %302 : vector<1x1x4x128xbf16> to vector<4x128xbf16>
    %c12_325 = arith.constant 12 : index
    %c1408_326 = arith.constant 1408 : index
    %304 = vector.load %arg6[%c12_325, %c1408_326] : memref<36x2048xbf16, #tpu.memory_space<vmem>>, vector<4x128xbf16>
    tpu.vector_store %arg6[%c12_325, %c1408_326], %303 {strides = array<i32>} : memref<36x2048xbf16, #tpu.memory_space<vmem>>, vector<4x128xbf16>,
    %c12_i32_327 = arith.constant 12 : i32
    %305 = arith.addi %244, %c12_i32_327 : i32
    %c0_328 = arith.constant 0 : index
    %306 = arith.index_cast %305 : i32 to index
    %c0_329 = arith.constant 0 : index
    %c0_330 = arith.constant 0 : index
    %307 = vector.load %arg2[%c0_328, %306, %c0_329, %c0_330] : memref<1x18x4x130xbf16, #tpu.memory_space<vmem>>, vector<1x1x4x128xbf16>
    %308 = vector.shape_cast %307 : vector<1x1x4x128xbf16> to vector<4x128xbf16>
    %c12_331 = arith.constant 12 : index
    %c1536_332 = arith.constant 1536 : index
    %309 = vector.load %arg6[%c12_331, %c1536_332] : memref<36x2048xbf16, #tpu.memory_space<vmem>>, vector<4x128xbf16>
    tpu.vector_store %arg6[%c12_331, %c1536_332], %308 {strides = array<i32>} : memref<36x2048xbf16, #tpu.memory_space<vmem>>, vector<4x128xbf16>,
    %c13_i32_333 = arith.constant 13 : i32
    %310 = arith.addi %244, %c13_i32_333 : i32
    %c0_334 = arith.constant 0 : index
    %311 = arith.index_cast %310 : i32 to index
    %c0_335 = arith.constant 0 : index
    %c0_336 = arith.constant 0 : index
    %312 = vector.load %arg2[%c0_334, %311, %c0_335, %c0_336] : memref<1x18x4x130xbf16, #tpu.memory_space<vmem>>, vector<1x1x4x128xbf16>
    %313 = vector.shape_cast %312 : vector<1x1x4x128xbf16> to vector<4x128xbf16>
    %c12_337 = arith.constant 12 : index
    %c1664_338 = arith.constant 1664 : index
    %314 = vector.load %arg6[%c12_337, %c1664_338] : memref<36x2048xbf16, #tpu.memory_space<vmem>>, vector<4x128xbf16>
    tpu.vector_store %arg6[%c12_337, %c1664_338], %313 {strides = array<i32>} : memref<36x2048xbf16, #tpu.memory_space<vmem>>, vector<4x128xbf16>,
    %c14_i32_339 = arith.constant 14 : i32
    %315 = arith.addi %244, %c14_i32_339 : i32
    %c0_340 = arith.constant 0 : index
    %316 = arith.index_cast %315 : i32 to index
    %c0_341 = arith.constant 0 : index
    %c0_342 = arith.constant 0 : index
    %317 = vector.load %arg2[%c0_340, %316, %c0_341, %c0_342] : memref<1x18x4x130xbf16, #tpu.memory_space<vmem>>, vector<1x1x4x128xbf16>
    %318 = vector.shape_cast %317 : vector<1x1x4x128xbf16> to vector<4x128xbf16>
    %c12_343 = arith.constant 12 : index
    %c1792_344 = arith.constant 1792 : index
    %319 = vector.load %arg6[%c12_343, %c1792_344] : memref<36x2048xbf16, #tpu.memory_space<vmem>>, vector<4x128xbf16>
    tpu.vector_store %arg6[%c12_343, %c1792_344], %318 {strides = array<i32>} : memref<36x2048xbf16, #tpu.memory_space<vmem>>, vector<4x128xbf16>,
    %c15_i32_345 = arith.constant 15 : i32
    %320 = arith.addi %244, %c15_i32_345 : i32
    %c0_346 = arith.constant 0 : index
    %321 = arith.index_cast %320 : i32 to index
    %c0_347 = arith.constant 0 : index
    %c0_348 = arith.constant 0 : index
    %322 = vector.load %arg2[%c0_346, %321, %c0_347, %c0_348] : memref<1x18x4x130xbf16, #tpu.memory_space<vmem>>, vector<1x1x4x128xbf16>
    %323 = vector.shape_cast %322 : vector<1x1x4x128xbf16> to vector<4x128xbf16>
    %c12_349 = arith.constant 12 : index
    %c1920_350 = arith.constant 1920 : index
    %324 = vector.load %arg6[%c12_349, %c1920_350] : memref<36x2048xbf16, #tpu.memory_space<vmem>>, vector<4x128xbf16>
    tpu.vector_store %arg6[%c12_349, %c1920_350], %323 {strides = array<i32>} : memref<36x2048xbf16, #tpu.memory_space<vmem>>, vector<4x128xbf16>,
    %c1_i32_351 = arith.constant 1 : i32
    %325 = arith.addi %0, %c1_i32_351 : i32
    %c0_i32_352 = arith.constant 0 : i32
    %326 = arith.addi %325, %c0_i32_352 : i32
    %c0_353 = arith.constant 0 : index
    %327 = arith.index_cast %326 : i32 to index
    %c0_354 = arith.constant 0 : index
    %c1_355 = arith.constant 1 : index
    %328 = vector.load %arg2[%c0_353, %327, %c0_354, %c1_355] : memref<1x18x4x130xbf16, #tpu.memory_space<vmem>>, vector<1x1x4x128xbf16>
    %329 = vector.shape_cast %328 : vector<1x1x4x128xbf16> to vector<4x128xbf16>
    %c16 = arith.constant 16 : index
    %c0_356 = arith.constant 0 : index
    %330 = vector.load %arg6[%c16, %c0_356] : memref<36x2048xbf16, #tpu.memory_space<vmem>>, vector<4x128xbf16>
    tpu.vector_store %arg6[%c16, %c0_356], %329 {strides = array<i32>} : memref<36x2048xbf16, #tpu.memory_space<vmem>>, vector<4x128xbf16>,
    %c1_i32_357 = arith.constant 1 : i32
    %331 = arith.addi %325, %c1_i32_357 : i32
    %c0_358 = arith.constant 0 : index
    %332 = arith.index_cast %331 : i32 to index
    %c0_359 = arith.constant 0 : index
    %c1_360 = arith.constant 1 : index
    %333 = vector.load %arg2[%c0_358, %332, %c0_359, %c1_360] : memref<1x18x4x130xbf16, #tpu.memory_space<vmem>>, vector<1x1x4x128xbf16>
    %334 = vector.shape_cast %333 : vector<1x1x4x128xbf16> to vector<4x128xbf16>
    %c16_361 = arith.constant 16 : index
    %c128_362 = arith.constant 128 : index
    %335 = vector.load %arg6[%c16_361, %c128_362] : memref<36x2048xbf16, #tpu.memory_space<vmem>>, vector<4x128xbf16>
    tpu.vector_store %arg6[%c16_361, %c128_362], %334 {strides = array<i32>} : memref<36x2048xbf16, #tpu.memory_space<vmem>>, vector<4x128xbf16>,
    %c2_i32_363 = arith.constant 2 : i32
    %336 = arith.addi %325, %c2_i32_363 : i32
    %c0_364 = arith.constant 0 : index
    %337 = arith.index_cast %336 : i32 to index
    %c0_365 = arith.constant 0 : index
    %c1_366 = arith.constant 1 : index
    %338 = vector.load %arg2[%c0_364, %337, %c0_365, %c1_366] : memref<1x18x4x130xbf16, #tpu.memory_space<vmem>>, vector<1x1x4x128xbf16>
    %339 = vector.shape_cast %338 : vector<1x1x4x128xbf16> to vector<4x128xbf16>
    %c16_367 = arith.constant 16 : index
    %c256_368 = arith.constant 256 : index
    %340 = vector.load %arg6[%c16_367, %c256_368] : memref<36x2048xbf16, #tpu.memory_space<vmem>>, vector<4x128xbf16>
    tpu.vector_store %arg6[%c16_367, %c256_368], %339 {strides = array<i32>} : memref<36x2048xbf16, #tpu.memory_space<vmem>>, vector<4x128xbf16>,
    %c3_i32_369 = arith.constant 3 : i32
    %341 = arith.addi %325, %c3_i32_369 : i32
    %c0_370 = arith.constant 0 : index
    %342 = arith.index_cast %341 : i32 to index
    %c0_371 = arith.constant 0 : index
    %c1_372 = arith.constant 1 : index
    %343 = vector.load %arg2[%c0_370, %342, %c0_371, %c1_372] : memref<1x18x4x130xbf16, #tpu.memory_space<vmem>>, vector<1x1x4x128xbf16>
    %344 = vector.shape_cast %343 : vector<1x1x4x128xbf16> to vector<4x128xbf16>
    %c16_373 = arith.constant 16 : index
    %c384_374 = arith.constant 384 : index
    %345 = vector.load %arg6[%c16_373, %c384_374] : memref<36x2048xbf16, #tpu.memory_space<vmem>>, vector<4x128xbf16>
    tpu.vector_store %arg6[%c16_373, %c384_374], %344 {strides = array<i32>} : memref<36x2048xbf16, #tpu.memory_space<vmem>>, vector<4x128xbf16>,
    %c4_i32_375 = arith.constant 4 : i32
    %346 = arith.addi %325, %c4_i32_375 : i32
    %c0_376 = arith.constant 0 : index
    %347 = arith.index_cast %346 : i32 to index
    %c0_377 = arith.constant 0 : index
    %c1_378 = arith.constant 1 : index
    %348 = vector.load %arg2[%c0_376, %347, %c0_377, %c1_378] : memref<1x18x4x130xbf16, #tpu.memory_space<vmem>>, vector<1x1x4x128xbf16>
    %349 = vector.shape_cast %348 : vector<1x1x4x128xbf16> to vector<4x128xbf16>
    %c16_379 = arith.constant 16 : index
    %c512_380 = arith.constant 512 : index
    %350 = vector.load %arg6[%c16_379, %c512_380] : memref<36x2048xbf16, #tpu.memory_space<vmem>>, vector<4x128xbf16>
    tpu.vector_store %arg6[%c16_379, %c512_380], %349 {strides = array<i32>} : memref<36x2048xbf16, #tpu.memory_space<vmem>>, vector<4x128xbf16>,
    %c5_i32_381 = arith.constant 5 : i32
    %351 = arith.addi %325, %c5_i32_381 : i32
    %c0_382 = arith.constant 0 : index
    %352 = arith.index_cast %351 : i32 to index
    %c0_383 = arith.constant 0 : index
    %c1_384 = arith.constant 1 : index
    %353 = vector.load %arg2[%c0_382, %352, %c0_383, %c1_384] : memref<1x18x4x130xbf16, #tpu.memory_space<vmem>>, vector<1x1x4x128xbf16>
    %354 = vector.shape_cast %353 : vector<1x1x4x128xbf16> to vector<4x128xbf16>
    %c16_385 = arith.constant 16 : index
    %c640_386 = arith.constant 640 : index
    %355 = vector.load %arg6[%c16_385, %c640_386] : memref<36x2048xbf16, #tpu.memory_space<vmem>>, vector<4x128xbf16>
    tpu.vector_store %arg6[%c16_385, %c640_386], %354 {strides = array<i32>} : memref<36x2048xbf16, #tpu.memory_space<vmem>>, vector<4x128xbf16>,
    %c6_i32_387 = arith.constant 6 : i32
    %356 = arith.addi %325, %c6_i32_387 : i32
    %c0_388 = arith.constant 0 : index
    %357 = arith.index_cast %356 : i32 to index
    %c0_389 = arith.constant 0 : index
    %c1_390 = arith.constant 1 : index
    %358 = vector.load %arg2[%c0_388, %357, %c0_389, %c1_390] : memref<1x18x4x130xbf16, #tpu.memory_space<vmem>>, vector<1x1x4x128xbf16>
    %359 = vector.shape_cast %358 : vector<1x1x4x128xbf16> to vector<4x128xbf16>
    %c16_391 = arith.constant 16 : index
    %c768_392 = arith.constant 768 : index
    %360 = vector.load %arg6[%c16_391, %c768_392] : memref<36x2048xbf16, #tpu.memory_space<vmem>>, vector<4x128xbf16>
    tpu.vector_store %arg6[%c16_391, %c768_392], %359 {strides = array<i32>} : memref<36x2048xbf16, #tpu.memory_space<vmem>>, vector<4x128xbf16>,
    %c7_i32_393 = arith.constant 7 : i32
    %361 = arith.addi %325, %c7_i32_393 : i32
    %c0_394 = arith.constant 0 : index
    %362 = arith.index_cast %361 : i32 to index
    %c0_395 = arith.constant 0 : index
    %c1_396 = arith.constant 1 : index
    %363 = vector.load %arg2[%c0_394, %362, %c0_395, %c1_396] : memref<1x18x4x130xbf16, #tpu.memory_space<vmem>>, vector<1x1x4x128xbf16>
    %364 = vector.shape_cast %363 : vector<1x1x4x128xbf16> to vector<4x128xbf16>
    %c16_397 = arith.constant 16 : index
    %c896_398 = arith.constant 896 : index
    %365 = vector.load %arg6[%c16_397, %c896_398] : memref<36x2048xbf16, #tpu.memory_space<vmem>>, vector<4x128xbf16>
    tpu.vector_store %arg6[%c16_397, %c896_398], %364 {strides = array<i32>} : memref<36x2048xbf16, #tpu.memory_space<vmem>>, vector<4x128xbf16>,
    %c8_i32_399 = arith.constant 8 : i32
    %366 = arith.addi %325, %c8_i32_399 : i32
    %c0_400 = arith.constant 0 : index
    %367 = arith.index_cast %366 : i32 to index
    %c0_401 = arith.constant 0 : index
    %c1_402 = arith.constant 1 : index
    %368 = vector.load %arg2[%c0_400, %367, %c0_401, %c1_402] : memref<1x18x4x130xbf16, #tpu.memory_space<vmem>>, vector<1x1x4x128xbf16>
    %369 = vector.shape_cast %368 : vector<1x1x4x128xbf16> to vector<4x128xbf16>
    %c16_403 = arith.constant 16 : index
    %c1024_404 = arith.constant 1024 : index
    %370 = vector.load %arg6[%c16_403, %c1024_404] : memref<36x2048xbf16, #tpu.memory_space<vmem>>, vector<4x128xbf16>
    tpu.vector_store %arg6[%c16_403, %c1024_404], %369 {strides = array<i32>} : memref<36x2048xbf16, #tpu.memory_space<vmem>>, vector<4x128xbf16>,
    %c9_i32_405 = arith.constant 9 : i32
    %371 = arith.addi %325, %c9_i32_405 : i32
    %c0_406 = arith.constant 0 : index
    %372 = arith.index_cast %371 : i32 to index
    %c0_407 = arith.constant 0 : index
    %c1_408 = arith.constant 1 : index
    %373 = vector.load %arg2[%c0_406, %372, %c0_407, %c1_408] : memref<1x18x4x130xbf16, #tpu.memory_space<vmem>>, vector<1x1x4x128xbf16>
    %374 = vector.shape_cast %373 : vector<1x1x4x128xbf16> to vector<4x128xbf16>
    %c16_409 = arith.constant 16 : index
    %c1152_410 = arith.constant 1152 : index
    %375 = vector.load %arg6[%c16_409, %c1152_410] : memref<36x2048xbf16, #tpu.memory_space<vmem>>, vector<4x128xbf16>
    tpu.vector_store %arg6[%c16_409, %c1152_410], %374 {strides = array<i32>} : memref<36x2048xbf16, #tpu.memory_space<vmem>>, vector<4x128xbf16>,
    %c10_i32_411 = arith.constant 10 : i32
    %376 = arith.addi %325, %c10_i32_411 : i32
    %c0_412 = arith.constant 0 : index
    %377 = arith.index_cast %376 : i32 to index
    %c0_413 = arith.constant 0 : index
    %c1_414 = arith.constant 1 : index
    %378 = vector.load %arg2[%c0_412, %377, %c0_413, %c1_414] : memref<1x18x4x130xbf16, #tpu.memory_space<vmem>>, vector<1x1x4x128xbf16>
    %379 = vector.shape_cast %378 : vector<1x1x4x128xbf16> to vector<4x128xbf16>
    %c16_415 = arith.constant 16 : index
    %c1280_416 = arith.constant 1280 : index
    %380 = vector.load %arg6[%c16_415, %c1280_416] : memref<36x2048xbf16, #tpu.memory_space<vmem>>, vector<4x128xbf16>
    tpu.vector_store %arg6[%c16_415, %c1280_416], %379 {strides = array<i32>} : memref<36x2048xbf16, #tpu.memory_space<vmem>>, vector<4x128xbf16>,
    %c11_i32_417 = arith.constant 11 : i32
    %381 = arith.addi %325, %c11_i32_417 : i32
    %c0_418 = arith.constant 0 : index
    %382 = arith.index_cast %381 : i32 to index
    %c0_419 = arith.constant 0 : index
    %c1_420 = arith.constant 1 : index
    %383 = vector.load %arg2[%c0_418, %382, %c0_419, %c1_420] : memref<1x18x4x130xbf16, #tpu.memory_space<vmem>>, vector<1x1x4x128xbf16>
    %384 = vector.shape_cast %383 : vector<1x1x4x128xbf16> to vector<4x128xbf16>
    %c16_421 = arith.constant 16 : index
    %c1408_422 = arith.constant 1408 : index
    %385 = vector.load %arg6[%c16_421, %c1408_422] : memref<36x2048xbf16, #tpu.memory_space<vmem>>, vector<4x128xbf16>
    tpu.vector_store %arg6[%c16_421, %c1408_422], %384 {strides = array<i32>} : memref<36x2048xbf16, #tpu.memory_space<vmem>>, vector<4x128xbf16>,
    %c12_i32_423 = arith.constant 12 : i32
    %386 = arith.addi %325, %c12_i32_423 : i32
    %c0_424 = arith.constant 0 : index
    %387 = arith.index_cast %386 : i32 to index
    %c0_425 = arith.constant 0 : index
    %c1_426 = arith.constant 1 : index
    %388 = vector.load %arg2[%c0_424, %387, %c0_425, %c1_426] : memref<1x18x4x130xbf16, #tpu.memory_space<vmem>>, vector<1x1x4x128xbf16>
    %389 = vector.shape_cast %388 : vector<1x1x4x128xbf16> to vector<4x128xbf16>
    %c16_427 = arith.constant 16 : index
    %c1536_428 = arith.constant 1536 : index
    %390 = vector.load %arg6[%c16_427, %c1536_428] : memref<36x2048xbf16, #tpu.memory_space<vmem>>, vector<4x128xbf16>
    tpu.vector_store %arg6[%c16_427, %c1536_428], %389 {strides = array<i32>} : memref<36x2048xbf16, #tpu.memory_space<vmem>>, vector<4x128xbf16>,
    %c13_i32_429 = arith.constant 13 : i32
    %391 = arith.addi %325, %c13_i32_429 : i32
    %c0_430 = arith.constant 0 : index
    %392 = arith.index_cast %391 : i32 to index
    %c0_431 = arith.constant 0 : index
    %c1_432 = arith.constant 1 : index
    %393 = vector.load %arg2[%c0_430, %392, %c0_431, %c1_432] : memref<1x18x4x130xbf16, #tpu.memory_space<vmem>>, vector<1x1x4x128xbf16>
    %394 = vector.shape_cast %393 : vector<1x1x4x128xbf16> to vector<4x128xbf16>
    %c16_433 = arith.constant 16 : index
    %c1664_434 = arith.constant 1664 : index
    %395 = vector.load %arg6[%c16_433, %c1664_434] : memref<36x2048xbf16, #tpu.memory_space<vmem>>, vector<4x128xbf16>
    tpu.vector_store %arg6[%c16_433, %c1664_434], %394 {strides = array<i32>} : memref<36x2048xbf16, #tpu.memory_space<vmem>>, vector<4x128xbf16>,
    %c14_i32_435 = arith.constant 14 : i32
    %396 = arith.addi %325, %c14_i32_435 : i32
    %c0_436 = arith.constant 0 : index
    %397 = arith.index_cast %396 : i32 to index
    %c0_437 = arith.constant 0 : index
    %c1_438 = arith.constant 1 : index
    %398 = vector.load %arg2[%c0_436, %397, %c0_437, %c1_438] : memref<1x18x4x130xbf16, #tpu.memory_space<vmem>>, vector<1x1x4x128xbf16>
    %399 = vector.shape_cast %398 : vector<1x1x4x128xbf16> to vector<4x128xbf16>
    %c16_439 = arith.constant 16 : index
    %c1792_440 = arith.constant 1792 : index
    %400 = vector.load %arg6[%c16_439, %c1792_440] : memref<36x2048xbf16, #tpu.memory_space<vmem>>, vector<4x128xbf16>
    tpu.vector_store %arg6[%c16_439, %c1792_440], %399 {strides = array<i32>} : memref<36x2048xbf16, #tpu.memory_space<vmem>>, vector<4x128xbf16>,
    %c15_i32_441 = arith.constant 15 : i32
    %401 = arith.addi %325, %c15_i32_441 : i32
    %c0_442 = arith.constant 0 : index
    %402 = arith.index_cast %401 : i32 to index
    %c0_443 = arith.constant 0 : index
    %c1_444 = arith.constant 1 : index
    %403 = vector.load %arg2[%c0_442, %402, %c0_443, %c1_444] : memref<1x18x4x130xbf16, #tpu.memory_space<vmem>>, vector<1x1x4x128xbf16>
    %404 = vector.shape_cast %403 : vector<1x1x4x128xbf16> to vector<4x128xbf16>
    %c16_445 = arith.constant 16 : index
    %c1920_446 = arith.constant 1920 : index
    %405 = vector.load %arg6[%c16_445, %c1920_446] : memref<36x2048xbf16, #tpu.memory_space<vmem>>, vector<4x128xbf16>
    tpu.vector_store %arg6[%c16_445, %c1920_446], %404 {strides = array<i32>} : memref<36x2048xbf16, #tpu.memory_space<vmem>>, vector<4x128xbf16>,
    %c1_i32_447 = arith.constant 1 : i32
    %406 = arith.addi %0, %c1_i32_447 : i32
    %c0_i32_448 = arith.constant 0 : i32
    %407 = arith.addi %406, %c0_i32_448 : i32
    %c0_449 = arith.constant 0 : index
    %408 = arith.index_cast %407 : i32 to index
    %c0_450 = arith.constant 0 : index
    %c2_451 = arith.constant 2 : index
    %409 = vector.load %arg2[%c0_449, %408, %c0_450, %c2_451] : memref<1x18x4x130xbf16, #tpu.memory_space<vmem>>, vector<1x1x4x128xbf16>
    %410 = vector.shape_cast %409 : vector<1x1x4x128xbf16> to vector<4x128xbf16>
    %c20 = arith.constant 20 : index
    %c0_452 = arith.constant 0 : index
    %411 = vector.load %arg6[%c20, %c0_452] : memref<36x2048xbf16, #tpu.memory_space<vmem>>, vector<4x128xbf16>
    tpu.vector_store %arg6[%c20, %c0_452], %410 {strides = array<i32>} : memref<36x2048xbf16, #tpu.memory_space<vmem>>, vector<4x128xbf16>,
    %c1_i32_453 = arith.constant 1 : i32
    %412 = arith.addi %406, %c1_i32_453 : i32
    %c0_454 = arith.constant 0 : index
    %413 = arith.index_cast %412 : i32 to index
    %c0_455 = arith.constant 0 : index
    %c2_456 = arith.constant 2 : index
    %414 = vector.load %arg2[%c0_454, %413, %c0_455, %c2_456] : memref<1x18x4x130xbf16, #tpu.memory_space<vmem>>, vector<1x1x4x128xbf16>
    %415 = vector.shape_cast %414 : vector<1x1x4x128xbf16> to vector<4x128xbf16>
    %c20_457 = arith.constant 20 : index
    %c128_458 = arith.constant 128 : index
    %416 = vector.load %arg6[%c20_457, %c128_458] : memref<36x2048xbf16, #tpu.memory_space<vmem>>, vector<4x128xbf16>
    tpu.vector_store %arg6[%c20_457, %c128_458], %415 {strides = array<i32>} : memref<36x2048xbf16, #tpu.memory_space<vmem>>, vector<4x128xbf16>,
    %c2_i32_459 = arith.constant 2 : i32
    %417 = arith.addi %406, %c2_i32_459 : i32
    %c0_460 = arith.constant 0 : index
    %418 = arith.index_cast %417 : i32 to index
    %c0_461 = arith.constant 0 : index
    %c2_462 = arith.constant 2 : index
    %419 = vector.load %arg2[%c0_460, %418, %c0_461, %c2_462] : memref<1x18x4x130xbf16, #tpu.memory_space<vmem>>, vector<1x1x4x128xbf16>
    %420 = vector.shape_cast %419 : vector<1x1x4x128xbf16> to vector<4x128xbf16>
    %c20_463 = arith.constant 20 : index
    %c256_464 = arith.constant 256 : index
    %421 = vector.load %arg6[%c20_463, %c256_464] : memref<36x2048xbf16, #tpu.memory_space<vmem>>, vector<4x128xbf16>
    tpu.vector_store %arg6[%c20_463, %c256_464], %420 {strides = array<i32>} : memref<36x2048xbf16, #tpu.memory_space<vmem>>, vector<4x128xbf16>,
    %c3_i32_465 = arith.constant 3 : i32
    %422 = arith.addi %406, %c3_i32_465 : i32
    %c0_466 = arith.constant 0 : index
    %423 = arith.index_cast %422 : i32 to index
    %c0_467 = arith.constant 0 : index
    %c2_468 = arith.constant 2 : index
    %424 = vector.load %arg2[%c0_466, %423, %c0_467, %c2_468] : memref<1x18x4x130xbf16, #tpu.memory_space<vmem>>, vector<1x1x4x128xbf16>
    %425 = vector.shape_cast %424 : vector<1x1x4x128xbf16> to vector<4x128xbf16>
    %c20_469 = arith.constant 20 : index
    %c384_470 = arith.constant 384 : index
    %426 = vector.load %arg6[%c20_469, %c384_470] : memref<36x2048xbf16, #tpu.memory_space<vmem>>, vector<4x128xbf16>
    tpu.vector_store %arg6[%c20_469, %c384_470], %425 {strides = array<i32>} : memref<36x2048xbf16, #tpu.memory_space<vmem>>, vector<4x128xbf16>,
    %c4_i32_471 = arith.constant 4 : i32
    %427 = arith.addi %406, %c4_i32_471 : i32
    %c0_472 = arith.constant 0 : index
    %428 = arith.index_cast %427 : i32 to index
    %c0_473 = arith.constant 0 : index
    %c2_474 = arith.constant 2 : index
    %429 = vector.load %arg2[%c0_472, %428, %c0_473, %c2_474] : memref<1x18x4x130xbf16, #tpu.memory_space<vmem>>, vector<1x1x4x128xbf16>
    %430 = vector.shape_cast %429 : vector<1x1x4x128xbf16> to vector<4x128xbf16>
    %c20_475 = arith.constant 20 : index
    %c512_476 = arith.constant 512 : index
    %431 = vector.load %arg6[%c20_475, %c512_476] : memref<36x2048xbf16, #tpu.memory_space<vmem>>, vector<4x128xbf16>
    tpu.vector_store %arg6[%c20_475, %c512_476], %430 {strides = array<i32>} : memref<36x2048xbf16, #tpu.memory_space<vmem>>, vector<4x128xbf16>,
    %c5_i32_477 = arith.constant 5 : i32
    %432 = arith.addi %406, %c5_i32_477 : i32
    %c0_478 = arith.constant 0 : index
    %433 = arith.index_cast %432 : i32 to index
    %c0_479 = arith.constant 0 : index
    %c2_480 = arith.constant 2 : index
    %434 = vector.load %arg2[%c0_478, %433, %c0_479, %c2_480] : memref<1x18x4x130xbf16, #tpu.memory_space<vmem>>, vector<1x1x4x128xbf16>
    %435 = vector.shape_cast %434 : vector<1x1x4x128xbf16> to vector<4x128xbf16>
    %c20_481 = arith.constant 20 : index
    %c640_482 = arith.constant 640 : index
    %436 = vector.load %arg6[%c20_481, %c640_482] : memref<36x2048xbf16, #tpu.memory_space<vmem>>, vector<4x128xbf16>
    tpu.vector_store %arg6[%c20_481, %c640_482], %435 {strides = array<i32>} : memref<36x2048xbf16, #tpu.memory_space<vmem>>, vector<4x128xbf16>,
    %c6_i32_483 = arith.constant 6 : i32
    %437 = arith.addi %406, %c6_i32_483 : i32
    %c0_484 = arith.constant 0 : index
    %438 = arith.index_cast %437 : i32 to index
    %c0_485 = arith.constant 0 : index
    %c2_486 = arith.constant 2 : index
    %439 = vector.load %arg2[%c0_484, %438, %c0_485, %c2_486] : memref<1x18x4x130xbf16, #tpu.memory_space<vmem>>, vector<1x1x4x128xbf16>
    %440 = vector.shape_cast %439 : vector<1x1x4x128xbf16> to vector<4x128xbf16>
    %c20_487 = arith.constant 20 : index
    %c768_488 = arith.constant 768 : index
    %441 = vector.load %arg6[%c20_487, %c768_488] : memref<36x2048xbf16, #tpu.memory_space<vmem>>, vector<4x128xbf16>
    tpu.vector_store %arg6[%c20_487, %c768_488], %440 {strides = array<i32>} : memref<36x2048xbf16, #tpu.memory_space<vmem>>, vector<4x128xbf16>,
    %c7_i32_489 = arith.constant 7 : i32
    %442 = arith.addi %406, %c7_i32_489 : i32
    %c0_490 = arith.constant 0 : index
    %443 = arith.index_cast %442 : i32 to index
    %c0_491 = arith.constant 0 : index
    %c2_492 = arith.constant 2 : index
    %444 = vector.load %arg2[%c0_490, %443, %c0_491, %c2_492] : memref<1x18x4x130xbf16, #tpu.memory_space<vmem>>, vector<1x1x4x128xbf16>
    %445 = vector.shape_cast %444 : vector<1x1x4x128xbf16> to vector<4x128xbf16>
    %c20_493 = arith.constant 20 : index
    %c896_494 = arith.constant 896 : index
    %446 = vector.load %arg6[%c20_493, %c896_494] : memref<36x2048xbf16, #tpu.memory_space<vmem>>, vector<4x128xbf16>
    tpu.vector_store %arg6[%c20_493, %c896_494], %445 {strides = array<i32>} : memref<36x2048xbf16, #tpu.memory_space<vmem>>, vector<4x128xbf16>,
    %c8_i32_495 = arith.constant 8 : i32
    %447 = arith.addi %406, %c8_i32_495 : i32
    %c0_496 = arith.constant 0 : index
    %448 = arith.index_cast %447 : i32 to index
    %c0_497 = arith.constant 0 : index
    %c2_498 = arith.constant 2 : index
    %449 = vector.load %arg2[%c0_496, %448, %c0_497, %c2_498] : memref<1x18x4x130xbf16, #tpu.memory_space<vmem>>, vector<1x1x4x128xbf16>
    %450 = vector.shape_cast %449 : vector<1x1x4x128xbf16> to vector<4x128xbf16>
    %c20_499 = arith.constant 20 : index
    %c1024_500 = arith.constant 1024 : index
    %451 = vector.load %arg6[%c20_499, %c1024_500] : memref<36x2048xbf16, #tpu.memory_space<vmem>>, vector<4x128xbf16>
    tpu.vector_store %arg6[%c20_499, %c1024_500], %450 {strides = array<i32>} : memref<36x2048xbf16, #tpu.memory_space<vmem>>, vector<4x128xbf16>,
    %c9_i32_501 = arith.constant 9 : i32
    %452 = arith.addi %406, %c9_i32_501 : i32
    %c0_502 = arith.constant 0 : index
    %453 = arith.index_cast %452 : i32 to index
    %c0_503 = arith.constant 0 : index
    %c2_504 = arith.constant 2 : index
    %454 = vector.load %arg2[%c0_502, %453, %c0_503, %c2_504] : memref<1x18x4x130xbf16, #tpu.memory_space<vmem>>, vector<1x1x4x128xbf16>
    %455 = vector.shape_cast %454 : vector<1x1x4x128xbf16> to vector<4x128xbf16>
    %c20_505 = arith.constant 20 : index
    %c1152_506 = arith.constant 1152 : index
    %456 = vector.load %arg6[%c20_505, %c1152_506] : memref<36x2048xbf16, #tpu.memory_space<vmem>>, vector<4x128xbf16>
    tpu.vector_store %arg6[%c20_505, %c1152_506], %455 {strides = array<i32>} : memref<36x2048xbf16, #tpu.memory_space<vmem>>, vector<4x128xbf16>,
    %c10_i32_507 = arith.constant 10 : i32
    %457 = arith.addi %406, %c10_i32_507 : i32
    %c0_508 = arith.constant 0 : index
    %458 = arith.index_cast %457 : i32 to index
    %c0_509 = arith.constant 0 : index
    %c2_510 = arith.constant 2 : index
    %459 = vector.load %arg2[%c0_508, %458, %c0_509, %c2_510] : memref<1x18x4x130xbf16, #tpu.memory_space<vmem>>, vector<1x1x4x128xbf16>
    %460 = vector.shape_cast %459 : vector<1x1x4x128xbf16> to vector<4x128xbf16>
    %c20_511 = arith.constant 20 : index
    %c1280_512 = arith.constant 1280 : index
    %461 = vector.load %arg6[%c20_511, %c1280_512] : memref<36x2048xbf16, #tpu.memory_space<vmem>>, vector<4x128xbf16>
    tpu.vector_store %arg6[%c20_511, %c1280_512], %460 {strides = array<i32>} : memref<36x2048xbf16, #tpu.memory_space<vmem>>, vector<4x128xbf16>,
    %c11_i32_513 = arith.constant 11 : i32
    %462 = arith.addi %406, %c11_i32_513 : i32
    %c0_514 = arith.constant 0 : index
    %463 = arith.index_cast %462 : i32 to index
    %c0_515 = arith.constant 0 : index
    %c2_516 = arith.constant 2 : index
    %464 = vector.load %arg2[%c0_514, %463, %c0_515, %c2_516] : memref<1x18x4x130xbf16, #tpu.memory_space<vmem>>, vector<1x1x4x128xbf16>
    %465 = vector.shape_cast %464 : vector<1x1x4x128xbf16> to vector<4x128xbf16>
    %c20_517 = arith.constant 20 : index
    %c1408_518 = arith.constant 1408 : index
    %466 = vector.load %arg6[%c20_517, %c1408_518] : memref<36x2048xbf16, #tpu.memory_space<vmem>>, vector<4x128xbf16>
    tpu.vector_store %arg6[%c20_517, %c1408_518], %465 {strides = array<i32>} : memref<36x2048xbf16, #tpu.memory_space<vmem>>, vector<4x128xbf16>,
    %c12_i32_519 = arith.constant 12 : i32
    %467 = arith.addi %406, %c12_i32_519 : i32
    %c0_520 = arith.constant 0 : index
    %468 = arith.index_cast %467 : i32 to index
    %c0_521 = arith.constant 0 : index
    %c2_522 = arith.constant 2 : index
    %469 = vector.load %arg2[%c0_520, %468, %c0_521, %c2_522] : memref<1x18x4x130xbf16, #tpu.memory_space<vmem>>, vector<1x1x4x128xbf16>
    %470 = vector.shape_cast %469 : vector<1x1x4x128xbf16> to vector<4x128xbf16>
    %c20_523 = arith.constant 20 : index
    %c1536_524 = arith.constant 1536 : index
    %471 = vector.load %arg6[%c20_523, %c1536_524] : memref<36x2048xbf16, #tpu.memory_space<vmem>>, vector<4x128xbf16>
    tpu.vector_store %arg6[%c20_523, %c1536_524], %470 {strides = array<i32>} : memref<36x2048xbf16, #tpu.memory_space<vmem>>, vector<4x128xbf16>,
    %c13_i32_525 = arith.constant 13 : i32
    %472 = arith.addi %406, %c13_i32_525 : i32
    %c0_526 = arith.constant 0 : index
    %473 = arith.index_cast %472 : i32 to index
    %c0_527 = arith.constant 0 : index
    %c2_528 = arith.constant 2 : index
    %474 = vector.load %arg2[%c0_526, %473, %c0_527, %c2_528] : memref<1x18x4x130xbf16, #tpu.memory_space<vmem>>, vector<1x1x4x128xbf16>
    %475 = vector.shape_cast %474 : vector<1x1x4x128xbf16> to vector<4x128xbf16>
    %c20_529 = arith.constant 20 : index
    %c1664_530 = arith.constant 1664 : index
    %476 = vector.load %arg6[%c20_529, %c1664_530] : memref<36x2048xbf16, #tpu.memory_space<vmem>>, vector<4x128xbf16>
    tpu.vector_store %arg6[%c20_529, %c1664_530], %475 {strides = array<i32>} : memref<36x2048xbf16, #tpu.memory_space<vmem>>, vector<4x128xbf16>,
    %c14_i32_531 = arith.constant 14 : i32
    %477 = arith.addi %406, %c14_i32_531 : i32
    %c0_532 = arith.constant 0 : index
    %478 = arith.index_cast %477 : i32 to index
    %c0_533 = arith.constant 0 : index
    %c2_534 = arith.constant 2 : index
    %479 = vector.load %arg2[%c0_532, %478, %c0_533, %c2_534] : memref<1x18x4x130xbf16, #tpu.memory_space<vmem>>, vector<1x1x4x128xbf16>
    %480 = vector.shape_cast %479 : vector<1x1x4x128xbf16> to vector<4x128xbf16>
    %c20_535 = arith.constant 20 : index
    %c1792_536 = arith.constant 1792 : index
    %481 = vector.load %arg6[%c20_535, %c1792_536] : memref<36x2048xbf16, #tpu.memory_space<vmem>>, vector<4x128xbf16>
    tpu.vector_store %arg6[%c20_535, %c1792_536], %480 {strides = array<i32>} : memref<36x2048xbf16, #tpu.memory_space<vmem>>, vector<4x128xbf16>,
    %c15_i32_537 = arith.constant 15 : i32
    %482 = arith.addi %406, %c15_i32_537 : i32
    %c0_538 = arith.constant 0 : index
    %483 = arith.index_cast %482 : i32 to index
    %c0_539 = arith.constant 0 : index
    %c2_540 = arith.constant 2 : index
    %484 = vector.load %arg2[%c0_538, %483, %c0_539, %c2_540] : memref<1x18x4x130xbf16, #tpu.memory_space<vmem>>, vector<1x1x4x128xbf16>
    %485 = vector.shape_cast %484 : vector<1x1x4x128xbf16> to vector<4x128xbf16>
    %c20_541 = arith.constant 20 : index
    %c1920_542 = arith.constant 1920 : index
    %486 = vector.load %arg6[%c20_541, %c1920_542] : memref<36x2048xbf16, #tpu.memory_space<vmem>>, vector<4x128xbf16>
    tpu.vector_store %arg6[%c20_541, %c1920_542], %485 {strides = array<i32>} : memref<36x2048xbf16, #tpu.memory_space<vmem>>, vector<4x128xbf16>,
    %c2_i32_543 = arith.constant 2 : i32
    %487 = arith.addi %0, %c2_i32_543 : i32
    %c0_i32_544 = arith.constant 0 : i32
    %488 = arith.addi %487, %c0_i32_544 : i32
    %c0_545 = arith.constant 0 : index
    %489 = arith.index_cast %488 : i32 to index
    %c0_546 = arith.constant 0 : index
    %c0_547 = arith.constant 0 : index
    %490 = vector.load %arg2[%c0_545, %489, %c0_546, %c0_547] : memref<1x18x4x130xbf16, #tpu.memory_space<vmem>>, vector<1x1x4x128xbf16>
    %491 = vector.shape_cast %490 : vector<1x1x4x128xbf16> to vector<4x128xbf16>
    %c24 = arith.constant 24 : index
    %c0_548 = arith.constant 0 : index
    %492 = vector.load %arg6[%c24, %c0_548] : memref<36x2048xbf16, #tpu.memory_space<vmem>>, vector<4x128xbf16>
    tpu.vector_store %arg6[%c24, %c0_548], %491 {strides = array<i32>} : memref<36x2048xbf16, #tpu.memory_space<vmem>>, vector<4x128xbf16>,
    %c1_i32_549 = arith.constant 1 : i32
    %493 = arith.addi %487, %c1_i32_549 : i32
    %c0_550 = arith.constant 0 : index
    %494 = arith.index_cast %493 : i32 to index
    %c0_551 = arith.constant 0 : index
    %c0_552 = arith.constant 0 : index
    %495 = vector.load %arg2[%c0_550, %494, %c0_551, %c0_552] : memref<1x18x4x130xbf16, #tpu.memory_space<vmem>>, vector<1x1x4x128xbf16>
    %496 = vector.shape_cast %495 : vector<1x1x4x128xbf16> to vector<4x128xbf16>
    %c24_553 = arith.constant 24 : index
    %c128_554 = arith.constant 128 : index
    %497 = vector.load %arg6[%c24_553, %c128_554] : memref<36x2048xbf16, #tpu.memory_space<vmem>>, vector<4x128xbf16>
    tpu.vector_store %arg6[%c24_553, %c128_554], %496 {strides = array<i32>} : memref<36x2048xbf16, #tpu.memory_space<vmem>>, vector<4x128xbf16>,
    %c2_i32_555 = arith.constant 2 : i32
    %498 = arith.addi %487, %c2_i32_555 : i32
    %c0_556 = arith.constant 0 : index
    %499 = arith.index_cast %498 : i32 to index
    %c0_557 = arith.constant 0 : index
    %c0_558 = arith.constant 0 : index
    %500 = vector.load %arg2[%c0_556, %499, %c0_557, %c0_558] : memref<1x18x4x130xbf16, #tpu.memory_space<vmem>>, vector<1x1x4x128xbf16>
    %501 = vector.shape_cast %500 : vector<1x1x4x128xbf16> to vector<4x128xbf16>
    %c24_559 = arith.constant 24 : index
    %c256_560 = arith.constant 256 : index
    %502 = vector.load %arg6[%c24_559, %c256_560] : memref<36x2048xbf16, #tpu.memory_space<vmem>>, vector<4x128xbf16>
    tpu.vector_store %arg6[%c24_559, %c256_560], %501 {strides = array<i32>} : memref<36x2048xbf16, #tpu.memory_space<vmem>>, vector<4x128xbf16>,
    %c3_i32_561 = arith.constant 3 : i32
    %503 = arith.addi %487, %c3_i32_561 : i32
    %c0_562 = arith.constant 0 : index
    %504 = arith.index_cast %503 : i32 to index
    %c0_563 = arith.constant 0 : index
    %c0_564 = arith.constant 0 : index
    %505 = vector.load %arg2[%c0_562, %504, %c0_563, %c0_564] : memref<1x18x4x130xbf16, #tpu.memory_space<vmem>>, vector<1x1x4x128xbf16>
    %506 = vector.shape_cast %505 : vector<1x1x4x128xbf16> to vector<4x128xbf16>
    %c24_565 = arith.constant 24 : index
    %c384_566 = arith.constant 384 : index
    %507 = vector.load %arg6[%c24_565, %c384_566] : memref<36x2048xbf16, #tpu.memory_space<vmem>>, vector<4x128xbf16>
    tpu.vector_store %arg6[%c24_565, %c384_566], %506 {strides = array<i32>} : memref<36x2048xbf16, #tpu.memory_space<vmem>>, vector<4x128xbf16>,
    %c4_i32_567 = arith.constant 4 : i32
    %508 = arith.addi %487, %c4_i32_567 : i32
    %c0_568 = arith.constant 0 : index
    %509 = arith.index_cast %508 : i32 to index
    %c0_569 = arith.constant 0 : index
    %c0_570 = arith.constant 0 : index
    %510 = vector.load %arg2[%c0_568, %509, %c0_569, %c0_570] : memref<1x18x4x130xbf16, #tpu.memory_space<vmem>>, vector<1x1x4x128xbf16>
    %511 = vector.shape_cast %510 : vector<1x1x4x128xbf16> to vector<4x128xbf16>
    %c24_571 = arith.constant 24 : index
    %c512_572 = arith.constant 512 : index
    %512 = vector.load %arg6[%c24_571, %c512_572] : memref<36x2048xbf16, #tpu.memory_space<vmem>>, vector<4x128xbf16>
    tpu.vector_store %arg6[%c24_571, %c512_572], %511 {strides = array<i32>} : memref<36x2048xbf16, #tpu.memory_space<vmem>>, vector<4x128xbf16>,
    %c5_i32_573 = arith.constant 5 : i32
    %513 = arith.addi %487, %c5_i32_573 : i32
    %c0_574 = arith.constant 0 : index
    %514 = arith.index_cast %513 : i32 to index
    %c0_575 = arith.constant 0 : index
    %c0_576 = arith.constant 0 : index
    %515 = vector.load %arg2[%c0_574, %514, %c0_575, %c0_576] : memref<1x18x4x130xbf16, #tpu.memory_space<vmem>>, vector<1x1x4x128xbf16>
    %516 = vector.shape_cast %515 : vector<1x1x4x128xbf16> to vector<4x128xbf16>
    %c24_577 = arith.constant 24 : index
    %c640_578 = arith.constant 640 : index
    %517 = vector.load %arg6[%c24_577, %c640_578] : memref<36x2048xbf16, #tpu.memory_space<vmem>>, vector<4x128xbf16>
    tpu.vector_store %arg6[%c24_577, %c640_578], %516 {strides = array<i32>} : memref<36x2048xbf16, #tpu.memory_space<vmem>>, vector<4x128xbf16>,
    %c6_i32_579 = arith.constant 6 : i32
    %518 = arith.addi %487, %c6_i32_579 : i32
    %c0_580 = arith.constant 0 : index
    %519 = arith.index_cast %518 : i32 to index
    %c0_581 = arith.constant 0 : index
    %c0_582 = arith.constant 0 : index
    %520 = vector.load %arg2[%c0_580, %519, %c0_581, %c0_582] : memref<1x18x4x130xbf16, #tpu.memory_space<vmem>>, vector<1x1x4x128xbf16>
    %521 = vector.shape_cast %520 : vector<1x1x4x128xbf16> to vector<4x128xbf16>
    %c24_583 = arith.constant 24 : index
    %c768_584 = arith.constant 768 : index
    %522 = vector.load %arg6[%c24_583, %c768_584] : memref<36x2048xbf16, #tpu.memory_space<vmem>>, vector<4x128xbf16>
    tpu.vector_store %arg6[%c24_583, %c768_584], %521 {strides = array<i32>} : memref<36x2048xbf16, #tpu.memory_space<vmem>>, vector<4x128xbf16>,
    %c7_i32_585 = arith.constant 7 : i32
    %523 = arith.addi %487, %c7_i32_585 : i32
    %c0_586 = arith.constant 0 : index
    %524 = arith.index_cast %523 : i32 to index
    %c0_587 = arith.constant 0 : index
    %c0_588 = arith.constant 0 : index
    %525 = vector.load %arg2[%c0_586, %524, %c0_587, %c0_588] : memref<1x18x4x130xbf16, #tpu.memory_space<vmem>>, vector<1x1x4x128xbf16>
    %526 = vector.shape_cast %525 : vector<1x1x4x128xbf16> to vector<4x128xbf16>
    %c24_589 = arith.constant 24 : index
    %c896_590 = arith.constant 896 : index
    %527 = vector.load %arg6[%c24_589, %c896_590] : memref<36x2048xbf16, #tpu.memory_space<vmem>>, vector<4x128xbf16>
    tpu.vector_store %arg6[%c24_589, %c896_590], %526 {strides = array<i32>} : memref<36x2048xbf16, #tpu.memory_space<vmem>>, vector<4x128xbf16>,
    %c8_i32_591 = arith.constant 8 : i32
    %528 = arith.addi %487, %c8_i32_591 : i32
    %c0_592 = arith.constant 0 : index
    %529 = arith.index_cast %528 : i32 to index
    %c0_593 = arith.constant 0 : index
    %c0_594 = arith.constant 0 : index
    %530 = vector.load %arg2[%c0_592, %529, %c0_593, %c0_594] : memref<1x18x4x130xbf16, #tpu.memory_space<vmem>>, vector<1x1x4x128xbf16>
    %531 = vector.shape_cast %530 : vector<1x1x4x128xbf16> to vector<4x128xbf16>
    %c24_595 = arith.constant 24 : index
    %c1024_596 = arith.constant 1024 : index
    %532 = vector.load %arg6[%c24_595, %c1024_596] : memref<36x2048xbf16, #tpu.memory_space<vmem>>, vector<4x128xbf16>
    tpu.vector_store %arg6[%c24_595, %c1024_596], %531 {strides = array<i32>} : memref<36x2048xbf16, #tpu.memory_space<vmem>>, vector<4x128xbf16>,
    %c9_i32_597 = arith.constant 9 : i32
    %533 = arith.addi %487, %c9_i32_597 : i32
    %c0_598 = arith.constant 0 : index
    %534 = arith.index_cast %533 : i32 to index
    %c0_599 = arith.constant 0 : index
    %c0_600 = arith.constant 0 : index
    %535 = vector.load %arg2[%c0_598, %534, %c0_599, %c0_600] : memref<1x18x4x130xbf16, #tpu.memory_space<vmem>>, vector<1x1x4x128xbf16>
    %536 = vector.shape_cast %535 : vector<1x1x4x128xbf16> to vector<4x128xbf16>
    %c24_601 = arith.constant 24 : index
    %c1152_602 = arith.constant 1152 : index
    %537 = vector.load %arg6[%c24_601, %c1152_602] : memref<36x2048xbf16, #tpu.memory_space<vmem>>, vector<4x128xbf16>
    tpu.vector_store %arg6[%c24_601, %c1152_602], %536 {strides = array<i32>} : memref<36x2048xbf16, #tpu.memory_space<vmem>>, vector<4x128xbf16>,
    %c10_i32_603 = arith.constant 10 : i32
    %538 = arith.addi %487, %c10_i32_603 : i32
    %c0_604 = arith.constant 0 : index
    %539 = arith.index_cast %538 : i32 to index
    %c0_605 = arith.constant 0 : index
    %c0_606 = arith.constant 0 : index
    %540 = vector.load %arg2[%c0_604, %539, %c0_605, %c0_606] : memref<1x18x4x130xbf16, #tpu.memory_space<vmem>>, vector<1x1x4x128xbf16>
    %541 = vector.shape_cast %540 : vector<1x1x4x128xbf16> to vector<4x128xbf16>
    %c24_607 = arith.constant 24 : index
    %c1280_608 = arith.constant 1280 : index
    %542 = vector.load %arg6[%c24_607, %c1280_608] : memref<36x2048xbf16, #tpu.memory_space<vmem>>, vector<4x128xbf16>
    tpu.vector_store %arg6[%c24_607, %c1280_608], %541 {strides = array<i32>} : memref<36x2048xbf16, #tpu.memory_space<vmem>>, vector<4x128xbf16>,
    %c11_i32_609 = arith.constant 11 : i32
    %543 = arith.addi %487, %c11_i32_609 : i32
    %c0_610 = arith.constant 0 : index
    %544 = arith.index_cast %543 : i32 to index
    %c0_611 = arith.constant 0 : index
    %c0_612 = arith.constant 0 : index
    %545 = vector.load %arg2[%c0_610, %544, %c0_611, %c0_612] : memref<1x18x4x130xbf16, #tpu.memory_space<vmem>>, vector<1x1x4x128xbf16>
    %546 = vector.shape_cast %545 : vector<1x1x4x128xbf16> to vector<4x128xbf16>
    %c24_613 = arith.constant 24 : index
    %c1408_614 = arith.constant 1408 : index
    %547 = vector.load %arg6[%c24_613, %c1408_614] : memref<36x2048xbf16, #tpu.memory_space<vmem>>, vector<4x128xbf16>
    tpu.vector_store %arg6[%c24_613, %c1408_614], %546 {strides = array<i32>} : memref<36x2048xbf16, #tpu.memory_space<vmem>>, vector<4x128xbf16>,
    %c12_i32_615 = arith.constant 12 : i32
    %548 = arith.addi %487, %c12_i32_615 : i32
    %c0_616 = arith.constant 0 : index
    %549 = arith.index_cast %548 : i32 to index
    %c0_617 = arith.constant 0 : index
    %c0_618 = arith.constant 0 : index
    %550 = vector.load %arg2[%c0_616, %549, %c0_617, %c0_618] : memref<1x18x4x130xbf16, #tpu.memory_space<vmem>>, vector<1x1x4x128xbf16>
    %551 = vector.shape_cast %550 : vector<1x1x4x128xbf16> to vector<4x128xbf16>
    %c24_619 = arith.constant 24 : index
    %c1536_620 = arith.constant 1536 : index
    %552 = vector.load %arg6[%c24_619, %c1536_620] : memref<36x2048xbf16, #tpu.memory_space<vmem>>, vector<4x128xbf16>
    tpu.vector_store %arg6[%c24_619, %c1536_620], %551 {strides = array<i32>} : memref<36x2048xbf16, #tpu.memory_space<vmem>>, vector<4x128xbf16>,
    %c13_i32_621 = arith.constant 13 : i32
    %553 = arith.addi %487, %c13_i32_621 : i32
    %c0_622 = arith.constant 0 : index
    %554 = arith.index_cast %553 : i32 to index
    %c0_623 = arith.constant 0 : index
    %c0_624 = arith.constant 0 : index
    %555 = vector.load %arg2[%c0_622, %554, %c0_623, %c0_624] : memref<1x18x4x130xbf16, #tpu.memory_space<vmem>>, vector<1x1x4x128xbf16>
    %556 = vector.shape_cast %555 : vector<1x1x4x128xbf16> to vector<4x128xbf16>
    %c24_625 = arith.constant 24 : index
    %c1664_626 = arith.constant 1664 : index
    %557 = vector.load %arg6[%c24_625, %c1664_626] : memref<36x2048xbf16, #tpu.memory_space<vmem>>, vector<4x128xbf16>
    tpu.vector_store %arg6[%c24_625, %c1664_626], %556 {strides = array<i32>} : memref<36x2048xbf16, #tpu.memory_space<vmem>>, vector<4x128xbf16>,
    %c14_i32_627 = arith.constant 14 : i32
    %558 = arith.addi %487, %c14_i32_627 : i32
    %c0_628 = arith.constant 0 : index
    %559 = arith.index_cast %558 : i32 to index
    %c0_629 = arith.constant 0 : index
    %c0_630 = arith.constant 0 : index
    %560 = vector.load %arg2[%c0_628, %559, %c0_629, %c0_630] : memref<1x18x4x130xbf16, #tpu.memory_space<vmem>>, vector<1x1x4x128xbf16>
    %561 = vector.shape_cast %560 : vector<1x1x4x128xbf16> to vector<4x128xbf16>
    %c24_631 = arith.constant 24 : index
    %c1792_632 = arith.constant 1792 : index
    %562 = vector.load %arg6[%c24_631, %c1792_632] : memref<36x2048xbf16, #tpu.memory_space<vmem>>, vector<4x128xbf16>
    tpu.vector_store %arg6[%c24_631, %c1792_632], %561 {strides = array<i32>} : memref<36x2048xbf16, #tpu.memory_space<vmem>>, vector<4x128xbf16>,
    %c15_i32_633 = arith.constant 15 : i32
    %563 = arith.addi %487, %c15_i32_633 : i32
    %c0_634 = arith.constant 0 : index
    %564 = arith.index_cast %563 : i32 to index
    %c0_635 = arith.constant 0 : index
    %c0_636 = arith.constant 0 : index
    %565 = vector.load %arg2[%c0_634, %564, %c0_635, %c0_636] : memref<1x18x4x130xbf16, #tpu.memory_space<vmem>>, vector<1x1x4x128xbf16>
    %566 = vector.shape_cast %565 : vector<1x1x4x128xbf16> to vector<4x128xbf16>
    %c24_637 = arith.constant 24 : index
    %c1920_638 = arith.constant 1920 : index
    %567 = vector.load %arg6[%c24_637, %c1920_638] : memref<36x2048xbf16, #tpu.memory_space<vmem>>, vector<4x128xbf16>
    tpu.vector_store %arg6[%c24_637, %c1920_638], %566 {strides = array<i32>} : memref<36x2048xbf16, #tpu.memory_space<vmem>>, vector<4x128xbf16>,
    %c2_i32_639 = arith.constant 2 : i32
    %568 = arith.addi %0, %c2_i32_639 : i32
    %c0_i32_640 = arith.constant 0 : i32
    %569 = arith.addi %568, %c0_i32_640 : i32
    %c0_641 = arith.constant 0 : index
    %570 = arith.index_cast %569 : i32 to index
    %c0_642 = arith.constant 0 : index
    %c1_643 = arith.constant 1 : index
    %571 = vector.load %arg2[%c0_641, %570, %c0_642, %c1_643] : memref<1x18x4x130xbf16, #tpu.memory_space<vmem>>, vector<1x1x4x128xbf16>
    %572 = vector.shape_cast %571 : vector<1x1x4x128xbf16> to vector<4x128xbf16>
    %c28 = arith.constant 28 : index
    %c0_644 = arith.constant 0 : index
    %573 = vector.load %arg6[%c28, %c0_644] : memref<36x2048xbf16, #tpu.memory_space<vmem>>, vector<4x128xbf16>
    tpu.vector_store %arg6[%c28, %c0_644], %572 {strides = array<i32>} : memref<36x2048xbf16, #tpu.memory_space<vmem>>, vector<4x128xbf16>,
    %c1_i32_645 = arith.constant 1 : i32
    %574 = arith.addi %568, %c1_i32_645 : i32
    %c0_646 = arith.constant 0 : index
    %575 = arith.index_cast %574 : i32 to index
    %c0_647 = arith.constant 0 : index
    %c1_648 = arith.constant 1 : index
    %576 = vector.load %arg2[%c0_646, %575, %c0_647, %c1_648] : memref<1x18x4x130xbf16, #tpu.memory_space<vmem>>, vector<1x1x4x128xbf16>
    %577 = vector.shape_cast %576 : vector<1x1x4x128xbf16> to vector<4x128xbf16>
    %c28_649 = arith.constant 28 : index
    %c128_650 = arith.constant 128 : index
    %578 = vector.load %arg6[%c28_649, %c128_650] : memref<36x2048xbf16, #tpu.memory_space<vmem>>, vector<4x128xbf16>
    tpu.vector_store %arg6[%c28_649, %c128_650], %577 {strides = array<i32>} : memref<36x2048xbf16, #tpu.memory_space<vmem>>, vector<4x128xbf16>,
    %c2_i32_651 = arith.constant 2 : i32
    %579 = arith.addi %568, %c2_i32_651 : i32
    %c0_652 = arith.constant 0 : index
    %580 = arith.index_cast %579 : i32 to index
    %c0_653 = arith.constant 0 : index
    %c1_654 = arith.constant 1 : index
    %581 = vector.load %arg2[%c0_652, %580, %c0_653, %c1_654] : memref<1x18x4x130xbf16, #tpu.memory_space<vmem>>, vector<1x1x4x128xbf16>
    %582 = vector.shape_cast %581 : vector<1x1x4x128xbf16> to vector<4x128xbf16>
    %c28_655 = arith.constant 28 : index
    %c256_656 = arith.constant 256 : index
    %583 = vector.load %arg6[%c28_655, %c256_656] : memref<36x2048xbf16, #tpu.memory_space<vmem>>, vector<4x128xbf16>
    tpu.vector_store %arg6[%c28_655, %c256_656], %582 {strides = array<i32>} : memref<36x2048xbf16, #tpu.memory_space<vmem>>, vector<4x128xbf16>,
    %c3_i32_657 = arith.constant 3 : i32
    %584 = arith.addi %568, %c3_i32_657 : i32
    %c0_658 = arith.constant 0 : index
    %585 = arith.index_cast %584 : i32 to index
    %c0_659 = arith.constant 0 : index
    %c1_660 = arith.constant 1 : index
    %586 = vector.load %arg2[%c0_658, %585, %c0_659, %c1_660] : memref<1x18x4x130xbf16, #tpu.memory_space<vmem>>, vector<1x1x4x128xbf16>
    %587 = vector.shape_cast %586 : vector<1x1x4x128xbf16> to vector<4x128xbf16>
    %c28_661 = arith.constant 28 : index
    %c384_662 = arith.constant 384 : index
    %588 = vector.load %arg6[%c28_661, %c384_662] : memref<36x2048xbf16, #tpu.memory_space<vmem>>, vector<4x128xbf16>
    tpu.vector_store %arg6[%c28_661, %c384_662], %587 {strides = array<i32>} : memref<36x2048xbf16, #tpu.memory_space<vmem>>, vector<4x128xbf16>,
    %c4_i32_663 = arith.constant 4 : i32
    %589 = arith.addi %568, %c4_i32_663 : i32
    %c0_664 = arith.constant 0 : index
    %590 = arith.index_cast %589 : i32 to index
    %c0_665 = arith.constant 0 : index
    %c1_666 = arith.constant 1 : index
    %591 = vector.load %arg2[%c0_664, %590, %c0_665, %c1_666] : memref<1x18x4x130xbf16, #tpu.memory_space<vmem>>, vector<1x1x4x128xbf16>
    %592 = vector.shape_cast %591 : vector<1x1x4x128xbf16> to vector<4x128xbf16>
    %c28_667 = arith.constant 28 : index
    %c512_668 = arith.constant 512 : index
    %593 = vector.load %arg6[%c28_667, %c512_668] : memref<36x2048xbf16, #tpu.memory_space<vmem>>, vector<4x128xbf16>
    tpu.vector_store %arg6[%c28_667, %c512_668], %592 {strides = array<i32>} : memref<36x2048xbf16, #tpu.memory_space<vmem>>, vector<4x128xbf16>,
    %c5_i32_669 = arith.constant 5 : i32
    %594 = arith.addi %568, %c5_i32_669 : i32
    %c0_670 = arith.constant 0 : index
    %595 = arith.index_cast %594 : i32 to index
    %c0_671 = arith.constant 0 : index
    %c1_672 = arith.constant 1 : index
    %596 = vector.load %arg2[%c0_670, %595, %c0_671, %c1_672] : memref<1x18x4x130xbf16, #tpu.memory_space<vmem>>, vector<1x1x4x128xbf16>
    %597 = vector.shape_cast %596 : vector<1x1x4x128xbf16> to vector<4x128xbf16>
    %c28_673 = arith.constant 28 : index
    %c640_674 = arith.constant 640 : index
    %598 = vector.load %arg6[%c28_673, %c640_674] : memref<36x2048xbf16, #tpu.memory_space<vmem>>, vector<4x128xbf16>
    tpu.vector_store %arg6[%c28_673, %c640_674], %597 {strides = array<i32>} : memref<36x2048xbf16, #tpu.memory_space<vmem>>, vector<4x128xbf16>,
    %c6_i32_675 = arith.constant 6 : i32
    %599 = arith.addi %568, %c6_i32_675 : i32
    %c0_676 = arith.constant 0 : index
    %600 = arith.index_cast %599 : i32 to index
    %c0_677 = arith.constant 0 : index
    %c1_678 = arith.constant 1 : index
    %601 = vector.load %arg2[%c0_676, %600, %c0_677, %c1_678] : memref<1x18x4x130xbf16, #tpu.memory_space<vmem>>, vector<1x1x4x128xbf16>
    %602 = vector.shape_cast %601 : vector<1x1x4x128xbf16> to vector<4x128xbf16>
    %c28_679 = arith.constant 28 : index
    %c768_680 = arith.constant 768 : index
    %603 = vector.load %arg6[%c28_679, %c768_680] : memref<36x2048xbf16, #tpu.memory_space<vmem>>, vector<4x128xbf16>
    tpu.vector_store %arg6[%c28_679, %c768_680], %602 {strides = array<i32>} : memref<36x2048xbf16, #tpu.memory_space<vmem>>, vector<4x128xbf16>,
    %c7_i32_681 = arith.constant 7 : i32
    %604 = arith.addi %568, %c7_i32_681 : i32
    %c0_682 = arith.constant 0 : index
    %605 = arith.index_cast %604 : i32 to index
    %c0_683 = arith.constant 0 : index
    %c1_684 = arith.constant 1 : index
    %606 = vector.load %arg2[%c0_682, %605, %c0_683, %c1_684] : memref<1x18x4x130xbf16, #tpu.memory_space<vmem>>, vector<1x1x4x128xbf16>
    %607 = vector.shape_cast %606 : vector<1x1x4x128xbf16> to vector<4x128xbf16>
    %c28_685 = arith.constant 28 : index
    %c896_686 = arith.constant 896 : index
    %608 = vector.load %arg6[%c28_685, %c896_686] : memref<36x2048xbf16, #tpu.memory_space<vmem>>, vector<4x128xbf16>
    tpu.vector_store %arg6[%c28_685, %c896_686], %607 {strides = array<i32>} : memref<36x2048xbf16, #tpu.memory_space<vmem>>, vector<4x128xbf16>,
    %c8_i32_687 = arith.constant 8 : i32
    %609 = arith.addi %568, %c8_i32_687 : i32
    %c0_688 = arith.constant 0 : index
    %610 = arith.index_cast %609 : i32 to index
    %c0_689 = arith.constant 0 : index
    %c1_690 = arith.constant 1 : index
    %611 = vector.load %arg2[%c0_688, %610, %c0_689, %c1_690] : memref<1x18x4x130xbf16, #tpu.memory_space<vmem>>, vector<1x1x4x128xbf16>
    %612 = vector.shape_cast %611 : vector<1x1x4x128xbf16> to vector<4x128xbf16>
    %c28_691 = arith.constant 28 : index
    %c1024_692 = arith.constant 1024 : index
    %613 = vector.load %arg6[%c28_691, %c1024_692] : memref<36x2048xbf16, #tpu.memory_space<vmem>>, vector<4x128xbf16>
    tpu.vector_store %arg6[%c28_691, %c1024_692], %612 {strides = array<i32>} : memref<36x2048xbf16, #tpu.memory_space<vmem>>, vector<4x128xbf16>,
    %c9_i32_693 = arith.constant 9 : i32
    %614 = arith.addi %568, %c9_i32_693 : i32
    %c0_694 = arith.constant 0 : index
    %615 = arith.index_cast %614 : i32 to index
    %c0_695 = arith.constant 0 : index
    %c1_696 = arith.constant 1 : index
    %616 = vector.load %arg2[%c0_694, %615, %c0_695, %c1_696] : memref<1x18x4x130xbf16, #tpu.memory_space<vmem>>, vector<1x1x4x128xbf16>
    %617 = vector.shape_cast %616 : vector<1x1x4x128xbf16> to vector<4x128xbf16>
    %c28_697 = arith.constant 28 : index
    %c1152_698 = arith.constant 1152 : index
    %618 = vector.load %arg6[%c28_697, %c1152_698] : memref<36x2048xbf16, #tpu.memory_space<vmem>>, vector<4x128xbf16>
    tpu.vector_store %arg6[%c28_697, %c1152_698], %617 {strides = array<i32>} : memref<36x2048xbf16, #tpu.memory_space<vmem>>, vector<4x128xbf16>,
    %c10_i32_699 = arith.constant 10 : i32
    %619 = arith.addi %568, %c10_i32_699 : i32
    %c0_700 = arith.constant 0 : index
    %620 = arith.index_cast %619 : i32 to index
    %c0_701 = arith.constant 0 : index
    %c1_702 = arith.constant 1 : index
    %621 = vector.load %arg2[%c0_700, %620, %c0_701, %c1_702] : memref<1x18x4x130xbf16, #tpu.memory_space<vmem>>, vector<1x1x4x128xbf16>
    %622 = vector.shape_cast %621 : vector<1x1x4x128xbf16> to vector<4x128xbf16>
    %c28_703 = arith.constant 28 : index
    %c1280_704 = arith.constant 1280 : index
    %623 = vector.load %arg6[%c28_703, %c1280_704] : memref<36x2048xbf16, #tpu.memory_space<vmem>>, vector<4x128xbf16>
    tpu.vector_store %arg6[%c28_703, %c1280_704], %622 {strides = array<i32>} : memref<36x2048xbf16, #tpu.memory_space<vmem>>, vector<4x128xbf16>,
    %c11_i32_705 = arith.constant 11 : i32
    %624 = arith.addi %568, %c11_i32_705 : i32
    %c0_706 = arith.constant 0 : index
    %625 = arith.index_cast %624 : i32 to index
    %c0_707 = arith.constant 0 : index
    %c1_708 = arith.constant 1 : index
    %626 = vector.load %arg2[%c0_706, %625, %c0_707, %c1_708] : memref<1x18x4x130xbf16, #tpu.memory_space<vmem>>, vector<1x1x4x128xbf16>
    %627 = vector.shape_cast %626 : vector<1x1x4x128xbf16> to vector<4x128xbf16>
    %c28_709 = arith.constant 28 : index
    %c1408_710 = arith.constant 1408 : index
    %628 = vector.load %arg6[%c28_709, %c1408_710] : memref<36x2048xbf16, #tpu.memory_space<vmem>>, vector<4x128xbf16>
    tpu.vector_store %arg6[%c28_709, %c1408_710], %627 {strides = array<i32>} : memref<36x2048xbf16, #tpu.memory_space<vmem>>, vector<4x128xbf16>,
    %c12_i32_711 = arith.constant 12 : i32
    %629 = arith.addi %568, %c12_i32_711 : i32
    %c0_712 = arith.constant 0 : index
    %630 = arith.index_cast %629 : i32 to index
    %c0_713 = arith.constant 0 : index
    %c1_714 = arith.constant 1 : index
    %631 = vector.load %arg2[%c0_712, %630, %c0_713, %c1_714] : memref<1x18x4x130xbf16, #tpu.memory_space<vmem>>, vector<1x1x4x128xbf16>
    %632 = vector.shape_cast %631 : vector<1x1x4x128xbf16> to vector<4x128xbf16>
    %c28_715 = arith.constant 28 : index
    %c1536_716 = arith.constant 1536 : index
    %633 = vector.load %arg6[%c28_715, %c1536_716] : memref<36x2048xbf16, #tpu.memory_space<vmem>>, vector<4x128xbf16>
    tpu.vector_store %arg6[%c28_715, %c1536_716], %632 {strides = array<i32>} : memref<36x2048xbf16, #tpu.memory_space<vmem>>, vector<4x128xbf16>,
    %c13_i32_717 = arith.constant 13 : i32
    %634 = arith.addi %568, %c13_i32_717 : i32
    %c0_718 = arith.constant 0 : index
    %635 = arith.index_cast %634 : i32 to index
    %c0_719 = arith.constant 0 : index
    %c1_720 = arith.constant 1 : index
    %636 = vector.load %arg2[%c0_718, %635, %c0_719, %c1_720] : memref<1x18x4x130xbf16, #tpu.memory_space<vmem>>, vector<1x1x4x128xbf16>
    %637 = vector.shape_cast %636 : vector<1x1x4x128xbf16> to vector<4x128xbf16>
    %c28_721 = arith.constant 28 : index
    %c1664_722 = arith.constant 1664 : index
    %638 = vector.load %arg6[%c28_721, %c1664_722] : memref<36x2048xbf16, #tpu.memory_space<vmem>>, vector<4x128xbf16>
    tpu.vector_store %arg6[%c28_721, %c1664_722], %637 {strides = array<i32>} : memref<36x2048xbf16, #tpu.memory_space<vmem>>, vector<4x128xbf16>,
    %c14_i32_723 = arith.constant 14 : i32
    %639 = arith.addi %568, %c14_i32_723 : i32
    %c0_724 = arith.constant 0 : index
    %640 = arith.index_cast %639 : i32 to index
    %c0_725 = arith.constant 0 : index
    %c1_726 = arith.constant 1 : index
    %641 = vector.load %arg2[%c0_724, %640, %c0_725, %c1_726] : memref<1x18x4x130xbf16, #tpu.memory_space<vmem>>, vector<1x1x4x128xbf16>
    %642 = vector.shape_cast %641 : vector<1x1x4x128xbf16> to vector<4x128xbf16>
    %c28_727 = arith.constant 28 : index
    %c1792_728 = arith.constant 1792 : index
    %643 = vector.load %arg6[%c28_727, %c1792_728] : memref<36x2048xbf16, #tpu.memory_space<vmem>>, vector<4x128xbf16>
    tpu.vector_store %arg6[%c28_727, %c1792_728], %642 {strides = array<i32>} : memref<36x2048xbf16, #tpu.memory_space<vmem>>, vector<4x128xbf16>,
    %c15_i32_729 = arith.constant 15 : i32
    %644 = arith.addi %568, %c15_i32_729 : i32
    %c0_730 = arith.constant 0 : index
    %645 = arith.index_cast %644 : i32 to index
    %c0_731 = arith.constant 0 : index
    %c1_732 = arith.constant 1 : index
    %646 = vector.load %arg2[%c0_730, %645, %c0_731, %c1_732] : memref<1x18x4x130xbf16, #tpu.memory_space<vmem>>, vector<1x1x4x128xbf16>
    %647 = vector.shape_cast %646 : vector<1x1x4x128xbf16> to vector<4x128xbf16>
    %c28_733 = arith.constant 28 : index
    %c1920_734 = arith.constant 1920 : index
    %648 = vector.load %arg6[%c28_733, %c1920_734] : memref<36x2048xbf16, #tpu.memory_space<vmem>>, vector<4x128xbf16>
    tpu.vector_store %arg6[%c28_733, %c1920_734], %647 {strides = array<i32>} : memref<36x2048xbf16, #tpu.memory_space<vmem>>, vector<4x128xbf16>,
    %c2_i32_735 = arith.constant 2 : i32
    %649 = arith.addi %0, %c2_i32_735 : i32
    %c0_i32_736 = arith.constant 0 : i32
    %650 = arith.addi %649, %c0_i32_736 : i32
    %c0_737 = arith.constant 0 : index
    %651 = arith.index_cast %650 : i32 to index
    %c0_738 = arith.constant 0 : index
    %c2_739 = arith.constant 2 : index
    %652 = vector.load %arg2[%c0_737, %651, %c0_738, %c2_739] : memref<1x18x4x130xbf16, #tpu.memory_space<vmem>>, vector<1x1x4x128xbf16>
    %653 = vector.shape_cast %652 : vector<1x1x4x128xbf16> to vector<4x128xbf16>
    %c32 = arith.constant 32 : index
    %c0_740 = arith.constant 0 : index
    %654 = vector.load %arg6[%c32, %c0_740] : memref<36x2048xbf16, #tpu.memory_space<vmem>>, vector<4x128xbf16>
    tpu.vector_store %arg6[%c32, %c0_740], %653 {strides = array<i32>} : memref<36x2048xbf16, #tpu.memory_space<vmem>>, vector<4x128xbf16>,
    %c1_i32_741 = arith.constant 1 : i32
    %655 = arith.addi %649, %c1_i32_741 : i32
    %c0_742 = arith.constant 0 : index
    %656 = arith.index_cast %655 : i32 to index
    %c0_743 = arith.constant 0 : index
    %c2_744 = arith.constant 2 : index
    %657 = vector.load %arg2[%c0_742, %656, %c0_743, %c2_744] : memref<1x18x4x130xbf16, #tpu.memory_space<vmem>>, vector<1x1x4x128xbf16>
    %658 = vector.shape_cast %657 : vector<1x1x4x128xbf16> to vector<4x128xbf16>
    %c32_745 = arith.constant 32 : index
    %c128_746 = arith.constant 128 : index
    %659 = vector.load %arg6[%c32_745, %c128_746] : memref<36x2048xbf16, #tpu.memory_space<vmem>>, vector<4x128xbf16>
    tpu.vector_store %arg6[%c32_745, %c128_746], %658 {strides = array<i32>} : memref<36x2048xbf16, #tpu.memory_space<vmem>>, vector<4x128xbf16>,
    %c2_i32_747 = arith.constant 2 : i32
    %660 = arith.addi %649, %c2_i32_747 : i32
    %c0_748 = arith.constant 0 : index
    %661 = arith.index_cast %660 : i32 to index
    %c0_749 = arith.constant 0 : index
    %c2_750 = arith.constant 2 : index
    %662 = vector.load %arg2[%c0_748, %661, %c0_749, %c2_750] : memref<1x18x4x130xbf16, #tpu.memory_space<vmem>>, vector<1x1x4x128xbf16>
    %663 = vector.shape_cast %662 : vector<1x1x4x128xbf16> to vector<4x128xbf16>
    %c32_751 = arith.constant 32 : index
    %c256_752 = arith.constant 256 : index
    %664 = vector.load %arg6[%c32_751, %c256_752] : memref<36x2048xbf16, #tpu.memory_space<vmem>>, vector<4x128xbf16>
    tpu.vector_store %arg6[%c32_751, %c256_752], %663 {strides = array<i32>} : memref<36x2048xbf16, #tpu.memory_space<vmem>>, vector<4x128xbf16>,
    %c3_i32_753 = arith.constant 3 : i32
    %665 = arith.addi %649, %c3_i32_753 : i32
    %c0_754 = arith.constant 0 : index
    %666 = arith.index_cast %665 : i32 to index
    %c0_755 = arith.constant 0 : index
    %c2_756 = arith.constant 2 : index
    %667 = vector.load %arg2[%c0_754, %666, %c0_755, %c2_756] : memref<1x18x4x130xbf16, #tpu.memory_space<vmem>>, vector<1x1x4x128xbf16>
    %668 = vector.shape_cast %667 : vector<1x1x4x128xbf16> to vector<4x128xbf16>
    %c32_757 = arith.constant 32 : index
    %c384_758 = arith.constant 384 : index
    %669 = vector.load %arg6[%c32_757, %c384_758] : memref<36x2048xbf16, #tpu.memory_space<vmem>>, vector<4x128xbf16>
    tpu.vector_store %arg6[%c32_757, %c384_758], %668 {strides = array<i32>} : memref<36x2048xbf16, #tpu.memory_space<vmem>>, vector<4x128xbf16>,
    %c4_i32_759 = arith.constant 4 : i32
    %670 = arith.addi %649, %c4_i32_759 : i32
    %c0_760 = arith.constant 0 : index
    %671 = arith.index_cast %670 : i32 to index
    %c0_761 = arith.constant 0 : index
    %c2_762 = arith.constant 2 : index
    %672 = vector.load %arg2[%c0_760, %671, %c0_761, %c2_762] : memref<1x18x4x130xbf16, #tpu.memory_space<vmem>>, vector<1x1x4x128xbf16>
    %673 = vector.shape_cast %672 : vector<1x1x4x128xbf16> to vector<4x128xbf16>
    %c32_763 = arith.constant 32 : index
    %c512_764 = arith.constant 512 : index
    %674 = vector.load %arg6[%c32_763, %c512_764] : memref<36x2048xbf16, #tpu.memory_space<vmem>>, vector<4x128xbf16>
    tpu.vector_store %arg6[%c32_763, %c512_764], %673 {strides = array<i32>} : memref<36x2048xbf16, #tpu.memory_space<vmem>>, vector<4x128xbf16>,
    %c5_i32_765 = arith.constant 5 : i32
    %675 = arith.addi %649, %c5_i32_765 : i32
    %c0_766 = arith.constant 0 : index
    %676 = arith.index_cast %675 : i32 to index
    %c0_767 = arith.constant 0 : index
    %c2_768 = arith.constant 2 : index
    %677 = vector.load %arg2[%c0_766, %676, %c0_767, %c2_768] : memref<1x18x4x130xbf16, #tpu.memory_space<vmem>>, vector<1x1x4x128xbf16>
    %678 = vector.shape_cast %677 : vector<1x1x4x128xbf16> to vector<4x128xbf16>
    %c32_769 = arith.constant 32 : index
    %c640_770 = arith.constant 640 : index
    %679 = vector.load %arg6[%c32_769, %c640_770] : memref<36x2048xbf16, #tpu.memory_space<vmem>>, vector<4x128xbf16>
    tpu.vector_store %arg6[%c32_769, %c640_770], %678 {strides = array<i32>} : memref<36x2048xbf16, #tpu.memory_space<vmem>>, vector<4x128xbf16>,
    %c6_i32_771 = arith.constant 6 : i32
    %680 = arith.addi %649, %c6_i32_771 : i32
    %c0_772 = arith.constant 0 : index
    %681 = arith.index_cast %680 : i32 to index
    %c0_773 = arith.constant 0 : index
    %c2_774 = arith.constant 2 : index
    %682 = vector.load %arg2[%c0_772, %681, %c0_773, %c2_774] : memref<1x18x4x130xbf16, #tpu.memory_space<vmem>>, vector<1x1x4x128xbf16>
    %683 = vector.shape_cast %682 : vector<1x1x4x128xbf16> to vector<4x128xbf16>
    %c32_775 = arith.constant 32 : index
    %c768_776 = arith.constant 768 : index
    %684 = vector.load %arg6[%c32_775, %c768_776] : memref<36x2048xbf16, #tpu.memory_space<vmem>>, vector<4x128xbf16>
    tpu.vector_store %arg6[%c32_775, %c768_776], %683 {strides = array<i32>} : memref<36x2048xbf16, #tpu.memory_space<vmem>>, vector<4x128xbf16>,
    %c7_i32_777 = arith.constant 7 : i32
    %685 = arith.addi %649, %c7_i32_777 : i32
    %c0_778 = arith.constant 0 : index
    %686 = arith.index_cast %685 : i32 to index
    %c0_779 = arith.constant 0 : index
    %c2_780 = arith.constant 2 : index
    %687 = vector.load %arg2[%c0_778, %686, %c0_779, %c2_780] : memref<1x18x4x130xbf16, #tpu.memory_space<vmem>>, vector<1x1x4x128xbf16>
    %688 = vector.shape_cast %687 : vector<1x1x4x128xbf16> to vector<4x128xbf16>
    %c32_781 = arith.constant 32 : index
    %c896_782 = arith.constant 896 : index
    %689 = vector.load %arg6[%c32_781, %c896_782] : memref<36x2048xbf16, #tpu.memory_space<vmem>>, vector<4x128xbf16>
    tpu.vector_store %arg6[%c32_781, %c896_782], %688 {strides = array<i32>} : memref<36x2048xbf16, #tpu.memory_space<vmem>>, vector<4x128xbf16>,
    %c8_i32_783 = arith.constant 8 : i32
    %690 = arith.addi %649, %c8_i32_783 : i32
    %c0_784 = arith.constant 0 : index
    %691 = arith.index_cast %690 : i32 to index
    %c0_785 = arith.constant 0 : index
    %c2_786 = arith.constant 2 : index
    %692 = vector.load %arg2[%c0_784, %691, %c0_785, %c2_786] : memref<1x18x4x130xbf16, #tpu.memory_space<vmem>>, vector<1x1x4x128xbf16>
    %693 = vector.shape_cast %692 : vector<1x1x4x128xbf16> to vector<4x128xbf16>
    %c32_787 = arith.constant 32 : index
    %c1024_788 = arith.constant 1024 : index
    %694 = vector.load %arg6[%c32_787, %c1024_788] : memref<36x2048xbf16, #tpu.memory_space<vmem>>, vector<4x128xbf16>
    tpu.vector_store %arg6[%c32_787, %c1024_788], %693 {strides = array<i32>} : memref<36x2048xbf16, #tpu.memory_space<vmem>>, vector<4x128xbf16>,
    %c9_i32_789 = arith.constant 9 : i32
    %695 = arith.addi %649, %c9_i32_789 : i32
    %c0_790 = arith.constant 0 : index
    %696 = arith.index_cast %695 : i32 to index
    %c0_791 = arith.constant 0 : index
    %c2_792 = arith.constant 2 : index
    %697 = vector.load %arg2[%c0_790, %696, %c0_791, %c2_792] : memref<1x18x4x130xbf16, #tpu.memory_space<vmem>>, vector<1x1x4x128xbf16>
    %698 = vector.shape_cast %697 : vector<1x1x4x128xbf16> to vector<4x128xbf16>
    %c32_793 = arith.constant 32 : index
    %c1152_794 = arith.constant 1152 : index
    %699 = vector.load %arg6[%c32_793, %c1152_794] : memref<36x2048xbf16, #tpu.memory_space<vmem>>, vector<4x128xbf16>
    tpu.vector_store %arg6[%c32_793, %c1152_794], %698 {strides = array<i32>} : memref<36x2048xbf16, #tpu.memory_space<vmem>>, vector<4x128xbf16>,
    %c10_i32_795 = arith.constant 10 : i32
    %700 = arith.addi %649, %c10_i32_795 : i32
    %c0_796 = arith.constant 0 : index
    %701 = arith.index_cast %700 : i32 to index
    %c0_797 = arith.constant 0 : index
    %c2_798 = arith.constant 2 : index
    %702 = vector.load %arg2[%c0_796, %701, %c0_797, %c2_798] : memref<1x18x4x130xbf16, #tpu.memory_space<vmem>>, vector<1x1x4x128xbf16>
    %703 = vector.shape_cast %702 : vector<1x1x4x128xbf16> to vector<4x128xbf16>
    %c32_799 = arith.constant 32 : index
    %c1280_800 = arith.constant 1280 : index
    %704 = vector.load %arg6[%c32_799, %c1280_800] : memref<36x2048xbf16, #tpu.memory_space<vmem>>, vector<4x128xbf16>
    tpu.vector_store %arg6[%c32_799, %c1280_800], %703 {strides = array<i32>} : memref<36x2048xbf16, #tpu.memory_space<vmem>>, vector<4x128xbf16>,
    %c11_i32_801 = arith.constant 11 : i32
    %705 = arith.addi %649, %c11_i32_801 : i32
    %c0_802 = arith.constant 0 : index
    %706 = arith.index_cast %705 : i32 to index
    %c0_803 = arith.constant 0 : index
    %c2_804 = arith.constant 2 : index
    %707 = vector.load %arg2[%c0_802, %706, %c0_803, %c2_804] : memref<1x18x4x130xbf16, #tpu.memory_space<vmem>>, vector<1x1x4x128xbf16>
    %708 = vector.shape_cast %707 : vector<1x1x4x128xbf16> to vector<4x128xbf16>
    %c32_805 = arith.constant 32 : index
    %c1408_806 = arith.constant 1408 : index
    %709 = vector.load %arg6[%c32_805, %c1408_806] : memref<36x2048xbf16, #tpu.memory_space<vmem>>, vector<4x128xbf16>
    tpu.vector_store %arg6[%c32_805, %c1408_806], %708 {strides = array<i32>} : memref<36x2048xbf16, #tpu.memory_space<vmem>>, vector<4x128xbf16>,
    %c12_i32_807 = arith.constant 12 : i32
    %710 = arith.addi %649, %c12_i32_807 : i32
    %c0_808 = arith.constant 0 : index
    %711 = arith.index_cast %710 : i32 to index
    %c0_809 = arith.constant 0 : index
    %c2_810 = arith.constant 2 : index
    %712 = vector.load %arg2[%c0_808, %711, %c0_809, %c2_810] : memref<1x18x4x130xbf16, #tpu.memory_space<vmem>>, vector<1x1x4x128xbf16>
    %713 = vector.shape_cast %712 : vector<1x1x4x128xbf16> to vector<4x128xbf16>
    %c32_811 = arith.constant 32 : index
    %c1536_812 = arith.constant 1536 : index
    %714 = vector.load %arg6[%c32_811, %c1536_812] : memref<36x2048xbf16, #tpu.memory_space<vmem>>, vector<4x128xbf16>
    tpu.vector_store %arg6[%c32_811, %c1536_812], %713 {strides = array<i32>} : memref<36x2048xbf16, #tpu.memory_space<vmem>>, vector<4x128xbf16>,
    %c13_i32_813 = arith.constant 13 : i32
    %715 = arith.addi %649, %c13_i32_813 : i32
    %c0_814 = arith.constant 0 : index
    %716 = arith.index_cast %715 : i32 to index
    %c0_815 = arith.constant 0 : index
    %c2_816 = arith.constant 2 : index
    %717 = vector.load %arg2[%c0_814, %716, %c0_815, %c2_816] : memref<1x18x4x130xbf16, #tpu.memory_space<vmem>>, vector<1x1x4x128xbf16>
    %718 = vector.shape_cast %717 : vector<1x1x4x128xbf16> to vector<4x128xbf16>
    %c32_817 = arith.constant 32 : index
    %c1664_818 = arith.constant 1664 : index
    %719 = vector.load %arg6[%c32_817, %c1664_818] : memref<36x2048xbf16, #tpu.memory_space<vmem>>, vector<4x128xbf16>
    tpu.vector_store %arg6[%c32_817, %c1664_818], %718 {strides = array<i32>} : memref<36x2048xbf16, #tpu.memory_space<vmem>>, vector<4x128xbf16>,
    %c14_i32_819 = arith.constant 14 : i32
    %720 = arith.addi %649, %c14_i32_819 : i32
    %c0_820 = arith.constant 0 : index
    %721 = arith.index_cast %720 : i32 to index
    %c0_821 = arith.constant 0 : index
    %c2_822 = arith.constant 2 : index
    %722 = vector.load %arg2[%c0_820, %721, %c0_821, %c2_822] : memref<1x18x4x130xbf16, #tpu.memory_space<vmem>>, vector<1x1x4x128xbf16>
    %723 = vector.shape_cast %722 : vector<1x1x4x128xbf16> to vector<4x128xbf16>
    %c32_823 = arith.constant 32 : index
    %c1792_824 = arith.constant 1792 : index
    %724 = vector.load %arg6[%c32_823, %c1792_824] : memref<36x2048xbf16, #tpu.memory_space<vmem>>, vector<4x128xbf16>
    tpu.vector_store %arg6[%c32_823, %c1792_824], %723 {strides = array<i32>} : memref<36x2048xbf16, #tpu.memory_space<vmem>>, vector<4x128xbf16>,
    %c15_i32_825 = arith.constant 15 : i32
    %725 = arith.addi %649, %c15_i32_825 : i32
    %c0_826 = arith.constant 0 : index
    %726 = arith.index_cast %725 : i32 to index
    %c0_827 = arith.constant 0 : index
    %c2_828 = arith.constant 2 : index
    %727 = vector.load %arg2[%c0_826, %726, %c0_827, %c2_828] : memref<1x18x4x130xbf16, #tpu.memory_space<vmem>>, vector<1x1x4x128xbf16>
    %728 = vector.shape_cast %727 : vector<1x1x4x128xbf16> to vector<4x128xbf16>
    %c32_829 = arith.constant 32 : index
    %c1920_830 = arith.constant 1920 : index
    %729 = vector.load %arg6[%c32_829, %c1920_830] : memref<36x2048xbf16, #tpu.memory_space<vmem>>, vector<4x128xbf16>
    tpu.vector_store %arg6[%c32_829, %c1920_830], %728 {strides = array<i32>} : memref<36x2048xbf16, #tpu.memory_space<vmem>>, vector<4x128xbf16>,
    %c0_831 = arith.constant 0 : index
    %c0_832 = arith.constant 0 : index
    %730 = vector.load %arg3[%c0_831, %c0_832] : memref<8x36xbf16, #tpu.memory_space<vmem>>, vector<8x36xbf16>
    %c0_833 = arith.constant 0 : index
    %c0_834 = arith.constant 0 : index
    %731 = vector.load %arg6[%c0_833, %c0_834] : memref<36x2048xbf16, #tpu.memory_space<vmem>>, vector<36x2048xbf16>
    %cst = arith.constant dense<0.000000e+00> : vector<8x2048xf32>
    %732 = tpu.matmul %730, %731, %cst {dimension_numbers = #tpu.dot_dimension_numbers<[1], [0], [0], [1], [0, 0, 1, 1], [], []>} : vector<8x36xbf16>, vector<36x2048xbf16>, vector<8x2048xf32> -> vector<8x2048xf32>
    %c0_835 = arith.constant 0 : index
    %c0_836 = arith.constant 0 : index
    %733 = vector.load %arg4[%c0_835, %c0_836] : memref<8x1xf32, #tpu.memory_space<vmem>>, vector<8x1xf32>
    %734 = vector.broadcast %733 : vector<8x1xf32> to vector<8x2048xf32>
    %735 = arith.addf %732, %734 : vector<8x2048xf32>
    %736 = vector.extract_strided_slice %735 {offsets = [0, 0], sizes = [8, 16], strides = [1, 1]} : vector<8x2048xf32> to vector<8x16xf32>
    %c0_837 = arith.constant 0 : index
    %c0_838 = arith.constant 0 : index
    %c0_839 = arith.constant 0 : index
    %737 = vector.load %arg5[%c0_837, %c0_838, %c0_839] : memref<1x8x256xf32, #tpu.memory_space<vmem>>, vector<1x8x16xf32>
    %738 = vector.shape_cast %737 : vector<1x8x16xf32> to vector<8x16xf32>
    %739 = vector.shape_cast %736 : vector<8x16xf32> to vector<1x8x16xf32>
    tpu.vector_store %arg5[%c0_837, %c0_838, %c0_839], %739 {strides = array<i32>} : memref<1x8x256xf32, #tpu.memory_space<vmem>>, vector<1x8x16xf32>,
    %740 = vector.extract_strided_slice %735 {offsets = [0, 128], sizes = [8, 16], strides = [1, 1]} : vector<8x2048xf32> to vector<8x16xf32>
    %c0_840 = arith.constant 0 : index
    %c0_841 = arith.constant 0 : index
    %c16_842 = arith.constant 16 : index
    %741 = vector.load %arg5[%c0_840, %c0_841, %c16_842] : memref<1x8x256xf32, #tpu.memory_space<vmem>>, vector<1x8x16xf32>
    %742 = vector.shape_cast %741 : vector<1x8x16xf32> to vector<8x16xf32>
    %743 = vector.shape_cast %740 : vector<8x16xf32> to vector<1x8x16xf32>
    tpu.vector_store %arg5[%c0_840, %c0_841, %c16_842], %743 {strides = array<i32>} : memref<1x8x256xf32, #tpu.memory_space<vmem>>, vector<1x8x16xf32>,
    %744 = vector.extract_strided_slice %735 {offsets = [0, 256], sizes = [8, 16], strides = [1, 1]} : vector<8x2048xf32> to vector<8x16xf32>
    %c0_843 = arith.constant 0 : index
    %c0_844 = arith.constant 0 : index
    %c32_845 = arith.constant 32 : index
    %745 = vector.load %arg5[%c0_843, %c0_844, %c32_845] : memref<1x8x256xf32, #tpu.memory_space<vmem>>, vector<1x8x16xf32>
    %746 = vector.shape_cast %745 : vector<1x8x16xf32> to vector<8x16xf32>
    %747 = vector.shape_cast %744 : vector<8x16xf32> to vector<1x8x16xf32>
    tpu.vector_store %arg5[%c0_843, %c0_844, %c32_845], %747 {strides = array<i32>} : memref<1x8x256xf32, #tpu.memory_space<vmem>>, vector<1x8x16xf32>,
    %748 = vector.extract_strided_slice %735 {offsets = [0, 384], sizes = [8, 16], strides = [1, 1]} : vector<8x2048xf32> to vector<8x16xf32>
    %c0_846 = arith.constant 0 : index
    %c0_847 = arith.constant 0 : index
    %c48 = arith.constant 48 : index
    %749 = vector.load %arg5[%c0_846, %c0_847, %c48] : memref<1x8x256xf32, #tpu.memory_space<vmem>>, vector<1x8x16xf32>
    %750 = vector.shape_cast %749 : vector<1x8x16xf32> to vector<8x16xf32>
    %751 = vector.shape_cast %748 : vector<8x16xf32> to vector<1x8x16xf32>
    tpu.vector_store %arg5[%c0_846, %c0_847, %c48], %751 {strides = array<i32>} : memref<1x8x256xf32, #tpu.memory_space<vmem>>, vector<1x8x16xf32>,
    %752 = vector.extract_strided_slice %735 {offsets = [0, 512], sizes = [8, 16], strides = [1, 1]} : vector<8x2048xf32> to vector<8x16xf32>
    %c0_848 = arith.constant 0 : index
    %c0_849 = arith.constant 0 : index
    %c64 = arith.constant 64 : index
    %753 = vector.load %arg5[%c0_848, %c0_849, %c64] : memref<1x8x256xf32, #tpu.memory_space<vmem>>, vector<1x8x16xf32>
    %754 = vector.shape_cast %753 : vector<1x8x16xf32> to vector<8x16xf32>
    %755 = vector.shape_cast %752 : vector<8x16xf32> to vector<1x8x16xf32>
    tpu.vector_store %arg5[%c0_848, %c0_849, %c64], %755 {strides = array<i32>} : memref<1x8x256xf32, #tpu.memory_space<vmem>>, vector<1x8x16xf32>,
    %756 = vector.extract_strided_slice %735 {offsets = [0, 640], sizes = [8, 16], strides = [1, 1]} : vector<8x2048xf32> to vector<8x16xf32>
    %c0_850 = arith.constant 0 : index
    %c0_851 = arith.constant 0 : index
    %c80 = arith.constant 80 : index
    %757 = vector.load %arg5[%c0_850, %c0_851, %c80] : memref<1x8x256xf32, #tpu.memory_space<vmem>>, vector<1x8x16xf32>
    %758 = vector.shape_cast %757 : vector<1x8x16xf32> to vector<8x16xf32>
    %759 = vector.shape_cast %756 : vector<8x16xf32> to vector<1x8x16xf32>
    tpu.vector_store %arg5[%c0_850, %c0_851, %c80], %759 {strides = array<i32>} : memref<1x8x256xf32, #tpu.memory_space<vmem>>, vector<1x8x16xf32>,
    %760 = vector.extract_strided_slice %735 {offsets = [0, 768], sizes = [8, 16], strides = [1, 1]} : vector<8x2048xf32> to vector<8x16xf32>
    %c0_852 = arith.constant 0 : index
    %c0_853 = arith.constant 0 : index
    %c96 = arith.constant 96 : index
    %761 = vector.load %arg5[%c0_852, %c0_853, %c96] : memref<1x8x256xf32, #tpu.memory_space<vmem>>, vector<1x8x16xf32>
    %762 = vector.shape_cast %761 : vector<1x8x16xf32> to vector<8x16xf32>
    %763 = vector.shape_cast %760 : vector<8x16xf32> to vector<1x8x16xf32>
    tpu.vector_store %arg5[%c0_852, %c0_853, %c96], %763 {strides = array<i32>} : memref<1x8x256xf32, #tpu.memory_space<vmem>>, vector<1x8x16xf32>,
    %764 = vector.extract_strided_slice %735 {offsets = [0, 896], sizes = [8, 16], strides = [1, 1]} : vector<8x2048xf32> to vector<8x16xf32>
    %c0_854 = arith.constant 0 : index
    %c0_855 = arith.constant 0 : index
    %c112 = arith.constant 112 : index
    %765 = vector.load %arg5[%c0_854, %c0_855, %c112] : memref<1x8x256xf32, #tpu.memory_space<vmem>>, vector<1x8x16xf32>
    %766 = vector.shape_cast %765 : vector<1x8x16xf32> to vector<8x16xf32>
    %767 = vector.shape_cast %764 : vector<8x16xf32> to vector<1x8x16xf32>
    tpu.vector_store %arg5[%c0_854, %c0_855, %c112], %767 {strides = array<i32>} : memref<1x8x256xf32, #tpu.memory_space<vmem>>, vector<1x8x16xf32>,
    %768 = vector.extract_strided_slice %735 {offsets = [0, 1024], sizes = [8, 16], strides = [1, 1]} : vector<8x2048xf32> to vector<8x16xf32>
    %c0_856 = arith.constant 0 : index
    %c0_857 = arith.constant 0 : index
    %c128_858 = arith.constant 128 : index
    %769 = vector.load %arg5[%c0_856, %c0_857, %c128_858] : memref<1x8x256xf32, #tpu.memory_space<vmem>>, vector<1x8x16xf32>
    %770 = vector.shape_cast %769 : vector<1x8x16xf32> to vector<8x16xf32>
    %771 = vector.shape_cast %768 : vector<8x16xf32> to vector<1x8x16xf32>
    tpu.vector_store %arg5[%c0_856, %c0_857, %c128_858], %771 {strides = array<i32>} : memref<1x8x256xf32, #tpu.memory_space<vmem>>, vector<1x8x16xf32>,
    %772 = vector.extract_strided_slice %735 {offsets = [0, 1152], sizes = [8, 16], strides = [1, 1]} : vector<8x2048xf32> to vector<8x16xf32>
    %c0_859 = arith.constant 0 : index
    %c0_860 = arith.constant 0 : index
    %c144 = arith.constant 144 : index
    %773 = vector.load %arg5[%c0_859, %c0_860, %c144] : memref<1x8x256xf32, #tpu.memory_space<vmem>>, vector<1x8x16xf32>
    %774 = vector.shape_cast %773 : vector<1x8x16xf32> to vector<8x16xf32>
    %775 = vector.shape_cast %772 : vector<8x16xf32> to vector<1x8x16xf32>
    tpu.vector_store %arg5[%c0_859, %c0_860, %c144], %775 {strides = array<i32>} : memref<1x8x256xf32, #tpu.memory_space<vmem>>, vector<1x8x16xf32>,
    %776 = vector.extract_strided_slice %735 {offsets = [0, 1280], sizes = [8, 16], strides = [1, 1]} : vector<8x2048xf32> to vector<8x16xf32>
    %c0_861 = arith.constant 0 : index
    %c0_862 = arith.constant 0 : index
    %c160 = arith.constant 160 : index
    %777 = vector.load %arg5[%c0_861, %c0_862, %c160] : memref<1x8x256xf32, #tpu.memory_space<vmem>>, vector<1x8x16xf32>
    %778 = vector.shape_cast %777 : vector<1x8x16xf32> to vector<8x16xf32>
    %779 = vector.shape_cast %776 : vector<8x16xf32> to vector<1x8x16xf32>
    tpu.vector_store %arg5[%c0_861, %c0_862, %c160], %779 {strides = array<i32>} : memref<1x8x256xf32, #tpu.memory_space<vmem>>, vector<1x8x16xf32>,
    %780 = vector.extract_strided_slice %735 {offsets = [0, 1408], sizes = [8, 16], strides = [1, 1]} : vector<8x2048xf32> to vector<8x16xf32>
    %c0_863 = arith.constant 0 : index
    %c0_864 = arith.constant 0 : index
    %c176 = arith.constant 176 : index
    %781 = vector.load %arg5[%c0_863, %c0_864, %c176] : memref<1x8x256xf32, #tpu.memory_space<vmem>>, vector<1x8x16xf32>
    %782 = vector.shape_cast %781 : vector<1x8x16xf32> to vector<8x16xf32>
    %783 = vector.shape_cast %780 : vector<8x16xf32> to vector<1x8x16xf32>
    tpu.vector_store %arg5[%c0_863, %c0_864, %c176], %783 {strides = array<i32>} : memref<1x8x256xf32, #tpu.memory_space<vmem>>, vector<1x8x16xf32>,
    %784 = vector.extract_strided_slice %735 {offsets = [0, 1536], sizes = [8, 16], strides = [1, 1]} : vector<8x2048xf32> to vector<8x16xf32>
    %c0_865 = arith.constant 0 : index
    %c0_866 = arith.constant 0 : index
    %c192 = arith.constant 192 : index
    %785 = vector.load %arg5[%c0_865, %c0_866, %c192] : memref<1x8x256xf32, #tpu.memory_space<vmem>>, vector<1x8x16xf32>
    %786 = vector.shape_cast %785 : vector<1x8x16xf32> to vector<8x16xf32>
    %787 = vector.shape_cast %784 : vector<8x16xf32> to vector<1x8x16xf32>
    tpu.vector_store %arg5[%c0_865, %c0_866, %c192], %787 {strides = array<i32>} : memref<1x8x256xf32, #tpu.memory_space<vmem>>, vector<1x8x16xf32>,
    %788 = vector.extract_strided_slice %735 {offsets = [0, 1664], sizes = [8, 16], strides = [1, 1]} : vector<8x2048xf32> to vector<8x16xf32>
    %c0_867 = arith.constant 0 : index
    %c0_868 = arith.constant 0 : index
    %c208 = arith.constant 208 : index
    %789 = vector.load %arg5[%c0_867, %c0_868, %c208] : memref<1x8x256xf32, #tpu.memory_space<vmem>>, vector<1x8x16xf32>
    %790 = vector.shape_cast %789 : vector<1x8x16xf32> to vector<8x16xf32>
    %791 = vector.shape_cast %788 : vector<8x16xf32> to vector<1x8x16xf32>
    tpu.vector_store %arg5[%c0_867, %c0_868, %c208], %791 {strides = array<i32>} : memref<1x8x256xf32, #tpu.memory_space<vmem>>, vector<1x8x16xf32>,
    %792 = vector.extract_strided_slice %735 {offsets = [0, 1792], sizes = [8, 16], strides = [1, 1]} : vector<8x2048xf32> to vector<8x16xf32>
    %c0_869 = arith.constant 0 : index
    %c0_870 = arith.constant 0 : index
    %c224 = arith.constant 224 : index
    %793 = vector.load %arg5[%c0_869, %c0_870, %c224] : memref<1x8x256xf32, #tpu.memory_space<vmem>>, vector<1x8x16xf32>
    %794 = vector.shape_cast %793 : vector<1x8x16xf32> to vector<8x16xf32>
    %795 = vector.shape_cast %792 : vector<8x16xf32> to vector<1x8x16xf32>
    tpu.vector_store %arg5[%c0_869, %c0_870, %c224], %795 {strides = array<i32>} : memref<1x8x256xf32, #tpu.memory_space<vmem>>, vector<1x8x16xf32>,
    %796 = vector.extract_strided_slice %735 {offsets = [0, 1920], sizes = [8, 16], strides = [1, 1]} : vector<8x2048xf32> to vector<8x16xf32>
    %c0_871 = arith.constant 0 : index
    %c0_872 = arith.constant 0 : index
    %c240 = arith.constant 240 : index
    %797 = vector.load %arg5[%c0_871, %c0_872, %c240] : memref<1x8x256xf32, #tpu.memory_space<vmem>>, vector<1x8x16xf32>
    %798 = vector.shape_cast %797 : vector<1x8x16xf32> to vector<8x16xf32>
    %799 = vector.shape_cast %796 : vector<8x16xf32> to vector<1x8x16xf32>
    tpu.vector_store %arg5[%c0_871, %c0_872, %c240], %799 {strides = array<i32>} : memref<1x8x256xf32, #tpu.memory_space<vmem>>, vector<1x8x16xf32>,
    return
  }
  func.func @transform_0(%arg0: i32, %arg1: i32) -> (i32, i32, i32, i32) {
    %c0_i32 = arith.constant 0 : i32
    %c0_i32_0 = arith.constant 0 : i32
    %c0_i32_1 = arith.constant 0 : i32
    %c0_i32_2 = arith.constant 0 : i32
    return %arg0, %c0_i32, %c0_i32_0, %c0_i32_1 : i32, i32, i32, i32
  }
  func.func @transform_1(%arg0: i32, %arg1: i32) -> (i32, i32) {
    %c0_i32 = arith.constant 0 : i32
    %c0_i32_0 = arith.constant 0 : i32
    %c0_i32_1 = arith.constant 0 : i32
    return %c0_i32, %c0_i32_0 : i32, i32
  }
  func.func @transform_2(%arg0: i32, %arg1: i32) -> (i32, i32) {
    %c0_i32 = arith.constant 0 : i32
    %c0_i32_0 = arith.constant 0 : i32
    %c0_i32_1 = arith.constant 0 : i32
    return %c0_i32, %c0_i32_0 : i32, i32
  }
  func.func @transform_3(%arg0: i32, %arg1: i32) -> (i32, i32, i32) {
    %c0_i32 = arith.constant 0 : i32
    %c0_i32_0 = arith.constant 0 : i32
    return %arg0, %c0_i32, %arg1 : i32, i32, i32
  }
}

</mosaic_0001>

<llo_original>
// kernel: conv_layer_forward.1
$region0: #{conv_layer_forward.1}
  #allocation0 [shape = 'u32[]', space=smem, size = 0x4, offset = 0x4, fixed_abs, tag = 'smem constant byte address 0x4 - core index']
  #allocation1 [shape = 'u32[144,128]{1,0:T(1,128)}', space=vmem, size = 0x12000, scoped, tag = 'internal scratch']
  #allocation2 [shape = 'bf16[36,2048]{1,0:T(8,128)(2,1)}', space=vmem, size = 0x28000, scoped, tag = 'scratch operand']
  %s0 = inlined_call_operand.vmem [shape: bf16[2,18,4,130], index: 0, kind: input, shape index: {}]
  %s1 = inlined_call_operand.vmem [shape: bf16[8,36], index: 1, kind: input, shape index: {}]
  %s2 = inlined_call_operand.vmem [shape: f32[8,1], index: 2, kind: input, shape index: {}]
  %s3 = inlined_call_operand.vmem [shape: f32[2,8,256], index: 3, kind: output, shape index: {}]
  %s4 = sld [smem:[#allocation0]]
  $region45: #{conv_layer_forward.1} parent=0
    _
  %s6 = ssub.s32 1, %s4
  %s7 = scalar_select 0, %s6, %s4
  loop: start=0, step=1, limit=4
  $region2: #{conv_layer_forward.1} parent=0 // loop_pre_header
    _
  $region3: #{conv_layer_forward.1} parent=0 // loop_header
    %s9 = sphi 0, %s13
    %p10 = scmp.ge.s32.totalorder %s9, 4
    %s16 = sphi 0, %s28
    %s17 = sphi 0, %s24
    %s18 = sphi 0, %s16
    %s19 = sphi 0, %s17
    %s20 = sphi 0, %s18
    %s21 = sphi 0, %s19
    %s31 = sphi 0, %s33
    %s34 = sphi 0, %s31
    %s35 = sphi 0, %s34
    %s51 = sphi 0, %s35
    %s55 = sphi 0, %s55
    %s57 = sphi 0, %s55
    %s58 = sphi 0, %s57
    %s72 = sphi 0, %s58
    %s76 = sphi 0, %s76
    %s78 = sphi 0, %s76
    %s79 = sphi 0, %s78
    %s93 = sphi 0, %s79
    %s101 = sphi 0, %s103
    %s104 = sphi 0, %s101
    %s105 = sphi 0, %s104
    %s121 = sphi 0, %s105
  $region4: #{conv_layer_forward.1} parent=0 // loop_header_branch
    %12 = sbr.rel (%p10) target = $region8
  $region5: #{conv_layer_forward.1} parent=0 // loop_body
    %s14 = ssub.s32 %s9, 1
    %s15 = ssub.s32 %s9, 2
    %s22 = sadd.s32 1, %s17
    %p23 = scmp.ge.s32.totalorder %s22, 1
    %s24 = scalar_select %p23, 0, %s22
    %s25 = sadd.s32 1, %s16
    %s26 = scalar_select %p23, %s25, %s16
    %p27 = scmp.ge.s32.totalorder %s26, 2
    %s28 = scalar_select %p27, 0, %s26
    %s29 = ssub.s32 %s16, %s28
    %p30 = scmp.eq.s32.totalorder %s29, 0
    %s32 = sadd.s32 %s31, 1
    %s33 = scalar_select %p30, %s31, %s32
    %p36 = pneg %p30
    %p37 = scmp.eq.s32.totalorder %s9, 1
    %p38 = por %p36, %p37
    %p39 = scmp.ne.s32.totalorder %s31, %s34
    %p40 = scmp.eq.s32.totalorder %s9, 0
    %p41 = por %p39, %p40
    %p42 = scmp.ne.s32.totalorder %s31, %s34
    %p43 = scmp.eq.s32.totalorder %s14, 1
    %p44 = por %p42, %p43
    %p45 = scmp.ne.s32.totalorder %s34, %s35
    %p46 = scmp.eq.s32.totalorder %s14, 0
    %p47 = por %p45, %p46
    %p48 = scmp.ne.s32.totalorder %s34, %s35
    %p49 = scmp.eq.s32.totalorder %s15, 1
    %p50 = por %p48, %p49
    %p52 = scmp.ne.s32.totalorder %s35, %s51
    %p53 = scmp.eq.s32.totalorder %s15, 0
    %p54 = por %p52, %p53
    %s56 = sadd.s32 %s55, 1
    %p59 = scmp.eq.s32.totalorder %s9, 1
    %p60 = scmp.ne.s32.totalorder %s55, %s57
    %p61 = scmp.eq.s32.totalorder %s9, 0
    %p62 = por %p60, %p61
    %p63 = scmp.ne.s32.totalorder %s55, %s57
    %p64 = scmp.eq.s32.totalorder %s14, 1
    %p65 = por %p63, %p64
    %p66 = scmp.ne.s32.totalorder %s57, %s58
    %p67 = scmp.eq.s32.totalorder %s14, 0
    %p68 = por %p66, %p67
    %p69 = scmp.ne.s32.totalorder %s57, %s58
    %p70 = scmp.eq.s32.totalorder %s15, 1
    %p71 = por %p69, %p70
    %p73 = scmp.ne.s32.totalorder %s58, %s72
    %p74 = scmp.eq.s32.totalorder %s15, 0
    %p75 = por %p73, %p74
    %s77 = sadd.s32 %s76, 1
    %p80 = scmp.eq.s32.totalorder %s9, 1
    %p81 = scmp.ne.s32.totalorder %s76, %s78
    %p82 = scmp.eq.s32.totalorder %s9, 0
    %p83 = por %p81, %p82
    %p84 = scmp.ne.s32.totalorder %s76, %s78
    %p85 = scmp.eq.s32.totalorder %s14, 1
    %p86 = por %p84, %p85
    %p87 = scmp.ne.s32.totalorder %s78, %s79
    %p88 = scmp.eq.s32.totalorder %s14, 0
    %p89 = por %p87, %p88
    %p90 = scmp.ne.s32.totalorder %s78, %s79
    %p91 = scmp.eq.s32.totalorder %s15, 1
    %p92 = por %p90, %p91
    %p94 = scmp.ne.s32.totalorder %s79, %s93
    %p95 = scmp.eq.s32.totalorder %s15, 0
    %p96 = por %p94, %p95
    %s97 = ssub.s32 %s16, %s28
    %s98 = ssub.s32 %s17, %s24
    %s99 = sor.u32 %s97, %s98
    %p100 = scmp.eq.s32.totalorder %s99, 0
    %s102 = sadd.s32 %s101, 1
    %s103 = scalar_select %p100, %s101, %s102
    %p106 = pneg %p100
    %p107 = scmp.eq.s32.totalorder %s9, 1
    %p108 = por %p106, %p107
    %p109 = scmp.ne.s32.totalorder %s101, %s104
    %p110 = scmp.eq.s32.totalorder %s9, 0
    %p111 = por %p109, %p110
    %p112 = scmp.ne.s32.totalorder %s101, %s104
    %p113 = scmp.eq.s32.totalorder %s14, 1
    %p114 = por %p112, %p113
    %p115 = scmp.ne.s32.totalorder %s104, %s105
    %p116 = scmp.eq.s32.totalorder %s14, 0
    %p117 = por %p115, %p116
    %p118 = scmp.ne.s32.totalorder %s104, %s105
    %p119 = scmp.eq.s32.totalorder %s15, 1
    %p120 = por %p118, %p119
    %p122 = scmp.ne.s32.totalorder %s105, %s121
    %p123 = scmp.eq.s32.totalorder %s15, 0
    %p124 = por %p122, %p123
    %p125 = scmp.le.s32.totalorder 1, %s9
    %p126 = scmp.lt.s32.totalorder %s9, 3
    %p127 = pnand %p125, %p126
    %p128 = pneg %p127
    // Predicated region
    $region9: #{conv_layer_forward.1} parent=5 // pred_check
      _
    $region10: #{conv_layer_forward.1} parent=5 // pred_check_branch
      %130 = sbr.rel (%p127) target = $region12
    $region11: #{conv_layer_forward.1} parent=5 // pred_region
      %s131 = ssub.s32 %s9, 1
      // Predicated region
      $region13: #{conv_layer_forward.1} parent=11 // pred_check
        %p132 = pneg %p68
      $region14: #{conv_layer_forward.1} parent=11 // pred_check_branch
        %134 = sbr.rel (%p132) target = $region16
      $region15: #{conv_layer_forward.1} parent=11 // pred_region
        _
      $region16: #{conv_layer_forward.1} parent=11 // pred_fallthru
        _
      // Predicated region
      $region17: #{conv_layer_forward.1} parent=11 // pred_check
        %p135 = pneg %p89
      $region18: #{conv_layer_forward.1} parent=11 // pred_check_branch
        %137 = sbr.rel (%p135) target = $region20
      $region19: #{conv_layer_forward.1} parent=11 // pred_region
        _
      $region20: #{conv_layer_forward.1} parent=11 // pred_fallthru
        _
    $region12: #{conv_layer_forward.1} parent=5 // pred_fallthru
      _
    %p138 = scmp.lt.s32.totalorder %s9, 2
    // Predicated region
    $region21: #{conv_layer_forward.1} parent=5 // pred_check
      %p139 = pneg %p138
    $region22: #{conv_layer_forward.1} parent=5 // pred_check_branch
      %141 = sbr.rel (%p139) target = $region24
    $region23: #{conv_layer_forward.1} parent=5 // pred_region
      // Predicated region
      $region25: #{conv_layer_forward.1} parent=23 // pred_check
        %p142 = pneg %p41
      $region26: #{conv_layer_forward.1} parent=23 // pred_check_branch
        %144 = sbr.rel (%p142) target = $region28
      $region27: #{conv_layer_forward.1} parent=23 // pred_region
        %p145 = scmp.lt.s32.totalorder %s16, 1
        %s146 = scalar_select %p145, %s16, 1
        %s147 = smul.addr %s146, 36
        %s148 = smul.addr %s147, 2
        %s149 = scalar_lea.vmem %s0, %s148
      $region28: #{conv_layer_forward.1} parent=23 // pred_fallthru
        _
    $region24: #{conv_layer_forward.1} parent=5 // pred_fallthru
      _
    %p150 = scmp.le.s32.totalorder 1, %s9
    %p151 = scmp.lt.s32.totalorder %s9, 3
    %p152 = pnand %p150, %p151
    %p153 = pneg %p152
    // Predicated region
    $region29: #{conv_layer_forward.1} parent=5 // pred_check
      _
    $region30: #{conv_layer_forward.1} parent=5 // pred_check_branch
      %155 = sbr.rel (%p152) target = $region32
    $region31: #{conv_layer_forward.1} parent=5 // pred_region
      %s156 = ssub.s32 %s9, 1
      %p157 = scmp.lt.s32.totalorder %s18, 1
      %s158 = scalar_select %p157, %s18, 1
      %s159 = smul.addr %s158, 36
      %s160 = smul.addr %s159, 2
      %s161 = scalar_lea.vmem %s0, %s160
      %p162 = pneg %p47
      %p163 = pneg %p44
      %p164 = pneg %p68
      %p165 = pneg %p65
      %p166 = pneg %p89
      %p167 = pneg %p86
      %p168 = pneg %p117
      %p169 = pneg %p114
      %s170 = smul.u32 2, %s19
      %p171 = scmp.lt.s32.totalorder %s18, 1
      %s172 = scalar_select %p171, %s18, 1
      %p173 = scmp.lt.s32.totalorder %s170, 1
      %s174 = scalar_select %p173, %s170, 1
      %s175 = smul.addr %s172, 2
      %s176 = sadd.s32 %s174, %s175
      %s177 = smul.addr %s176, 8
      %s178 = scalar_lea.vmem %s3, %s177
      %p179 = scmp.lt.s32.totalorder %s18, 1
      %s180 = scalar_select %p179, %s18, 1
      %s181 = smul.addr %s180, 36
      %s182 = smul.addr %s181, 2
      %s183 = scalar_lea.vmem %s0, %s182
      %s184 = smul.u32 2, %s19
      %p185 = scmp.lt.s32.totalorder %s18, 1
      %s186 = scalar_select %p185, %s18, 1
      %p187 = scmp.lt.s32.totalorder %s184, 1
      %s188 = scalar_select %p187, %s184, 1
      %s189 = smul.addr %s186, 2
      %s190 = sadd.s32 %s188, %s189
      %s191 = smul.addr %s190, 8
      %s192 = scalar_lea.vmem %s3, %s191
      %s193 = smul.u32 2, %s19
      %s195 = smul.u32 %s19, 16
      %s196 = smul.u32 %s195, 2
      %s197 = smul.addr %s196, 2
      %s198 = scalar_lea.vmem %s183, %s197
      %v199 = vld [vmem:[%s198] sm:$0x3]
      %200 = vst [vmem:[#allocation2] sm:$0x3] %v199
      %s201 = sadd.s32 %s195, 1
      %s202 = smul.u32 %s201, 2
      %s203 = smul.addr %s202, 2
      %s204 = scalar_lea.vmem %s183, %s203
      %v205 = vld [vmem:[%s204] sm:$0x3]
      %206 = vst [vmem:[#allocation2 + $0x4] sm:$0x3] %v205
      %s207 = sadd.s32 %s195, 2
      %s208 = smul.u32 %s207, 2
      %s209 = smul.addr %s208, 2
      %s210 = scalar_lea.vmem %s183, %s209
      %v211 = vld [vmem:[%s210] sm:$0x3]
      %212 = vst [vmem:[#allocation2 + $0x8] sm:$0x3] %v211
      %s213 = sadd.s32 %s195, 3
      %s214 = smul.u32 %s213, 2
      %s215 = smul.addr %s214, 2
      %s216 = scalar_lea.vmem %s183, %s215
      %v217 = vld [vmem:[%s216] sm:$0x3]
      %218 = vst [vmem:[#allocation2 + $0xc] sm:$0x3] %v217
      %s219 = sadd.s32 %s195, 4
      %s220 = smul.u32 %s219, 2
      %s221 = smul.addr %s220, 2
      %s222 = scalar_lea.vmem %s183, %s221
      %v223 = vld [vmem:[%s222] sm:$0x3]
      %224 = vst [vmem:[#allocation2 + $0x10] sm:$0x3] %v223
      %s225 = sadd.s32 %s195, 5
      %s226 = smul.u32 %s225, 2
      %s227 = smul.addr %s226, 2
      %s228 = scalar_lea.vmem %s183, %s227
      %v229 = vld [vmem:[%s228] sm:$0x3]
      %230 = vst [vmem:[#allocation2 + $0x14] sm:$0x3] %v229
      %s231 = sadd.s32 %s195, 6
      %s232 = smul.u32 %s231, 2
      %s233 = smul.addr %s232, 2
      %s234 = scalar_lea.vmem %s183, %s233
      %v235 = vld [vmem:[%s234] sm:$0x3]
      %236 = vst [vmem:[#allocation2 + $0x18] sm:$0x3] %v235
      %s237 = sadd.s32 %s195, 7
      %s238 = smul.u32 %s237, 2
      %s239 = smul.addr %s238, 2
      %s240 = scalar_lea.vmem %s183, %s239
      %v241 = vld [vmem:[%s240] sm:$0x3]
      %242 = vst [vmem:[#allocation2 + $0x1c] sm:$0x3] %v241
      %s243 = sadd.s32 %s195, 8
      %s244 = smul.u32 %s243, 2
      %s245 = smul.addr %s244, 2
      %s246 = scalar_lea.vmem %s183, %s245
      %v247 = vld [vmem:[%s246] sm:$0x3]
      %248 = vst [vmem:[#allocation2 + $0x20] sm:$0x3] %v247
      %s249 = sadd.s32 %s195, 9
      %s250 = smul.u32 %s249, 2
      %s251 = smul.addr %s250, 2
      %s252 = scalar_lea.vmem %s183, %s251
      %v253 = vld [vmem:[%s252] sm:$0x3]
      %254 = vst [vmem:[#allocation2 + $0x24] sm:$0x3] %v253
      %s255 = sadd.s32 %s195, 10
      %s256 = smul.u32 %s255, 2
      %s257 = smul.addr %s256, 2
      %s258 = scalar_lea.vmem %s183, %s257
      %v259 = vld [vmem:[%s258] sm:$0x3]
      %260 = vst [vmem:[#allocation2 + $0x28] sm:$0x3] %v259
      %s261 = sadd.s32 %s195, 11
      %s262 = smul.u32 %s261, 2
      %s263 = smul.addr %s262, 2
      %s264 = scalar_lea.vmem %s183, %s263
      %v265 = vld [vmem:[%s264] sm:$0x3]
      %266 = vst [vmem:[#allocation2 + $0x2c] sm:$0x3] %v265
      %s267 = sadd.s32 %s195, 12
      %s268 = smul.u32 %s267, 2
      %s269 = smul.addr %s268, 2
      %s270 = scalar_lea.vmem %s183, %s269
      %v271 = vld [vmem:[%s270] sm:$0x3]
      %272 = vst [vmem:[#allocation2 + $0x30] sm:$0x3] %v271
      %s273 = sadd.s32 %s195, 13
      %s274 = smul.u32 %s273, 2
      %s275 = smul.addr %s274, 2
      %s276 = scalar_lea.vmem %s183, %s275
      %v277 = vld [vmem:[%s276] sm:$0x3]
      %278 = vst [vmem:[#allocation2 + $0x34] sm:$0x3] %v277
      %s279 = sadd.s32 %s195, 14
      %s280 = smul.u32 %s279, 2
      %s281 = smul.addr %s280, 2
      %s282 = scalar_lea.vmem %s183, %s281
      %v283 = vld [vmem:[%s282] sm:$0x3]
      %284 = vst [vmem:[#allocation2 + $0x38] sm:$0x3] %v283
      %s285 = sadd.s32 %s195, 15
      %s286 = smul.u32 %s285, 2
      %s287 = smul.addr %s286, 2
      %s288 = scalar_lea.vmem %s183, %s287
      %v289 = vld [vmem:[%s288] sm:$0x3]
      %290 = vst [vmem:[#allocation2 + $0x3c] sm:$0x3] %v289
      %v291 = vld [vmem:[%s198] sm:$0xf]
      %v293 = vcombine.low %v291, %v291
      %v295 = vunpack.c.l.s4 1983009808
      %v296 = vunpack.c.0.s8 %v295
      %v297 = vlaneseq
      %v298 = vshrl.u32 %v297, 7
      %v299 = vsub.s32 %v296, %v298
      %v300 = vrot.slane %v293, %v299
      %301 = vrot.lane.b32.xlu0 %v300, 127
      %v302 = vpop.permute.xlu0 %301
      %v303 = vrot.slane %v302, 4
      %vm304 = vcmask 1039360
      %v305 = vsel %vm304, %v302, %v303
      %307 = vst [vmem:[#allocation2] sm:$0xc] %v305
      %v308 = vld [vmem:[%s204] sm:$0xf]
      %v310 = vcombine.low %v308, %v308
      %v312 = vunpack.c.l.s4 1983009808
      %v313 = vunpack.c.0.s8 %v312
      %v314 = vlaneseq
      %v315 = vshrl.u32 %v314, 7
      %v316 = vsub.s32 %v313, %v315
      %v317 = vrot.slane %v310, %v316
      %318 = vrot.lane.b32.xlu0 %v317, 127
      %v319 = vpop.permute.xlu0 %318
      %v320 = vrot.slane %v319, 4
      %v321 = vsel %vm304, %v319, %v320
      %323 = vst [vmem:[#allocation2 + $0x4] sm:$0xc] %v321
      %v324 = vld [vmem:[%s210] sm:$0xf]
      %v326 = vcombine.low %v324, %v324
      %v328 = vunpack.c.l.s4 1983009808
      %v329 = vunpack.c.0.s8 %v328
      %v330 = vlaneseq
      %v331 = vshrl.u32 %v330, 7
      %v332 = vsub.s32 %v329, %v331
      %v333 = vrot.slane %v326, %v332
      %334 = vrot.lane.b32.xlu0 %v333, 127
      %v335 = vpop.permute.xlu0 %334
      %v336 = vrot.slane %v335, 4
      %v337 = vsel %vm304, %v335, %v336
      %339 = vst [vmem:[#allocation2 + $0x8] sm:$0xc] %v337
      %v340 = vld [vmem:[%s216] sm:$0xf]
      %v342 = vcombine.low %v340, %v340
      %v344 = vunpack.c.l.s4 1983009808
      %v345 = vunpack.c.0.s8 %v344
      %v346 = vlaneseq
      %v347 = vshrl.u32 %v346, 7
      %v348 = vsub.s32 %v345, %v347
      %v349 = vrot.slane %v342, %v348
      %350 = vrot.lane.b32.xlu0 %v349, 127
      %v351 = vpop.permute.xlu0 %350
      %v352 = vrot.slane %v351, 4
      %v353 = vsel %vm304, %v351, %v352
      %355 = vst [vmem:[#allocation2 + $0xc] sm:$0xc] %v353
      %v356 = vld [vmem:[%s222] sm:$0xf]
      %v358 = vcombine.low %v356, %v356
      %v360 = vunpack.c.l.s4 1983009808
      %v361 = vunpack.c.0.s8 %v360
      %v362 = vlaneseq
      %v363 = vshrl.u32 %v362, 7
      %v364 = vsub.s32 %v361, %v363
      %v365 = vrot.slane %v358, %v364
      %366 = vrot.lane.b32.xlu0 %v365, 127
      %v367 = vpop.permute.xlu0 %366
      %v368 = vrot.slane %v367, 4
      %v369 = vsel %vm304, %v367, %v368
      %371 = vst [vmem:[#allocation2 + $0x10] sm:$0xc] %v369
      %v372 = vld [vmem:[%s228] sm:$0xf]
      %v374 = vcombine.low %v372, %v372
      %v376 = vunpack.c.l.s4 1983009808
      %v377 = vunpack.c.0.s8 %v376
      %v378 = vlaneseq
      %v379 = vshrl.u32 %v378, 7
      %v380 = vsub.s32 %v377, %v379
      %v381 = vrot.slane %v374, %v380
      %382 = vrot.lane.b32.xlu0 %v381, 127
      %v383 = vpop.permute.xlu0 %382
      %v384 = vrot.slane %v383, 4
      %v385 = vsel %vm304, %v383, %v384
      %387 = vst [vmem:[#allocation2 + $0x14] sm:$0xc] %v385
      %v388 = vld [vmem:[%s234] sm:$0xf]
      %v390 = vcombine.low %v388, %v388
      %v392 = vunpack.c.l.s4 1983009808
      %v393 = vunpack.c.0.s8 %v392
      %v394 = vlaneseq
      %v395 = vshrl.u32 %v394, 7
      %v396 = vsub.s32 %v393, %v395
      %v397 = vrot.slane %v390, %v396
      %398 = vrot.lane.b32.xlu0 %v397, 127
      %v399 = vpop.permute.xlu0 %398
      %v400 = vrot.slane %v399, 4
      %v401 = vsel %vm304, %v399, %v400
      %403 = vst [vmem:[#allocation2 + $0x18] sm:$0xc] %v401
      %v404 = vld [vmem:[%s240] sm:$0xf]
      %v406 = vcombine.low %v404, %v404
      %v408 = vunpack.c.l.s4 1983009808
      %v409 = vunpack.c.0.s8 %v408
      %v410 = vlaneseq
      %v411 = vshrl.u32 %v410, 7
      %v412 = vsub.s32 %v409, %v411
      %v413 = vrot.slane %v406, %v412
      %414 = vrot.lane.b32.xlu0 %v413, 127
      %v415 = vpop.permute.xlu0 %414
      %v416 = vrot.slane %v415, 4
      %v417 = vsel %vm304, %v415, %v416
      %419 = vst [vmem:[#allocation2 + $0x1c] sm:$0xc] %v417
      %v420 = vld [vmem:[%s246] sm:$0xf]
      %v422 = vcombine.low %v420, %v420
      %v424 = vunpack.c.l.s4 1983009808
      %v425 = vunpack.c.0.s8 %v424
      %v426 = vlaneseq
      %v427 = vshrl.u32 %v426, 7
      %v428 = vsub.s32 %v425, %v427
      %v429 = vrot.slane %v422, %v428
      %430 = vrot.lane.b32.xlu0 %v429, 127
      %v431 = vpop.permute.xlu0 %430
      %v432 = vrot.slane %v431, 4
      %v433 = vsel %vm304, %v431, %v432
      %435 = vst [vmem:[#allocation2 + $0x20] sm:$0xc] %v433
      %v436 = vld [vmem:[%s252] sm:$0xf]
      %v438 = vcombine.low %v436, %v436
      %v440 = vunpack.c.l.s4 1983009808
      %v441 = vunpack.c.0.s8 %v440
      %v442 = vlaneseq
      %v443 = vshrl.u32 %v442, 7
      %v444 = vsub.s32 %v441, %v443
      %v445 = vrot.slane %v438, %v444
      %446 = vrot.lane.b32.xlu0 %v445, 127
      %v447 = vpop.permute.xlu0 %446
      %v448 = vrot.slane %v447, 4
      %v449 = vsel %vm304, %v447, %v448
      %451 = vst [vmem:[#allocation2 + $0x24] sm:$0xc] %v449
      %v452 = vld [vmem:[%s258] sm:$0xf]
      %v454 = vcombine.low %v452, %v452
      %v456 = vunpack.c.l.s4 1983009808
      %v457 = vunpack.c.0.s8 %v456
      %v458 = vlaneseq
      %v459 = vshrl.u32 %v458, 7
      %v460 = vsub.s32 %v457, %v459
      %v461 = vrot.slane %v454, %v460
      %462 = vrot.lane.b32.xlu0 %v461, 127
      %v463 = vpop.permute.xlu0 %462
      %v464 = vrot.slane %v463, 4
      %v465 = vsel %vm304, %v463, %v464
      %467 = vst [vmem:[#allocation2 + $0x28] sm:$0xc] %v465
      %v468 = vld [vmem:[%s264] sm:$0xf]
      %v470 = vcombine.low %v468, %v468
      %v472 = vunpack.c.l.s4 1983009808
      %v473 = vunpack.c.0.s8 %v472
      %v474 = vlaneseq
      %v475 = vshrl.u32 %v474, 7
      %v476 = vsub.s32 %v473, %v475
      %v477 = vrot.slane %v470, %v476
      %478 = vrot.lane.b32.xlu0 %v477, 127
      %v479 = vpop.permute.xlu0 %478
      %v480 = vrot.slane %v479, 4
      %v481 = vsel %vm304, %v479, %v480
      %483 = vst [vmem:[#allocation2 + $0x2c] sm:$0xc] %v481
      %v484 = vld [vmem:[%s270] sm:$0xf]
      %v486 = vcombine.low %v484, %v484
      %v488 = vunpack.c.l.s4 1983009808
      %v489 = vunpack.c.0.s8 %v488
      %v490 = vlaneseq
      %v491 = vshrl.u32 %v490, 7
      %v492 = vsub.s32 %v489, %v491
      %v493 = vrot.slane %v486, %v492
      %494 = vrot.lane.b32.xlu0 %v493, 127
      %v495 = vpop.permute.xlu0 %494
      %v496 = vrot.slane %v495, 4
      %v497 = vsel %vm304, %v495, %v496
      %499 = vst [vmem:[#allocation2 + $0x30] sm:$0xc] %v497
      %v500 = vld [vmem:[%s276] sm:$0xf]
      %v502 = vcombine.low %v500, %v500
      %v504 = vunpack.c.l.s4 1983009808
      %v505 = vunpack.c.0.s8 %v504
      %v506 = vlaneseq
      %v507 = vshrl.u32 %v506, 7
      %v508 = vsub.s32 %v505, %v507
      %v509 = vrot.slane %v502, %v508
      %510 = vrot.lane.b32.xlu0 %v509, 127
      %v511 = vpop.permute.xlu0 %510
      %v512 = vrot.slane %v511, 4
      %v513 = vsel %vm304, %v511, %v512
      %515 = vst [vmem:[#allocation2 + $0x34] sm:$0xc] %v513
      %v516 = vld [vmem:[%s282] sm:$0xf]
      %v518 = vcombine.low %v516, %v516
      %v520 = vunpack.c.l.s4 1983009808
      %v521 = vunpack.c.0.s8 %v520
      %v522 = vlaneseq
      %v523 = vshrl.u32 %v522, 7
      %v524 = vsub.s32 %v521, %v523
      %v525 = vrot.slane %v518, %v524
      %526 = vrot.lane.b32.xlu0 %v525, 127
      %v527 = vpop.permute.xlu0 %526
      %v528 = vrot.slane %v527, 4
      %v529 = vsel %vm304, %v527, %v528
      %531 = vst [vmem:[#allocation2 + $0x38] sm:$0xc] %v529
      %v532 = vld [vmem:[%s288] sm:$0xf]
      %v534 = vcombine.low %v532, %v532
      %v536 = vunpack.c.l.s4 1983009808
      %v537 = vunpack.c.0.s8 %v536
      %v538 = vlaneseq
      %v539 = vshrl.u32 %v538, 7
      %v540 = vsub.s32 %v537, %v539
      %v541 = vrot.slane %v534, %v540
      %542 = vrot.lane.b32.xlu0 %v541, 127
      %v543 = vpop.permute.xlu0 %542
      %v544 = vrot.slane %v543, 4
      %v545 = vsel %vm304, %v543, %v544
      %547 = vst [vmem:[#allocation2 + $0x3c] sm:$0xc] %v545
      %v548 = vld [vmem:[%s198] sm:$0xf]
      %v551 = vunpack.c.l.s4 1983009808
      %v552 = vunpack.c.0.s8 %v551
      %v553 = vlaneseq
      %v554 = vshrl.u32 %v553, 7
      %v555 = vsub.s32 %v552, %v554
      %v556 = vrot.slane %v548, %v555
      %557 = vrot.lane.b32.xlu0 %v556, 126
      %v558 = vpop.permute.xlu0 %557
      %v559 = vrot.slane %v558, 4
      %vm560 = vcmask 1031168
      %v561 = vsel %vm560, %v558, %v559
      %563 = vst [vmem:[#allocation2 + $0x40] sm:$0x3] %v561
      %v564 = vld [vmem:[%s204] sm:$0xf]
      %v567 = vunpack.c.l.s4 1983009808
      %v568 = vunpack.c.0.s8 %v567
      %v569 = vlaneseq
      %v570 = vshrl.u32 %v569, 7
      %v571 = vsub.s32 %v568, %v570
      %v572 = vrot.slane %v564, %v571
      %573 = vrot.lane.b32.xlu0 %v572, 126
      %v574 = vpop.permute.xlu0 %573
      %v575 = vrot.slane %v574, 4
      %v576 = vsel %vm560, %v574, %v575
      %578 = vst [vmem:[#allocation2 + $0x44] sm:$0x3] %v576
      %v579 = vld [vmem:[%s210] sm:$0xf]
      %v582 = vunpack.c.l.s4 1983009808
      %v583 = vunpack.c.0.s8 %v582
      %v584 = vlaneseq
      %v585 = vshrl.u32 %v584, 7
      %v586 = vsub.s32 %v583, %v585
      %v587 = vrot.slane %v579, %v586
      %588 = vrot.lane.b32.xlu0 %v587, 126
      %v589 = vpop.permute.xlu0 %588
      %v590 = vrot.slane %v589, 4
      %v591 = vsel %vm560, %v589, %v590
      %593 = vst [vmem:[#allocation2 + $0x48] sm:$0x3] %v591
      %v594 = vld [vmem:[%s216] sm:$0xf]
      %v597 = vunpack.c.l.s4 1983009808
      %v598 = vunpack.c.0.s8 %v597
      %v599 = vlaneseq
      %v600 = vshrl.u32 %v599, 7
      %v601 = vsub.s32 %v598, %v600
      %v602 = vrot.slane %v594, %v601
      %603 = vrot.lane.b32.xlu0 %v602, 126
      %v604 = vpop.permute.xlu0 %603
      %v605 = vrot.slane %v604, 4
      %v606 = vsel %vm560, %v604, %v605
      %608 = vst [vmem:[#allocation2 + $0x4c] sm:$0x3] %v606
      %v609 = vld [vmem:[%s222] sm:$0xf]
      %v612 = vunpack.c.l.s4 1983009808
      %v613 = vunpack.c.0.s8 %v612
      %v614 = vlaneseq
      %v615 = vshrl.u32 %v614, 7
      %v616 = vsub.s32 %v613, %v615
      %v617 = vrot.slane %v609, %v616
      %618 = vrot.lane.b32.xlu0 %v617, 126
      %v619 = vpop.permute.xlu0 %618
      %v620 = vrot.slane %v619, 4
      %v621 = vsel %vm560, %v619, %v620
      %623 = vst [vmem:[#allocation2 + $0x50] sm:$0x3] %v621
      %v624 = vld [vmem:[%s228] sm:$0xf]
      %v627 = vunpack.c.l.s4 1983009808
      %v628 = vunpack.c.0.s8 %v627
      %v629 = vlaneseq
      %v630 = vshrl.u32 %v629, 7
      %v631 = vsub.s32 %v628, %v630
      %v632 = vrot.slane %v624, %v631
      %633 = vrot.lane.b32.xlu0 %v632, 126
      %v634 = vpop.permute.xlu0 %633
      %v635 = vrot.slane %v634, 4
      %v636 = vsel %vm560, %v634, %v635
      %638 = vst [vmem:[#allocation2 + $0x54] sm:$0x3] %v636
      %v639 = vld [vmem:[%s234] sm:$0xf]
      %v642 = vunpack.c.l.s4 1983009808
      %v643 = vunpack.c.0.s8 %v642
      %v644 = vlaneseq
      %v645 = vshrl.u32 %v644, 7
      %v646 = vsub.s32 %v643, %v645
      %v647 = vrot.slane %v639, %v646
      %648 = vrot.lane.b32.xlu0 %v647, 126
      %v649 = vpop.permute.xlu0 %648
      %v650 = vrot.slane %v649, 4
      %v651 = vsel %vm560, %v649, %v650
      %653 = vst [vmem:[#allocation2 + $0x58] sm:$0x3] %v651
      %v654 = vld [vmem:[%s240] sm:$0xf]
      %v657 = vunpack.c.l.s4 1983009808
      %v658 = vunpack.c.0.s8 %v657
      %v659 = vlaneseq
      %v660 = vshrl.u32 %v659, 7
      %v661 = vsub.s32 %v658, %v660
      %v662 = vrot.slane %v654, %v661
      %663 = vrot.lane.b32.xlu0 %v662, 126
      %v664 = vpop.permute.xlu0 %663
      %v665 = vrot.slane %v664, 4
      %v666 = vsel %vm560, %v664, %v665
      %668 = vst [vmem:[#allocation2 + $0x5c] sm:$0x3] %v666
      %v669 = vld [vmem:[%s246] sm:$0xf]
      %v672 = vunpack.c.l.s4 1983009808
      %v673 = vunpack.c.0.s8 %v672
      %v674 = vlaneseq
      %v675 = vshrl.u32 %v674, 7
      %v676 = vsub.s32 %v673, %v675
      %v677 = vrot.slane %v669, %v676
      %678 = vrot.lane.b32.xlu0 %v677, 126
      %v679 = vpop.permute.xlu0 %678
      %v680 = vrot.slane %v679, 4
      %v681 = vsel %vm560, %v679, %v680
      %683 = vst [vmem:[#allocation2 + $0x60] sm:$0x3] %v681
      %v684 = vld [vmem:[%s252] sm:$0xf]
      %v687 = vunpack.c.l.s4 1983009808
      %v688 = vunpack.c.0.s8 %v687
      %v689 = vlaneseq
      %v690 = vshrl.u32 %v689, 7
      %v691 = vsub.s32 %v688, %v690
      %v692 = vrot.slane %v684, %v691
      %693 = vrot.lane.b32.xlu0 %v692, 126
      %v694 = vpop.permute.xlu0 %693
      %v695 = vrot.slane %v694, 4
      %v696 = vsel %vm560, %v694, %v695
      %698 = vst [vmem:[#allocation2 + $0x64] sm:$0x3] %v696
      %v699 = vld [vmem:[%s258] sm:$0xf]
      %v702 = vunpack.c.l.s4 1983009808
      %v703 = vunpack.c.0.s8 %v702
      %v704 = vlaneseq
      %v705 = vshrl.u32 %v704, 7
      %v706 = vsub.s32 %v703, %v705
      %v707 = vrot.slane %v699, %v706
      %708 = vrot.lane.b32.xlu0 %v707, 126
      %v709 = vpop.permute.xlu0 %708
      %v710 = vrot.slane %v709, 4
      %v711 = vsel %vm560, %v709, %v710
      %713 = vst [vmem:[#allocation2 + $0x68] sm:$0x3] %v711
      %v714 = vld [vmem:[%s264] sm:$0xf]
      %v717 = vunpack.c.l.s4 1983009808
      %v718 = vunpack.c.0.s8 %v717
      %v719 = vlaneseq
      %v720 = vshrl.u32 %v719, 7
      %v721 = vsub.s32 %v718, %v720
      %v722 = vrot.slane %v714, %v721
      %723 = vrot.lane.b32.xlu0 %v722, 126
      %v724 = vpop.permute.xlu0 %723
      %v725 = vrot.slane %v724, 4
      %v726 = vsel %vm560, %v724, %v725
      %728 = vst [vmem:[#allocation2 + $0x6c] sm:$0x3] %v726
      %v729 = vld [vmem:[%s270] sm:$0xf]
      %v732 = vunpack.c.l.s4 1983009808
      %v733 = vunpack.c.0.s8 %v732
      %v734 = vlaneseq
      %v735 = vshrl.u32 %v734, 7
      %v736 = vsub.s32 %v733, %v735
      %v737 = vrot.slane %v729, %v736
      %738 = vrot.lane.b32.xlu0 %v737, 126
      %v739 = vpop.permute.xlu0 %738
      %v740 = vrot.slane %v739, 4
      %v741 = vsel %vm560, %v739, %v740
      %743 = vst [vmem:[#allocation2 + $0x70] sm:$0x3] %v741
      %v744 = vld [vmem:[%s276] sm:$0xf]
      %v747 = vunpack.c.l.s4 1983009808
      %v748 = vunpack.c.0.s8 %v747
      %v749 = vlaneseq
      %v750 = vshrl.u32 %v749, 7
      %v751 = vsub.s32 %v748, %v750
      %v752 = vrot.slane %v744, %v751
      %753 = vrot.lane.b32.xlu0 %v752, 126
      %v754 = vpop.permute.xlu0 %753
      %v755 = vrot.slane %v754, 4
      %v756 = vsel %vm560, %v754, %v755
      %758 = vst [vmem:[#allocation2 + $0x74] sm:$0x3] %v756
      %v759 = vld [vmem:[%s282] sm:$0xf]
      %v762 = vunpack.c.l.s4 1983009808
      %v763 = vunpack.c.0.s8 %v762
      %v764 = vlaneseq
      %v765 = vshrl.u32 %v764, 7
      %v766 = vsub.s32 %v763, %v765
      %v767 = vrot.slane %v759, %v766
      %768 = vrot.lane.b32.xlu0 %v767, 126
      %v769 = vpop.permute.xlu0 %768
      %v770 = vrot.slane %v769, 4
      %v771 = vsel %vm560, %v769, %v770
      %773 = vst [vmem:[#allocation2 + $0x78] sm:$0x3] %v771
      %v774 = vld [vmem:[%s288] sm:$0xf]
      %v777 = vunpack.c.l.s4 1983009808
      %v778 = vunpack.c.0.s8 %v777
      %v779 = vlaneseq
      %v780 = vshrl.u32 %v779, 7
      %v781 = vsub.s32 %v778, %v780
      %v782 = vrot.slane %v774, %v781
      %783 = vrot.lane.b32.xlu0 %v782, 126
      %v784 = vpop.permute.xlu0 %783
      %v785 = vrot.slane %v784, 4
      %v786 = vsel %vm560, %v784, %v785
      %788 = vst [vmem:[#allocation2 + $0x7c] sm:$0x3] %v786
      %v789 = vld [vmem:[%s204] sm:$0x3]
      %v791 = vcombine.low %v789, %v789
      %v793 = vunpack.c.l.s4 1983009808
      %v794 = vunpack.c.0.s8 %v793
      %v795 = vlaneseq
      %v796 = vshrl.u32 %v795, 7
      %v797 = vsub.s32 %v794, %v796
      %v798 = vrot.slane %v791, %v797
      %800 = vst [vmem:[#allocation2 + $0x40] sm:$0xc] %v798
      %v801 = vld [vmem:[%s210] sm:$0x3]
      %v803 = vcombine.low %v801, %v801
      %v805 = vunpack.c.l.s4 1983009808
      %v806 = vunpack.c.0.s8 %v805
      %v807 = vlaneseq
      %v808 = vshrl.u32 %v807, 7
      %v809 = vsub.s32 %v806, %v808
      %v810 = vrot.slane %v803, %v809
      %812 = vst [vmem:[#allocation2 + $0x44] sm:$0xc] %v810
      %v813 = vld [vmem:[%s216] sm:$0x3]
      %v815 = vcombine.low %v813, %v813
      %v817 = vunpack.c.l.s4 1983009808
      %v818 = vunpack.c.0.s8 %v817
      %v819 = vlaneseq
      %v820 = vshrl.u32 %v819, 7
      %v821 = vsub.s32 %v818, %v820
      %v822 = vrot.slane %v815, %v821
      %824 = vst [vmem:[#allocation2 + $0x48] sm:$0xc] %v822
      %v825 = vld [vmem:[%s222] sm:$0x3]
      %v827 = vcombine.low %v825, %v825
      %v829 = vunpack.c.l.s4 1983009808
      %v830 = vunpack.c.0.s8 %v829
      %v831 = vlaneseq
      %v832 = vshrl.u32 %v831, 7
      %v833 = vsub.s32 %v830, %v832
      %v834 = vrot.slane %v827, %v833
      %836 = vst [vmem:[#allocation2 + $0x4c] sm:$0xc] %v834
      %v837 = vld [vmem:[%s228] sm:$0x3]
      %v839 = vcombine.low %v837, %v837
      %v841 = vunpack.c.l.s4 1983009808
      %v842 = vunpack.c.0.s8 %v841
      %v843 = vlaneseq
      %v844 = vshrl.u32 %v843, 7
      %v845 = vsub.s32 %v842, %v844
      %v846 = vrot.slane %v839, %v845
      %848 = vst [vmem:[#allocation2 + $0x50] sm:$0xc] %v846
      %v849 = vld [vmem:[%s234] sm:$0x3]
      %v851 = vcombine.low %v849, %v849
      %v853 = vunpack.c.l.s4 1983009808
      %v854 = vunpack.c.0.s8 %v853
      %v855 = vlaneseq
      %v856 = vshrl.u32 %v855, 7
      %v857 = vsub.s32 %v854, %v856
      %v858 = vrot.slane %v851, %v857
      %860 = vst [vmem:[#allocation2 + $0x54] sm:$0xc] %v858
      %v861 = vld [vmem:[%s240] sm:$0x3]
      %v863 = vcombine.low %v861, %v861
      %v865 = vunpack.c.l.s4 1983009808
      %v866 = vunpack.c.0.s8 %v865
      %v867 = vlaneseq
      %v868 = vshrl.u32 %v867, 7
      %v869 = vsub.s32 %v866, %v868
      %v870 = vrot.slane %v863, %v869
      %872 = vst [vmem:[#allocation2 + $0x58] sm:$0xc] %v870
      %v873 = vld [vmem:[%s246] sm:$0x3]
      %v875 = vcombine.low %v873, %v873
      %v877 = vunpack.c.l.s4 1983009808
      %v878 = vunpack.c.0.s8 %v877
      %v879 = vlaneseq
      %v880 = vshrl.u32 %v879, 7
      %v881 = vsub.s32 %v878, %v880
      %v882 = vrot.slane %v875, %v881
      %884 = vst [vmem:[#allocation2 + $0x5c] sm:$0xc] %v882
      %v885 = vld [vmem:[%s252] sm:$0x3]
      %v887 = vcombine.low %v885, %v885
      %v889 = vunpack.c.l.s4 1983009808
      %v890 = vunpack.c.0.s8 %v889
      %v891 = vlaneseq
      %v892 = vshrl.u32 %v891, 7
      %v893 = vsub.s32 %v890, %v892
      %v894 = vrot.slane %v887, %v893
      %896 = vst [vmem:[#allocation2 + $0x60] sm:$0xc] %v894
      %v897 = vld [vmem:[%s258] sm:$0x3]
      %v899 = vcombine.low %v897, %v897
      %v901 = vunpack.c.l.s4 1983009808
      %v902 = vunpack.c.0.s8 %v901
      %v903 = vlaneseq
      %v904 = vshrl.u32 %v903, 7
      %v905 = vsub.s32 %v902, %v904
      %v906 = vrot.slane %v899, %v905
      %908 = vst [vmem:[#allocation2 + $0x64] sm:$0xc] %v906
      %v909 = vld [vmem:[%s264] sm:$0x3]
      %v911 = vcombine.low %v909, %v909
      %v913 = vunpack.c.l.s4 1983009808
      %v914 = vunpack.c.0.s8 %v913
      %v915 = vlaneseq
      %v916 = vshrl.u32 %v915, 7
      %v917 = vsub.s32 %v914, %v916
      %v918 = vrot.slane %v911, %v917
      %920 = vst [vmem:[#allocation2 + $0x68] sm:$0xc] %v918
      %v921 = vld [vmem:[%s270] sm:$0x3]
      %v923 = vcombine.low %v921, %v921
      %v925 = vunpack.c.l.s4 1983009808
      %v926 = vunpack.c.0.s8 %v925
      %v927 = vlaneseq
      %v928 = vshrl.u32 %v927, 7
      %v929 = vsub.s32 %v926, %v928
      %v930 = vrot.slane %v923, %v929
      %932 = vst [vmem:[#allocation2 + $0x6c] sm:$0xc] %v930
      %v933 = vld [vmem:[%s276] sm:$0x3]
      %v935 = vcombine.low %v933, %v933
      %v937 = vunpack.c.l.s4 1983009808
      %v938 = vunpack.c.0.s8 %v937
      %v939 = vlaneseq
      %v940 = vshrl.u32 %v939, 7
      %v941 = vsub.s32 %v938, %v940
      %v942 = vrot.slane %v935, %v941
      %944 = vst [vmem:[#allocation2 + $0x70] sm:$0xc] %v942
      %v945 = vld [vmem:[%s282] sm:$0x3]
      %v947 = vcombine.low %v945, %v945
      %v949 = vunpack.c.l.s4 1983009808
      %v950 = vunpack.c.0.s8 %v949
      %v951 = vlaneseq
      %v952 = vshrl.u32 %v951, 7
      %v953 = vsub.s32 %v950, %v952
      %v954 = vrot.slane %v947, %v953
      %956 = vst [vmem:[#allocation2 + $0x74] sm:$0xc] %v954
      %v957 = vld [vmem:[%s288] sm:$0x3]
      %v959 = vcombine.low %v957, %v957
      %v961 = vunpack.c.l.s4 1983009808
      %v962 = vunpack.c.0.s8 %v961
      %v963 = vlaneseq
      %v964 = vshrl.u32 %v963, 7
      %v965 = vsub.s32 %v962, %v964
      %v966 = vrot.slane %v959, %v965
      %968 = vst [vmem:[#allocation2 + $0x78] sm:$0xc] %v966
      %s969 = sadd.s32 %s195, 16
      %s970 = smul.u32 %s969, 2
      %s971 = smul.addr %s970, 2
      %s972 = scalar_lea.vmem %s183, %s971
      %v973 = vld [vmem:[%s972] sm:$0x3]
      %v975 = vcombine.low %v973, %v973
      %v977 = vunpack.c.l.s4 1983009808
      %v978 = vunpack.c.0.s8 %v977
      %v979 = vlaneseq
      %v980 = vshrl.u32 %v979, 7
      %v981 = vsub.s32 %v978, %v980
      %v982 = vrot.slane %v975, %v981
      %984 = vst [vmem:[#allocation2 + $0x7c] sm:$0xc] %v982
      %v985 = vld [vmem:[%s204] sm:$0xf]
      %v988 = vunpack.c.l.s4 1983009808
      %v989 = vunpack.c.0.s8 %v988
      %v990 = vlaneseq
      %v991 = vshrl.u32 %v990, 7
      %v992 = vsub.s32 %v989, %v991
      %v993 = vrot.slane %v985, %v992
      %994 = vrot.lane.b32.xlu0 %v993, 127
      %v995 = vpop.permute.xlu0 %994
      %v996 = vrot.slane %v995, 4
      %v997 = vsel %vm304, %v995, %v996
      %999 = vst [vmem:[#allocation2 + $0x80] sm:$0x3] %v997
      %v1000 = vld [vmem:[%s210] sm:$0xf]
      %v1003 = vunpack.c.l.s4 1983009808
      %v1004 = vunpack.c.0.s8 %v1003
      %v1005 = vlaneseq
      %v1006 = vshrl.u32 %v1005, 7
      %v1007 = vsub.s32 %v1004, %v1006
      %v1008 = vrot.slane %v1000, %v1007
      %1009 = vrot.lane.b32.xlu0 %v1008, 127
      %v1010 = vpop.permute.xlu0 %1009
      %v1011 = vrot.slane %v1010, 4
      %v1012 = vsel %vm304, %v1010, %v1011
      %1014 = vst [vmem:[#allocation2 + $0x84] sm:$0x3] %v1012
      %v1015 = vld [vmem:[%s216] sm:$0xf]
      %v1018 = vunpack.c.l.s4 1983009808
      %v1019 = vunpack.c.0.s8 %v1018
      %v1020 = vlaneseq
      %v1021 = vshrl.u32 %v1020, 7
      %v1022 = vsub.s32 %v1019, %v1021
      %v1023 = vrot.slane %v1015, %v1022
      %1024 = vrot.lane.b32.xlu0 %v1023, 127
      %v1025 = vpop.permute.xlu0 %1024
      %v1026 = vrot.slane %v1025, 4
      %v1027 = vsel %vm304, %v1025, %v1026
      %1029 = vst [vmem:[#allocation2 + $0x88] sm:$0x3] %v1027
      %v1030 = vld [vmem:[%s222] sm:$0xf]
      %v1033 = vunpack.c.l.s4 1983009808
      %v1034 = vunpack.c.0.s8 %v1033
      %v1035 = vlaneseq
      %v1036 = vshrl.u32 %v1035, 7
      %v1037 = vsub.s32 %v1034, %v1036
      %v1038 = vrot.slane %v1030, %v1037
      %1039 = vrot.lane.b32.xlu0 %v1038, 127
      %v1040 = vpop.permute.xlu0 %1039
      %v1041 = vrot.slane %v1040, 4
      %v1042 = vsel %vm304, %v1040, %v1041
      %1044 = vst [vmem:[#allocation2 + $0x8c] sm:$0x3] %v1042
      %v1045 = vld [vmem:[%s228] sm:$0xf]
      %v1048 = vunpack.c.l.s4 1983009808
      %v1049 = vunpack.c.0.s8 %v1048
      %v1050 = vlaneseq
      %v1051 = vshrl.u32 %v1050, 7
      %v1052 = vsub.s32 %v1049, %v1051
      %v1053 = vrot.slane %v1045, %v1052
      %1054 = vrot.lane.b32.xlu0 %v1053, 127
      %v1055 = vpop.permute.xlu0 %1054
      %v1056 = vrot.slane %v1055, 4
      %v1057 = vsel %vm304, %v1055, %v1056
      %1059 = vst [vmem:[#allocation2 + $0x90] sm:$0x3] %v1057
      %v1060 = vld [vmem:[%s234] sm:$0xf]
      %v1063 = vunpack.c.l.s4 1983009808
      %v1064 = vunpack.c.0.s8 %v1063
      %v1065 = vlaneseq
      %v1066 = vshrl.u32 %v1065, 7
      %v1067 = vsub.s32 %v1064, %v1066
      %v1068 = vrot.slane %v1060, %v1067
      %1069 = vrot.lane.b32.xlu0 %v1068, 127
      %v1070 = vpop.permute.xlu0 %1069
      %v1071 = vrot.slane %v1070, 4
      %v1072 = vsel %vm304, %v1070, %v1071
      %1074 = vst [vmem:[#allocation2 + $0x94] sm:$0x3] %v1072
      %v1075 = vld [vmem:[%s240] sm:$0xf]
      %v1078 = vunpack.c.l.s4 1983009808
      %v1079 = vunpack.c.0.s8 %v1078
      %v1080 = vlaneseq
      %v1081 = vshrl.u32 %v1080, 7
      %v1082 = vsub.s32 %v1079, %v1081
      %v1083 = vrot.slane %v1075, %v1082
      %1084 = vrot.lane.b32.xlu0 %v1083, 127
      %v1085 = vpop.permute.xlu0 %1084
      %v1086 = vrot.slane %v1085, 4
      %v1087 = vsel %vm304, %v1085, %v1086
      %1089 = vst [vmem:[#allocation2 + $0x98] sm:$0x3] %v1087
      %v1090 = vld [vmem:[%s246] sm:$0xf]
      %v1093 = vunpack.c.l.s4 1983009808
      %v1094 = vunpack.c.0.s8 %v1093
      %v1095 = vlaneseq
      %v1096 = vshrl.u32 %v1095, 7
      %v1097 = vsub.s32 %v1094, %v1096
      %v1098 = vrot.slane %v1090, %v1097
      %1099 = vrot.lane.b32.xlu0 %v1098, 127
      %v1100 = vpop.permute.xlu0 %1099
      %v1101 = vrot.slane %v1100, 4
      %v1102 = vsel %vm304, %v1100, %v1101
      %1104 = vst [vmem:[#allocation2 + $0x9c] sm:$0x3] %v1102
      %v1105 = vld [vmem:[%s252] sm:$0xf]
      %v1108 = vunpack.c.l.s4 1983009808
      %v1109 = vunpack.c.0.s8 %v1108
      %v1110 = vlaneseq
      %v1111 = vshrl.u32 %v1110, 7
      %v1112 = vsub.s32 %v1109, %v1111
      %v1113 = vrot.slane %v1105, %v1112
      %1114 = vrot.lane.b32.xlu0 %v1113, 127
      %v1115 = vpop.permute.xlu0 %1114
      %v1116 = vrot.slane %v1115, 4
      %v1117 = vsel %vm304, %v1115, %v1116
      %1119 = vst [vmem:[#allocation2 + $0xa0] sm:$0x3] %v1117
      %v1120 = vld [vmem:[%s258] sm:$0xf]
      %v1123 = vunpack.c.l.s4 1983009808
      %v1124 = vunpack.c.0.s8 %v1123
      %v1125 = vlaneseq
      %v1126 = vshrl.u32 %v1125, 7
      %v1127 = vsub.s32 %v1124, %v1126
      %v1128 = vrot.slane %v1120, %v1127
      %1129 = vrot.lane.b32.xlu0 %v1128, 127
      %v1130 = vpop.permute.xlu0 %1129
      %v1131 = vrot.slane %v1130, 4
      %v1132 = vsel %vm304, %v1130, %v1131
      %1134 = vst [vmem:[#allocation2 + $0xa4] sm:$0x3] %v1132
      %v1135 = vld [vmem:[%s264] sm:$0xf]
      %v1138 = vunpack.c.l.s4 1983009808
      %v1139 = vunpack.c.0.s8 %v1138
      %v1140 = vlaneseq
      %v1141 = vshrl.u32 %v1140, 7
      %v1142 = vsub.s32 %v1139, %v1141
      %v1143 = vrot.slane %v1135, %v1142
      %1144 = vrot.lane.b32.xlu0 %v1143, 127
      %v1145 = vpop.permute.xlu0 %1144
      %v1146 = vrot.slane %v1145, 4
      %v1147 = vsel %vm304, %v1145, %v1146
      %1149 = vst [vmem:[#allocation2 + $0xa8] sm:$0x3] %v1147
      %v1150 = vld [vmem:[%s270] sm:$0xf]
      %v1153 = vunpack.c.l.s4 1983009808
      %v1154 = vunpack.c.0.s8 %v1153
      %v1155 = vlaneseq
      %v1156 = vshrl.u32 %v1155, 7
      %v1157 = vsub.s32 %v1154, %v1156
      %v1158 = vrot.slane %v1150, %v1157
      %1159 = vrot.lane.b32.xlu0 %v1158, 127
      %v1160 = vpop.permute.xlu0 %1159
      %v1161 = vrot.slane %v1160, 4
      %v1162 = vsel %vm304, %v1160, %v1161
      %1164 = vst [vmem:[#allocation2 + $0xac] sm:$0x3] %v1162
      %v1165 = vld [vmem:[%s276] sm:$0xf]
      %v1168 = vunpack.c.l.s4 1983009808
      %v1169 = vunpack.c.0.s8 %v1168
      %v1170 = vlaneseq
      %v1171 = vshrl.u32 %v1170, 7
      %v1172 = vsub.s32 %v1169, %v1171
      %v1173 = vrot.slane %v1165, %v1172
      %1174 = vrot.lane.b32.xlu0 %v1173, 127
      %v1175 = vpop.permute.xlu0 %1174
      %v1176 = vrot.slane %v1175, 4
      %v1177 = vsel %vm304, %v1175, %v1176
      %1179 = vst [vmem:[#allocation2 + $0xb0] sm:$0x3] %v1177
      %v1180 = vld [vmem:[%s282] sm:$0xf]
      %v1183 = vunpack.c.l.s4 1983009808
      %v1184 = vunpack.c.0.s8 %v1183
      %v1185 = vlaneseq
      %v1186 = vshrl.u32 %v1185, 7
      %v1187 = vsub.s32 %v1184, %v1186
      %v1188 = vrot.slane %v1180, %v1187
      %1189 = vrot.lane.b32.xlu0 %v1188, 127
      %v1190 = vpop.permute.xlu0 %1189
      %v1191 = vrot.slane %v1190, 4
      %v1192 = vsel %vm304, %v1190, %v1191
      %1194 = vst [vmem:[#allocation2 + $0xb4] sm:$0x3] %v1192
      %v1195 = vld [vmem:[%s288] sm:$0xf]
      %v1198 = vunpack.c.l.s4 1983009808
      %v1199 = vunpack.c.0.s8 %v1198
      %v1200 = vlaneseq
      %v1201 = vshrl.u32 %v1200, 7
      %v1202 = vsub.s32 %v1199, %v1201
      %v1203 = vrot.slane %v1195, %v1202
      %1204 = vrot.lane.b32.xlu0 %v1203, 127
      %v1205 = vpop.permute.xlu0 %1204
      %v1206 = vrot.slane %v1205, 4
      %v1207 = vsel %vm304, %v1205, %v1206
      %1209 = vst [vmem:[#allocation2 + $0xb8] sm:$0x3] %v1207
      %v1210 = vld [vmem:[%s972] sm:$0xf]
      %v1213 = vunpack.c.l.s4 1983009808
      %v1214 = vunpack.c.0.s8 %v1213
      %v1215 = vlaneseq
      %v1216 = vshrl.u32 %v1215, 7
      %v1217 = vsub.s32 %v1214, %v1216
      %v1218 = vrot.slane %v1210, %v1217
      %1219 = vrot.lane.b32.xlu0 %v1218, 127
      %v1220 = vpop.permute.xlu0 %1219
      %v1221 = vrot.slane %v1220, 4
      %v1222 = vsel %vm304, %v1220, %v1221
      %1224 = vst [vmem:[#allocation2 + $0xbc] sm:$0x3] %v1222
      %v1225 = vld [vmem:[%s204] sm:$0xf]
      %v1227 = vcombine.low %v1225, %v1225
      %v1229 = vunpack.c.l.s4 1983009808
      %v1230 = vunpack.c.0.s8 %v1229
      %v1231 = vlaneseq
      %v1232 = vshrl.u32 %v1231, 7
      %v1233 = vsub.s32 %v1230, %v1232
      %v1234 = vrot.slane %v1227, %v1233
      %1235 = vrot.lane.b32.xlu0 %v1234, 126
      %v1236 = vpop.permute.xlu0 %1235
      %v1237 = vrot.slane %v1236, 4
      %v1238 = vsel %vm560, %v1236, %v1237
      %1240 = vst [vmem:[#allocation2 + $0x80] sm:$0xc] %v1238
      %v1241 = vld [vmem:[%s210] sm:$0xf]
      %v1243 = vcombine.low %v1241, %v1241
      %v1245 = vunpack.c.l.s4 1983009808
      %v1246 = vunpack.c.0.s8 %v1245
      %v1247 = vlaneseq
      %v1248 = vshrl.u32 %v1247, 7
      %v1249 = vsub.s32 %v1246, %v1248
      %v1250 = vrot.slane %v1243, %v1249
      %1251 = vrot.lane.b32.xlu0 %v1250, 126
      %v1252 = vpop.permute.xlu0 %1251
      %v1253 = vrot.slane %v1252, 4
      %v1254 = vsel %vm560, %v1252, %v1253
      %1256 = vst [vmem:[#allocation2 + $0x84] sm:$0xc] %v1254
      %v1257 = vld [vmem:[%s216] sm:$0xf]
      %v1259 = vcombine.low %v1257, %v1257
      %v1261 = vunpack.c.l.s4 1983009808
      %v1262 = vunpack.c.0.s8 %v1261
      %v1263 = vlaneseq
      %v1264 = vshrl.u32 %v1263, 7
      %v1265 = vsub.s32 %v1262, %v1264
      %v1266 = vrot.slane %v1259, %v1265
      %1267 = vrot.lane.b32.xlu0 %v1266, 126
      %v1268 = vpop.permute.xlu0 %1267
      %v1269 = vrot.slane %v1268, 4
      %v1270 = vsel %vm560, %v1268, %v1269
      %1272 = vst [vmem:[#allocation2 + $0x88] sm:$0xc] %v1270
      %v1273 = vld [vmem:[%s222] sm:$0xf]
      %v1275 = vcombine.low %v1273, %v1273
      %v1277 = vunpack.c.l.s4 1983009808
      %v1278 = vunpack.c.0.s8 %v1277
      %v1279 = vlaneseq
      %v1280 = vshrl.u32 %v1279, 7
      %v1281 = vsub.s32 %v1278, %v1280
      %v1282 = vrot.slane %v1275, %v1281
      %1283 = vrot.lane.b32.xlu0 %v1282, 126
      %v1284 = vpop.permute.xlu0 %1283
      %v1285 = vrot.slane %v1284, 4
      %v1286 = vsel %vm560, %v1284, %v1285
      %1288 = vst [vmem:[#allocation2 + $0x8c] sm:$0xc] %v1286
      %v1289 = vld [vmem:[%s228] sm:$0xf]
      %v1291 = vcombine.low %v1289, %v1289
      %v1293 = vunpack.c.l.s4 1983009808
      %v1294 = vunpack.c.0.s8 %v1293
      %v1295 = vlaneseq
      %v1296 = vshrl.u32 %v1295, 7
      %v1297 = vsub.s32 %v1294, %v1296
      %v1298 = vrot.slane %v1291, %v1297
      %1299 = vrot.lane.b32.xlu0 %v1298, 126
      %v1300 = vpop.permute.xlu0 %1299
      %v1301 = vrot.slane %v1300, 4
      %v1302 = vsel %vm560, %v1300, %v1301
      %1304 = vst [vmem:[#allocation2 + $0x90] sm:$0xc] %v1302
      %v1305 = vld [vmem:[%s234] sm:$0xf]
      %v1307 = vcombine.low %v1305, %v1305
      %v1309 = vunpack.c.l.s4 1983009808
      %v1310 = vunpack.c.0.s8 %v1309
      %v1311 = vlaneseq
      %v1312 = vshrl.u32 %v1311, 7
      %v1313 = vsub.s32 %v1310, %v1312
      %v1314 = vrot.slane %v1307, %v1313
      %1315 = vrot.lane.b32.xlu0 %v1314, 126
      %v1316 = vpop.permute.xlu0 %1315
      %v1317 = vrot.slane %v1316, 4
      %v1318 = vsel %vm560, %v1316, %v1317
      %1320 = vst [vmem:[#allocation2 + $0x94] sm:$0xc] %v1318
      %v1321 = vld [vmem:[%s240] sm:$0xf]
      %v1323 = vcombine.low %v1321, %v1321
      %v1325 = vunpack.c.l.s4 1983009808
      %v1326 = vunpack.c.0.s8 %v1325
      %v1327 = vlaneseq
      %v1328 = vshrl.u32 %v1327, 7
      %v1329 = vsub.s32 %v1326, %v1328
      %v1330 = vrot.slane %v1323, %v1329
      %1331 = vrot.lane.b32.xlu0 %v1330, 126
      %v1332 = vpop.permute.xlu0 %1331
      %v1333 = vrot.slane %v1332, 4
      %v1334 = vsel %vm560, %v1332, %v1333
      %1336 = vst [vmem:[#allocation2 + $0x98] sm:$0xc] %v1334
      %v1337 = vld [vmem:[%s246] sm:$0xf]
      %v1339 = vcombine.low %v1337, %v1337
      %v1341 = vunpack.c.l.s4 1983009808
      %v1342 = vunpack.c.0.s8 %v1341
      %v1343 = vlaneseq
      %v1344 = vshrl.u32 %v1343, 7
      %v1345 = vsub.s32 %v1342, %v1344
      %v1346 = vrot.slane %v1339, %v1345
      %1347 = vrot.lane.b32.xlu0 %v1346, 126
      %v1348 = vpop.permute.xlu0 %1347
      %v1349 = vrot.slane %v1348, 4
      %v1350 = vsel %vm560, %v1348, %v1349
      %1352 = vst [vmem:[#allocation2 + $0x9c] sm:$0xc] %v1350
      %v1353 = vld [vmem:[%s252] sm:$0xf]
      %v1355 = vcombine.low %v1353, %v1353
      %v1357 = vunpack.c.l.s4 1983009808
      %v1358 = vunpack.c.0.s8 %v1357
      %v1359 = vlaneseq
      %v1360 = vshrl.u32 %v1359, 7
      %v1361 = vsub.s32 %v1358, %v1360
      %v1362 = vrot.slane %v1355, %v1361
      %1363 = vrot.lane.b32.xlu0 %v1362, 126
      %v1364 = vpop.permute.xlu0 %1363
      %v1365 = vrot.slane %v1364, 4
      %v1366 = vsel %vm560, %v1364, %v1365
      %1368 = vst [vmem:[#allocation2 + $0xa0] sm:$0xc] %v1366
      %v1369 = vld [vmem:[%s258] sm:$0xf]
      %v1371 = vcombine.low %v1369, %v1369
      %v1373 = vunpack.c.l.s4 1983009808
      %v1374 = vunpack.c.0.s8 %v1373
      %v1375 = vlaneseq
      %v1376 = vshrl.u32 %v1375, 7
      %v1377 = vsub.s32 %v1374, %v1376
      %v1378 = vrot.slane %v1371, %v1377
      %1379 = vrot.lane.b32.xlu0 %v1378, 126
      %v1380 = vpop.permute.xlu0 %1379
      %v1381 = vrot.slane %v1380, 4
      %v1382 = vsel %vm560, %v1380, %v1381
      %1384 = vst [vmem:[#allocation2 + $0xa4] sm:$0xc] %v1382
      %v1385 = vld [vmem:[%s264] sm:$0xf]
      %v1387 = vcombine.low %v1385, %v1385
      %v1389 = vunpack.c.l.s4 1983009808
      %v1390 = vunpack.c.0.s8 %v1389
      %v1391 = vlaneseq
      %v1392 = vshrl.u32 %v1391, 7
      %v1393 = vsub.s32 %v1390, %v1392
      %v1394 = vrot.slane %v1387, %v1393
      %1395 = vrot.lane.b32.xlu0 %v1394, 126
      %v1396 = vpop.permute.xlu0 %1395
      %v1397 = vrot.slane %v1396, 4
      %v1398 = vsel %vm560, %v1396, %v1397
      %1400 = vst [vmem:[#allocation2 + $0xa8] sm:$0xc] %v1398
      %v1401 = vld [vmem:[%s270] sm:$0xf]
      %v1403 = vcombine.low %v1401, %v1401
      %v1405 = vunpack.c.l.s4 1983009808
      %v1406 = vunpack.c.0.s8 %v1405
      %v1407 = vlaneseq
      %v1408 = vshrl.u32 %v1407, 7
      %v1409 = vsub.s32 %v1406, %v1408
      %v1410 = vrot.slane %v1403, %v1409
      %1411 = vrot.lane.b32.xlu0 %v1410, 126
      %v1412 = vpop.permute.xlu0 %1411
      %v1413 = vrot.slane %v1412, 4
      %v1414 = vsel %vm560, %v1412, %v1413
      %1416 = vst [vmem:[#allocation2 + $0xac] sm:$0xc] %v1414
      %v1417 = vld [vmem:[%s276] sm:$0xf]
      %v1419 = vcombine.low %v1417, %v1417
      %v1421 = vunpack.c.l.s4 1983009808
      %v1422 = vunpack.c.0.s8 %v1421
      %v1423 = vlaneseq
      %v1424 = vshrl.u32 %v1423, 7
      %v1425 = vsub.s32 %v1422, %v1424
      %v1426 = vrot.slane %v1419, %v1425
      %1427 = vrot.lane.b32.xlu0 %v1426, 126
      %v1428 = vpop.permute.xlu0 %1427
      %v1429 = vrot.slane %v1428, 4
      %v1430 = vsel %vm560, %v1428, %v1429
      %1432 = vst [vmem:[#allocation2 + $0xb0] sm:$0xc] %v1430
      %v1433 = vld [vmem:[%s282] sm:$0xf]
      %v1435 = vcombine.low %v1433, %v1433
      %v1437 = vunpack.c.l.s4 1983009808
      %v1438 = vunpack.c.0.s8 %v1437
      %v1439 = vlaneseq
      %v1440 = vshrl.u32 %v1439, 7
      %v1441 = vsub.s32 %v1438, %v1440
      %v1442 = vrot.slane %v1435, %v1441
      %1443 = vrot.lane.b32.xlu0 %v1442, 126
      %v1444 = vpop.permute.xlu0 %1443
      %v1445 = vrot.slane %v1444, 4
      %v1446 = vsel %vm560, %v1444, %v1445
      %1448 = vst [vmem:[#allocation2 + $0xb4] sm:$0xc] %v1446
      %v1449 = vld [vmem:[%s288] sm:$0xf]
      %v1451 = vcombine.low %v1449, %v1449
      %v1453 = vunpack.c.l.s4 1983009808
      %v1454 = vunpack.c.0.s8 %v1453
      %v1455 = vlaneseq
      %v1456 = vshrl.u32 %v1455, 7
      %v1457 = vsub.s32 %v1454, %v1456
      %v1458 = vrot.slane %v1451, %v1457
      %1459 = vrot.lane.b32.xlu0 %v1458, 126
      %v1460 = vpop.permute.xlu0 %1459
      %v1461 = vrot.slane %v1460, 4
      %v1462 = vsel %vm560, %v1460, %v1461
      %1464 = vst [vmem:[#allocation2 + $0xb8] sm:$0xc] %v1462
      %v1465 = vld [vmem:[%s972] sm:$0xf]
      %v1467 = vcombine.low %v1465, %v1465
      %v1469 = vunpack.c.l.s4 1983009808
      %v1470 = vunpack.c.0.s8 %v1469
      %v1471 = vlaneseq
      %v1472 = vshrl.u32 %v1471, 7
      %v1473 = vsub.s32 %v1470, %v1472
      %v1474 = vrot.slane %v1467, %v1473
      %1475 = vrot.lane.b32.xlu0 %v1474, 126
      %v1476 = vpop.permute.xlu0 %1475
      %v1477 = vrot.slane %v1476, 4
      %v1478 = vsel %vm560, %v1476, %v1477
      %1480 = vst [vmem:[#allocation2 + $0xbc] sm:$0xc] %v1478
      %v1481 = vld [vmem:[%s210] sm:$0x3]
      %1482 = vst [vmem:[#allocation2 + $0xc0] sm:$0x3] %v1481
      %v1483 = vld [vmem:[%s216] sm:$0x3]
      %1484 = vst [vmem:[#allocation2 + $0xc4] sm:$0x3] %v1483
      %v1485 = vld [vmem:[%s222] sm:$0x3]
      %1486 = vst [vmem:[#allocation2 + $0xc8] sm:$0x3] %v1485
      %v1487 = vld [vmem:[%s228] sm:$0x3]
      %1488 = vst [vmem:[#allocation2 + $0xcc] sm:$0x3] %v1487
      %v1489 = vld [vmem:[%s234] sm:$0x3]
      %1490 = vst [vmem:[#allocation2 + $0xd0] sm:$0x3] %v1489
      %v1491 = vld [vmem:[%s240] sm:$0x3]
      %1492 = vst [vmem:[#allocation2 + $0xd4] sm:$0x3] %v1491
      %v1493 = vld [vmem:[%s246] sm:$0x3]
      %1494 = vst [vmem:[#allocation2 + $0xd8] sm:$0x3] %v1493
      %v1495 = vld [vmem:[%s252] sm:$0x3]
      %1496 = vst [vmem:[#allocation2 + $0xdc] sm:$0x3] %v1495
      %v1497 = vld [vmem:[%s258] sm:$0x3]
      %1498 = vst [vmem:[#allocation2 + $0xe0] sm:$0x3] %v1497
      %v1499 = vld [vmem:[%s264] sm:$0x3]
      %1500 = vst [vmem:[#allocation2 + $0xe4] sm:$0x3] %v1499
      %v1501 = vld [vmem:[%s270] sm:$0x3]
      %1502 = vst [vmem:[#allocation2 + $0xe8] sm:$0x3] %v1501
      %v1503 = vld [vmem:[%s276] sm:$0x3]
      %1504 = vst [vmem:[#allocation2 + $0xec] sm:$0x3] %v1503
      %v1505 = vld [vmem:[%s282] sm:$0x3]
      %1506 = vst [vmem:[#allocation2 + $0xf0] sm:$0x3] %v1505
      %v1507 = vld [vmem:[%s288] sm:$0x3]
      %1508 = vst [vmem:[#allocation2 + $0xf4] sm:$0x3] %v1507
      %v1509 = vld [vmem:[%s972] sm:$0x3]
      %1510 = vst [vmem:[#allocation2 + $0xf8] sm:$0x3] %v1509
      %s1511 = sadd.s32 %s195, 17
      %s1512 = smul.u32 %s1511, 2
      %s1513 = smul.addr %s1512, 2
      %s1514 = scalar_lea.vmem %s183, %s1513
      %v1515 = vld [vmem:[%s1514] sm:$0x3]
      %1516 = vst [vmem:[#allocation2 + $0xfc] sm:$0x3] %v1515
      %v1517 = vld [vmem:[%s210] sm:$0xf]
      %v1519 = vcombine.low %v1517, %v1517
      %v1521 = vunpack.c.l.s4 1983009808
      %v1522 = vunpack.c.0.s8 %v1521
      %v1523 = vlaneseq
      %v1524 = vshrl.u32 %v1523, 7
      %v1525 = vsub.s32 %v1522, %v1524
      %v1526 = vrot.slane %v1519, %v1525
      %1527 = vrot.lane.b32.xlu0 %v1526, 127
      %v1528 = vpop.permute.xlu0 %1527
      %v1529 = vrot.slane %v1528, 4
      %v1530 = vsel %vm304, %v1528, %v1529
      %1532 = vst [vmem:[#allocation2 + $0xc0] sm:$0xc] %v1530
      %v1533 = vld [vmem:[%s216] sm:$0xf]
      %v1535 = vcombine.low %v1533, %v1533
      %v1537 = vunpack.c.l.s4 1983009808
      %v1538 = vunpack.c.0.s8 %v1537
      %v1539 = vlaneseq
      %v1540 = vshrl.u32 %v1539, 7
      %v1541 = vsub.s32 %v1538, %v1540
      %v1542 = vrot.slane %v1535, %v1541
      %1543 = vrot.lane.b32.xlu0 %v1542, 127
      %v1544 = vpop.permute.xlu0 %1543
      %v1545 = vrot.slane %v1544, 4
      %v1546 = vsel %vm304, %v1544, %v1545
      %1548 = vst [vmem:[#allocation2 + $0xc4] sm:$0xc] %v1546
      %v1549 = vld [vmem:[%s222] sm:$0xf]
      %v1551 = vcombine.low %v1549, %v1549
      %v1553 = vunpack.c.l.s4 1983009808
      %v1554 = vunpack.c.0.s8 %v1553
      %v1555 = vlaneseq
      %v1556 = vshrl.u32 %v1555, 7
      %v1557 = vsub.s32 %v1554, %v1556
      %v1558 = vrot.slane %v1551, %v1557
      %1559 = vrot.lane.b32.xlu0 %v1558, 127
      %v1560 = vpop.permute.xlu0 %1559
      %v1561 = vrot.slane %v1560, 4
      %v1562 = vsel %vm304, %v1560, %v1561
      %1564 = vst [vmem:[#allocation2 + $0xc8] sm:$0xc] %v1562
      %v1565 = vld [vmem:[%s228] sm:$0xf]
      %v1567 = vcombine.low %v1565, %v1565
      %v1569 = vunpack.c.l.s4 1983009808
      %v1570 = vunpack.c.0.s8 %v1569
      %v1571 = vlaneseq
      %v1572 = vshrl.u32 %v1571, 7
      %v1573 = vsub.s32 %v1570, %v1572
      %v1574 = vrot.slane %v1567, %v1573
      %1575 = vrot.lane.b32.xlu0 %v1574, 127
      %v1576 = vpop.permute.xlu0 %1575
      %v1577 = vrot.slane %v1576, 4
      %v1578 = vsel %vm304, %v1576, %v1577
      %1580 = vst [vmem:[#allocation2 + $0xcc] sm:$0xc] %v1578
      %v1581 = vld [vmem:[%s234] sm:$0xf]
      %v1583 = vcombine.low %v1581, %v1581
      %v1585 = vunpack.c.l.s4 1983009808
      %v1586 = vunpack.c.0.s8 %v1585
      %v1587 = vlaneseq
      %v1588 = vshrl.u32 %v1587, 7
      %v1589 = vsub.s32 %v1586, %v1588
      %v1590 = vrot.slane %v1583, %v1589
      %1591 = vrot.lane.b32.xlu0 %v1590, 127
      %v1592 = vpop.permute.xlu0 %1591
      %v1593 = vrot.slane %v1592, 4
      %v1594 = vsel %vm304, %v1592, %v1593
      %1596 = vst [vmem:[#allocation2 + $0xd0] sm:$0xc] %v1594
      %v1597 = vld [vmem:[%s240] sm:$0xf]
      %v1599 = vcombine.low %v1597, %v1597
      %v1601 = vunpack.c.l.s4 1983009808
      %v1602 = vunpack.c.0.s8 %v1601
      %v1603 = vlaneseq
      %v1604 = vshrl.u32 %v1603, 7
      %v1605 = vsub.s32 %v1602, %v1604
      %v1606 = vrot.slane %v1599, %v1605
      %1607 = vrot.lane.b32.xlu0 %v1606, 127
      %v1608 = vpop.permute.xlu0 %1607
      %v1609 = vrot.slane %v1608, 4
      %v1610 = vsel %vm304, %v1608, %v1609
      %1612 = vst [vmem:[#allocation2 + $0xd4] sm:$0xc] %v1610
      %v1613 = vld [vmem:[%s246] sm:$0xf]
      %v1615 = vcombine.low %v1613, %v1613
      %v1617 = vunpack.c.l.s4 1983009808
      %v1618 = vunpack.c.0.s8 %v1617
      %v1619 = vlaneseq
      %v1620 = vshrl.u32 %v1619, 7
      %v1621 = vsub.s32 %v1618, %v1620
      %v1622 = vrot.slane %v1615, %v1621
      %1623 = vrot.lane.b32.xlu0 %v1622, 127
      %v1624 = vpop.permute.xlu0 %1623
      %v1625 = vrot.slane %v1624, 4
      %v1626 = vsel %vm304, %v1624, %v1625
      %1628 = vst [vmem:[#allocation2 + $0xd8] sm:$0xc] %v1626
      %v1629 = vld [vmem:[%s252] sm:$0xf]
      %v1631 = vcombine.low %v1629, %v1629
      %v1633 = vunpack.c.l.s4 1983009808
      %v1634 = vunpack.c.0.s8 %v1633
      %v1635 = vlaneseq
      %v1636 = vshrl.u32 %v1635, 7
      %v1637 = vsub.s32 %v1634, %v1636
      %v1638 = vrot.slane %v1631, %v1637
      %1639 = vrot.lane.b32.xlu0 %v1638, 127
      %v1640 = vpop.permute.xlu0 %1639
      %v1641 = vrot.slane %v1640, 4
      %v1642 = vsel %vm304, %v1640, %v1641
      %1644 = vst [vmem:[#allocation2 + $0xdc] sm:$0xc] %v1642
      %v1645 = vld [vmem:[%s258] sm:$0xf]
      %v1647 = vcombine.low %v1645, %v1645
      %v1649 = vunpack.c.l.s4 1983009808
      %v1650 = vunpack.c.0.s8 %v1649
      %v1651 = vlaneseq
      %v1652 = vshrl.u32 %v1651, 7
      %v1653 = vsub.s32 %v1650, %v1652
      %v1654 = vrot.slane %v1647, %v1653
      %1655 = vrot.lane.b32.xlu0 %v1654, 127
      %v1656 = vpop.permute.xlu0 %1655
      %v1657 = vrot.slane %v1656, 4
      %v1658 = vsel %vm304, %v1656, %v1657
      %1660 = vst [vmem:[#allocation2 + $0xe0] sm:$0xc] %v1658
      %v1661 = vld [vmem:[%s264] sm:$0xf]
      %v1663 = vcombine.low %v1661, %v1661
      %v1665 = vunpack.c.l.s4 1983009808
      %v1666 = vunpack.c.0.s8 %v1665
      %v1667 = vlaneseq
      %v1668 = vshrl.u32 %v1667, 7
      %v1669 = vsub.s32 %v1666, %v1668
      %v1670 = vrot.slane %v1663, %v1669
      %1671 = vrot.lane.b32.xlu0 %v1670, 127
      %v1672 = vpop.permute.xlu0 %1671
      %v1673 = vrot.slane %v1672, 4
      %v1674 = vsel %vm304, %v1672, %v1673
      %1676 = vst [vmem:[#allocation2 + $0xe4] sm:$0xc] %v1674
      %v1677 = vld [vmem:[%s270] sm:$0xf]
      %v1679 = vcombine.low %v1677, %v1677
      %v1681 = vunpack.c.l.s4 1983009808
      %v1682 = vunpack.c.0.s8 %v1681
      %v1683 = vlaneseq
      %v1684 = vshrl.u32 %v1683, 7
      %v1685 = vsub.s32 %v1682, %v1684
      %v1686 = vrot.slane %v1679, %v1685
      %1687 = vrot.lane.b32.xlu0 %v1686, 127
      %v1688 = vpop.permute.xlu0 %1687
      %v1689 = vrot.slane %v1688, 4
      %v1690 = vsel %vm304, %v1688, %v1689
      %1692 = vst [vmem:[#allocation2 + $0xe8] sm:$0xc] %v1690
      %v1693 = vld [vmem:[%s276] sm:$0xf]
      %v1695 = vcombine.low %v1693, %v1693
      %v1697 = vunpack.c.l.s4 1983009808
      %v1698 = vunpack.c.0.s8 %v1697
      %v1699 = vlaneseq
      %v1700 = vshrl.u32 %v1699, 7
      %v1701 = vsub.s32 %v1698, %v1700
      %v1702 = vrot.slane %v1695, %v1701
      %1703 = vrot.lane.b32.xlu0 %v1702, 127
      %v1704 = vpop.permute.xlu0 %1703
      %v1705 = vrot.slane %v1704, 4
      %v1706 = vsel %vm304, %v1704, %v1705
      %1708 = vst [vmem:[#allocation2 + $0xec] sm:$0xc] %v1706
      %v1709 = vld [vmem:[%s282] sm:$0xf]
      %v1711 = vcombine.low %v1709, %v1709
      %v1713 = vunpack.c.l.s4 1983009808
      %v1714 = vunpack.c.0.s8 %v1713
      %v1715 = vlaneseq
      %v1716 = vshrl.u32 %v1715, 7
      %v1717 = vsub.s32 %v1714, %v1716
      %v1718 = vrot.slane %v1711, %v1717
      %1719 = vrot.lane.b32.xlu0 %v1718, 127
      %v1720 = vpop.permute.xlu0 %1719
      %v1721 = vrot.slane %v1720, 4
      %v1722 = vsel %vm304, %v1720, %v1721
      %1724 = vst [vmem:[#allocation2 + $0xf0] sm:$0xc] %v1722
      %v1725 = vld [vmem:[%s288] sm:$0xf]
      %v1727 = vcombine.low %v1725, %v1725
      %v1729 = vunpack.c.l.s4 1983009808
      %v1730 = vunpack.c.0.s8 %v1729
      %v1731 = vlaneseq
      %v1732 = vshrl.u32 %v1731, 7
      %v1733 = vsub.s32 %v1730, %v1732
      %v1734 = vrot.slane %v1727, %v1733
      %1735 = vrot.lane.b32.xlu0 %v1734, 127
      %v1736 = vpop.permute.xlu0 %1735
      %v1737 = vrot.slane %v1736, 4
      %v1738 = vsel %vm304, %v1736, %v1737
      %1740 = vst [vmem:[#allocation2 + $0xf4] sm:$0xc] %v1738
      %v1741 = vld [vmem:[%s972] sm:$0xf]
      %v1743 = vcombine.low %v1741, %v1741
      %v1745 = vunpack.c.l.s4 1983009808
      %v1746 = vunpack.c.0.s8 %v1745
      %v1747 = vlaneseq
      %v1748 = vshrl.u32 %v1747, 7
      %v1749 = vsub.s32 %v1746, %v1748
      %v1750 = vrot.slane %v1743, %v1749
      %1751 = vrot.lane.b32.xlu0 %v1750, 127
      %v1752 = vpop.permute.xlu0 %1751
      %v1753 = vrot.slane %v1752, 4
      %v1754 = vsel %vm304, %v1752, %v1753
      %1756 = vst [vmem:[#allocation2 + $0xf8] sm:$0xc] %v1754
      %v1757 = vld [vmem:[%s1514] sm:$0xf]
      %v1759 = vcombine.low %v1757, %v1757
      %v1761 = vunpack.c.l.s4 1983009808
      %v1762 = vunpack.c.0.s8 %v1761
      %v1763 = vlaneseq
      %v1764 = vshrl.u32 %v1763, 7
      %v1765 = vsub.s32 %v1762, %v1764
      %v1766 = vrot.slane %v1759, %v1765
      %1767 = vrot.lane.b32.xlu0 %v1766, 127
      %v1768 = vpop.permute.xlu0 %1767
      %v1769 = vrot.slane %v1768, 4
      %v1770 = vsel %vm304, %v1768, %v1769
      %1772 = vst [vmem:[#allocation2 + $0xfc] sm:$0xc] %v1770
      %v1773 = vld [vmem:[%s210] sm:$0xf]
      %v1776 = vunpack.c.l.s4 1983009808
      %v1777 = vunpack.c.0.s8 %v1776
      %v1778 = vlaneseq
      %v1779 = vshrl.u32 %v1778, 7
      %v1780 = vsub.s32 %v1777, %v1779
      %v1781 = vrot.slane %v1773, %v1780
      %1782 = vrot.lane.b32.xlu0 %v1781, 126
      %v1783 = vpop.permute.xlu0 %1782
      %v1784 = vrot.slane %v1783, 4
      %v1785 = vsel %vm560, %v1783, %v1784
      %1787 = vst [vmem:[#allocation2 + $0x100] sm:$0x3] %v1785
      %v1788 = vld [vmem:[%s216] sm:$0xf]
      %v1791 = vunpack.c.l.s4 1983009808
      %v1792 = vunpack.c.0.s8 %v1791
      %v1793 = vlaneseq
      %v1794 = vshrl.u32 %v1793, 7
      %v1795 = vsub.s32 %v1792, %v1794
      %v1796 = vrot.slane %v1788, %v1795
      %1797 = vrot.lane.b32.xlu0 %v1796, 126
      %v1798 = vpop.permute.xlu0 %1797
      %v1799 = vrot.slane %v1798, 4
      %v1800 = vsel %vm560, %v1798, %v1799
      %1802 = vst [vmem:[#allocation2 + $0x104] sm:$0x3] %v1800
      %v1803 = vld [vmem:[%s222] sm:$0xf]
      %v1806 = vunpack.c.l.s4 1983009808
      %v1807 = vunpack.c.0.s8 %v1806
      %v1808 = vlaneseq
      %v1809 = vshrl.u32 %v1808, 7
      %v1810 = vsub.s32 %v1807, %v1809
      %v1811 = vrot.slane %v1803, %v1810
      %1812 = vrot.lane.b32.xlu0 %v1811, 126
      %v1813 = vpop.permute.xlu0 %1812
      %v1814 = vrot.slane %v1813, 4
      %v1815 = vsel %vm560, %v1813, %v1814
      %1817 = vst [vmem:[#allocation2 + $0x108] sm:$0x3] %v1815
      %v1818 = vld [vmem:[%s228] sm:$0xf]
      %v1821 = vunpack.c.l.s4 1983009808
      %v1822 = vunpack.c.0.s8 %v1821
      %v1823 = vlaneseq
      %v1824 = vshrl.u32 %v1823, 7
      %v1825 = vsub.s32 %v1822, %v1824
      %v1826 = vrot.slane %v1818, %v1825
      %1827 = vrot.lane.b32.xlu0 %v1826, 126
      %v1828 = vpop.permute.xlu0 %1827
      %v1829 = vrot.slane %v1828, 4
      %v1830 = vsel %vm560, %v1828, %v1829
      %1832 = vst [vmem:[#allocation2 + $0x10c] sm:$0x3] %v1830
      %v1833 = vld [vmem:[%s234] sm:$0xf]
      %v1836 = vunpack.c.l.s4 1983009808
      %v1837 = vunpack.c.0.s8 %v1836
      %v1838 = vlaneseq
      %v1839 = vshrl.u32 %v1838, 7
      %v1840 = vsub.s32 %v1837, %v1839
      %v1841 = vrot.slane %v1833, %v1840
      %1842 = vrot.lane.b32.xlu0 %v1841, 126
      %v1843 = vpop.permute.xlu0 %1842
      %v1844 = vrot.slane %v1843, 4
      %v1845 = vsel %vm560, %v1843, %v1844
      %1847 = vst [vmem:[#allocation2 + $0x110] sm:$0x3] %v1845
      %v1848 = vld [vmem:[%s240] sm:$0xf]
      %v1851 = vunpack.c.l.s4 1983009808
      %v1852 = vunpack.c.0.s8 %v1851
      %v1853 = vlaneseq
      %v1854 = vshrl.u32 %v1853, 7
      %v1855 = vsub.s32 %v1852, %v1854
      %v1856 = vrot.slane %v1848, %v1855
      %1857 = vrot.lane.b32.xlu0 %v1856, 126
      %v1858 = vpop.permute.xlu0 %1857
      %v1859 = vrot.slane %v1858, 4
      %v1860 = vsel %vm560, %v1858, %v1859
      %1862 = vst [vmem:[#allocation2 + $0x114] sm:$0x3] %v1860
      %v1863 = vld [vmem:[%s246] sm:$0xf]
      %v1866 = vunpack.c.l.s4 1983009808
      %v1867 = vunpack.c.0.s8 %v1866
      %v1868 = vlaneseq
      %v1869 = vshrl.u32 %v1868, 7
      %v1870 = vsub.s32 %v1867, %v1869
      %v1871 = vrot.slane %v1863, %v1870
      %1872 = vrot.lane.b32.xlu0 %v1871, 126
      %v1873 = vpop.permute.xlu0 %1872
      %v1874 = vrot.slane %v1873, 4
      %v1875 = vsel %vm560, %v1873, %v1874
      %1877 = vst [vmem:[#allocation2 + $0x118] sm:$0x3] %v1875
      %v1878 = vld [vmem:[%s252] sm:$0xf]
      %v1881 = vunpack.c.l.s4 1983009808
      %v1882 = vunpack.c.0.s8 %v1881
      %v1883 = vlaneseq
      %v1884 = vshrl.u32 %v1883, 7
      %v1885 = vsub.s32 %v1882, %v1884
      %v1886 = vrot.slane %v1878, %v1885
      %1887 = vrot.lane.b32.xlu0 %v1886, 126
      %v1888 = vpop.permute.xlu0 %1887
      %v1889 = vrot.slane %v1888, 4
      %v1890 = vsel %vm560, %v1888, %v1889
      %1892 = vst [vmem:[#allocation2 + $0x11c] sm:$0x3] %v1890
      %v1893 = vld [vmem:[%s258] sm:$0xf]
      %v1896 = vunpack.c.l.s4 1983009808
      %v1897 = vunpack.c.0.s8 %v1896
      %v1898 = vlaneseq
      %v1899 = vshrl.u32 %v1898, 7
      %v1900 = vsub.s32 %v1897, %v1899
      %v1901 = vrot.slane %v1893, %v1900
      %1902 = vrot.lane.b32.xlu0 %v1901, 126
      %v1903 = vpop.permute.xlu0 %1902
      %v1904 = vrot.slane %v1903, 4
      %v1905 = vsel %vm560, %v1903, %v1904
      %1907 = vst [vmem:[#allocation2 + $0x120] sm:$0x3] %v1905
      %v1908 = vld [vmem:[%s264] sm:$0xf]
      %v1911 = vunpack.c.l.s4 1983009808
      %v1912 = vunpack.c.0.s8 %v1911
      %v1913 = vlaneseq
      %v1914 = vshrl.u32 %v1913, 7
      %v1915 = vsub.s32 %v1912, %v1914
      %v1916 = vrot.slane %v1908, %v1915
      %1917 = vrot.lane.b32.xlu0 %v1916, 126
      %v1918 = vpop.permute.xlu0 %1917
      %v1919 = vrot.slane %v1918, 4
      %v1920 = vsel %vm560, %v1918, %v1919
      %1922 = vst [vmem:[#allocation2 + $0x124] sm:$0x3] %v1920
      %v1923 = vld [vmem:[%s270] sm:$0xf]
      %v1926 = vunpack.c.l.s4 1983009808
      %v1927 = vunpack.c.0.s8 %v1926
      %v1928 = vlaneseq
      %v1929 = vshrl.u32 %v1928, 7
      %v1930 = vsub.s32 %v1927, %v1929
      %v1931 = vrot.slane %v1923, %v1930
      %1932 = vrot.lane.b32.xlu0 %v1931, 126
      %v1933 = vpop.permute.xlu0 %1932
      %v1934 = vrot.slane %v1933, 4
      %v1935 = vsel %vm560, %v1933, %v1934
      %1937 = vst [vmem:[#allocation2 + $0x128] sm:$0x3] %v1935
      %v1938 = vld [vmem:[%s276] sm:$0xf]
      %v1941 = vunpack.c.l.s4 1983009808
      %v1942 = vunpack.c.0.s8 %v1941
      %v1943 = vlaneseq
      %v1944 = vshrl.u32 %v1943, 7
      %v1945 = vsub.s32 %v1942, %v1944
      %v1946 = vrot.slane %v1938, %v1945
      %1947 = vrot.lane.b32.xlu0 %v1946, 126
      %v1948 = vpop.permute.xlu0 %1947
      %v1949 = vrot.slane %v1948, 4
      %v1950 = vsel %vm560, %v1948, %v1949
      %1952 = vst [vmem:[#allocation2 + $0x12c] sm:$0x3] %v1950
      %v1953 = vld [vmem:[%s282] sm:$0xf]
      %v1956 = vunpack.c.l.s4 1983009808
      %v1957 = vunpack.c.0.s8 %v1956
      %v1958 = vlaneseq
      %v1959 = vshrl.u32 %v1958, 7
      %v1960 = vsub.s32 %v1957, %v1959
      %v1961 = vrot.slane %v1953, %v1960
      %1962 = vrot.lane.b32.xlu0 %v1961, 126
      %v1963 = vpop.permute.xlu0 %1962
      %v1964 = vrot.slane %v1963, 4
      %v1965 = vsel %vm560, %v1963, %v1964
      %1967 = vst [vmem:[#allocation2 + $0x130] sm:$0x3] %v1965
      %v1968 = vld [vmem:[%s288] sm:$0xf]
      %v1971 = vunpack.c.l.s4 1983009808
      %v1972 = vunpack.c.0.s8 %v1971
      %v1973 = vlaneseq
      %v1974 = vshrl.u32 %v1973, 7
      %v1975 = vsub.s32 %v1972, %v1974
      %v1976 = vrot.slane %v1968, %v1975
      %1977 = vrot.lane.b32.xlu0 %v1976, 126
      %v1978 = vpop.permute.xlu0 %1977
      %v1979 = vrot.slane %v1978, 4
      %v1980 = vsel %vm560, %v1978, %v1979
      %1982 = vst [vmem:[#allocation2 + $0x134] sm:$0x3] %v1980
      %v1983 = vld [vmem:[%s972] sm:$0xf]
      %v1986 = vunpack.c.l.s4 1983009808
      %v1987 = vunpack.c.0.s8 %v1986
      %v1988 = vlaneseq
      %v1989 = vshrl.u32 %v1988, 7
      %v1990 = vsub.s32 %v1987, %v1989
      %v1991 = vrot.slane %v1983, %v1990
      %1992 = vrot.lane.b32.xlu0 %v1991, 126
      %v1993 = vpop.permute.xlu0 %1992
      %v1994 = vrot.slane %v1993, 4
      %v1995 = vsel %vm560, %v1993, %v1994
      %1997 = vst [vmem:[#allocation2 + $0x138] sm:$0x3] %v1995
      %v1998 = vld [vmem:[%s1514] sm:$0xf]
      %v2001 = vunpack.c.l.s4 1983009808
      %v2002 = vunpack.c.0.s8 %v2001
      %v2003 = vlaneseq
      %v2004 = vshrl.u32 %v2003, 7
      %v2005 = vsub.s32 %v2002, %v2004
      %v2006 = vrot.slane %v1998, %v2005
      %2007 = vrot.lane.b32.xlu0 %v2006, 126
      %v2008 = vpop.permute.xlu0 %2007
      %v2009 = vrot.slane %v2008, 4
      %v2010 = vsel %vm560, %v2008, %v2009
      %2012 = vst [vmem:[#allocation2 + $0x13c] sm:$0x3] %v2010
      %v2013 = vld [vmem:[%s1] sm:$0xf]
      %v2014 = vld [vmem:[#allocation2] sm:$0xff]
      %v2015 = vld [vmem:[#allocation2 + $0x8] sm:$0xff]
      %v2016 = vld [vmem:[#allocation2 + $0x10] sm:$0xff]
      %v2017 = vld [vmem:[#allocation2 + $0x18] sm:$0xff]
      %v2018 = vld [vmem:[#allocation2 + $0x20] sm:$0xff]
      %v2019 = vld [vmem:[#allocation2 + $0x28] sm:$0xff]
      %v2020 = vld [vmem:[#allocation2 + $0x30] sm:$0xff]
      %v2021 = vld [vmem:[#allocation2 + $0x38] sm:$0xff]
      %v2022 = vld [vmem:[#allocation2 + $0x40] sm:$0xff]
      %v2023 = vld [vmem:[#allocation2 + $0x48] sm:$0xff]
      %v2024 = vld [vmem:[#allocation2 + $0x50] sm:$0xff]
      %v2025 = vld [vmem:[#allocation2 + $0x58] sm:$0xff]
      %v2026 = vld [vmem:[#allocation2 + $0x60] sm:$0xff]
      %v2027 = vld [vmem:[#allocation2 + $0x68] sm:$0xff]
      %v2028 = vld [vmem:[#allocation2 + $0x70] sm:$0xff]
      %v2029 = vld [vmem:[#allocation2 + $0x78] sm:$0xff]
      %v2030 = vld [vmem:[#allocation2 + $0x80] sm:$0xff]
      %v2031 = vld [vmem:[#allocation2 + $0x88] sm:$0xff]
      %v2032 = vld [vmem:[#allocation2 + $0x90] sm:$0xff]
      %v2033 = vld [vmem:[#allocation2 + $0x98] sm:$0xff]
      %v2034 = vld [vmem:[#allocation2 + $0xa0] sm:$0xff]
      %v2035 = vld [vmem:[#allocation2 + $0xa8] sm:$0xff]
      %v2036 = vld [vmem:[#allocation2 + $0xb0] sm:$0xff]
      %v2037 = vld [vmem:[#allocation2 + $0xb8] sm:$0xff]
      %v2038 = vld [vmem:[#allocation2 + $0xc0] sm:$0xff]
      %v2039 = vld [vmem:[#allocation2 + $0xc8] sm:$0xff]
      %v2040 = vld [vmem:[#allocation2 + $0xd0] sm:$0xff]
      %v2041 = vld [vmem:[#allocation2 + $0xd8] sm:$0xff]
      %v2042 = vld [vmem:[#allocation2 + $0xe0] sm:$0xff]
      %v2043 = vld [vmem:[#allocation2 + $0xe8] sm:$0xff]
      %v2044 = vld [vmem:[#allocation2 + $0xf0] sm:$0xff]
      %v2045 = vld [vmem:[#allocation2 + $0xf8] sm:$0xff]
      %v2046 = vld [vmem:[#allocation2 + $0x100] sm:$0x33]
      %v2047 = vld [vmem:[#allocation2 + $0x108] sm:$0x33]
      %v2048 = vld [vmem:[#allocation2 + $0x110] sm:$0x33]
      %v2049 = vld [vmem:[#allocation2 + $0x118] sm:$0x33]
      %v2050 = vld [vmem:[#allocation2 + $0x120] sm:$0x33]
      %v2051 = vld [vmem:[#allocation2 + $0x128] sm:$0x33]
      %v2052 = vld [vmem:[#allocation2 + $0x130] sm:$0x33]
      %v2053 = vld [vmem:[#allocation2 + $0x138] sm:$0x33]
      %v2054 = vld [vmem:[%s2] sm:$0xff]
      %2056 = vset.pattern.permute.xlu0 0
      %2057 = vperm.xlu0 %2056, %v2054
      %v2058 = vpop.permute.xlu0 %2057
      %v2100 = vunpack.c.l.b16 %v2014
      %v2101 = vunpack.c.h.b16 %v2014
      %v2102 = vunpack.c.l.b16 %v2015
      %v2103 = vunpack.c.h.b16 %v2015
      %v2104 = vunpack.c.l.b16 %v2016
      %v2105 = vunpack.c.h.b16 %v2016
      %v2106 = vunpack.c.l.b16 %v2017
      %v2107 = vunpack.c.h.b16 %v2017
      %v2108 = vunpack.c.l.b16 %v2018
      %v2109 = vunpack.c.h.b16 %v2018
      %v2110 = vunpack.c.l.b16 %v2019
      %v2111 = vunpack.c.h.b16 %v2019
      %v2112 = vunpack.c.l.b16 %v2020
      %v2113 = vunpack.c.h.b16 %v2020
      %v2114 = vunpack.c.l.b16 %v2021
      %v2115 = vunpack.c.h.b16 %v2021
      %v2116 = vunpack.c.l.b16 %v2022
      %v2117 = vunpack.c.h.b16 %v2022
      %v2118 = vunpack.c.l.b16 %v2023
      %v2119 = vunpack.c.h.b16 %v2023
      %v2120 = vunpack.c.l.b16 %v2024
      %v2121 = vunpack.c.h.b16 %v2024
      %v2122 = vunpack.c.l.b16 %v2025
      %v2123 = vunpack.c.h.b16 %v2025
      %v2124 = vunpack.c.l.b16 %v2026
      %v2125 = vunpack.c.h.b16 %v2026
      %v2126 = vunpack.c.l.b16 %v2027
      %v2127 = vunpack.c.h.b16 %v2027
      %v2128 = vunpack.c.l.b16 %v2028
      %v2129 = vunpack.c.h.b16 %v2028
      %v2130 = vunpack.c.l.b16 %v2029
      %v2131 = vunpack.c.h.b16 %v2029
      %v2132 = vunpack.c.l.b16 %v2030
      %v2133 = vunpack.c.h.b16 %v2030
      %v2134 = vunpack.c.l.b16 %v2031
      %v2135 = vunpack.c.h.b16 %v2031
      %v2136 = vunpack.c.l.b16 %v2032
      %v2137 = vunpack.c.h.b16 %v2032
      %v2138 = vunpack.c.l.b16 %v2033
      %v2139 = vunpack.c.h.b16 %v2033
      %v2140 = vunpack.c.l.b16 %v2034
      %v2141 = vunpack.c.h.b16 %v2034
      %v2142 = vunpack.c.l.b16 %v2035
      %v2143 = vunpack.c.h.b16 %v2035
      %v2144 = vunpack.c.l.b16 %v2036
      %v2145 = vunpack.c.h.b16 %v2036
      %v2146 = vunpack.c.l.b16 %v2037
      %v2147 = vunpack.c.h.b16 %v2037
      %v2148 = vunpack.c.l.b16 %v2038
      %v2149 = vunpack.c.h.b16 %v2038
      %v2150 = vunpack.c.l.b16 %v2039
      %v2151 = vunpack.c.h.b16 %v2039
      %v2152 = vunpack.c.l.b16 %v2040
      %v2153 = vunpack.c.h.b16 %v2040
      %v2154 = vunpack.c.l.b16 %v2041
      %v2155 = vunpack.c.h.b16 %v2041
      %v2156 = vunpack.c.l.b16 %v2042
      %v2157 = vunpack.c.h.b16 %v2042
      %v2158 = vunpack.c.l.b16 %v2043
      %v2159 = vunpack.c.h.b16 %v2043
      %v2160 = vunpack.c.l.b16 %v2044
      %v2161 = vunpack.c.h.b16 %v2044
      %v2162 = vunpack.c.l.b16 %v2045
      %v2163 = vunpack.c.h.b16 %v2045
      %v2164 = vunpack.c.l.b16 %v2046
      %v2165 = vunpack.c.h.b16 %v2046
      %v2166 = vunpack.c.l.b16 %v2047
      %v2167 = vunpack.c.h.b16 %v2047
      %v2168 = vunpack.c.l.b16 %v2048
      %v2169 = vunpack.c.h.b16 %v2048
      %v2170 = vunpack.c.l.b16 %v2049
      %v2171 = vunpack.c.h.b16 %v2049
      %v2172 = vunpack.c.l.b16 %v2050
      %v2173 = vunpack.c.h.b16 %v2050
      %v2174 = vunpack.c.l.b16 %v2051
      %v2175 = vunpack.c.h.b16 %v2051
      %v2176 = vunpack.c.l.b16 %v2052
      %v2177 = vunpack.c.h.b16 %v2052
      %v2178 = vunpack.c.l.b16 %v2053
      %v2179 = vunpack.c.h.b16 %v2053
      %v2180 = vpack.c.b16 %v2116, %v2100
      %v2181 = vpack.c.b16 %v2117, %v2101
      %v2182 = vpack.c.b16 %v2118, %v2102
      %v2183 = vpack.c.b16 %v2119, %v2103
      %v2184 = vpack.c.b16 %v2120, %v2104
      %v2185 = vpack.c.b16 %v2121, %v2105
      %v2186 = vpack.c.b16 %v2122, %v2106
      %v2187 = vpack.c.b16 %v2123, %v2107
      %v2188 = vpack.c.b16 %v2124, %v2108
      %v2189 = vpack.c.b16 %v2125, %v2109
      %v2190 = vpack.c.b16 %v2126, %v2110
      %v2191 = vpack.c.b16 %v2127, %v2111
      %v2192 = vpack.c.b16 %v2128, %v2112
      %v2193 = vpack.c.b16 %v2129, %v2113
      %v2194 = vpack.c.b16 %v2130, %v2114
      %v2195 = vpack.c.b16 %v2131, %v2115
      %v2196 = vpack.c.b16 %v2148, %v2132
      %v2197 = vpack.c.b16 %v2149, %v2133
      %v2198 = vpack.c.b16 %v2150, %v2134
      %v2199 = vpack.c.b16 %v2151, %v2135
      %v2200 = vpack.c.b16 %v2152, %v2136
      %v2201 = vpack.c.b16 %v2153, %v2137
      %v2202 = vpack.c.b16 %v2154, %v2138
      %v2203 = vpack.c.b16 %v2155, %v2139
      %v2204 = vpack.c.b16 %v2156, %v2140
      %v2205 = vpack.c.b16 %v2157, %v2141
      %v2206 = vpack.c.b16 %v2158, %v2142
      %v2207 = vpack.c.b16 %v2159, %v2143
      %v2208 = vpack.c.b16 %v2160, %v2144
      %v2209 = vpack.c.b16 %v2161, %v2145
      %v2210 = vpack.c.b16 %v2162, %v2146
      %v2211 = vpack.c.b16 %v2163, %v2147
      %v2212 = vpack.c.b16 %v2164, %v2164
      %v2213 = vpack.c.b16 %v2165, %v2165
      %v2214 = vpack.c.b16 %v2166, %v2166
      %v2215 = vpack.c.b16 %v2167, %v2167
      %v2216 = vpack.c.b16 %v2168, %v2168
      %v2217 = vpack.c.b16 %v2169, %v2169
      %v2218 = vpack.c.b16 %v2170, %v2170
      %v2219 = vpack.c.b16 %v2171, %v2171
      %v2220 = vpack.c.b16 %v2172, %v2172
      %v2221 = vpack.c.b16 %v2173, %v2173
      %v2222 = vpack.c.b16 %v2174, %v2174
      %v2223 = vpack.c.b16 %v2175, %v2175
      %v2224 = vpack.c.b16 %v2176, %v2176
      %v2225 = vpack.c.b16 %v2177, %v2177
      %v2226 = vpack.c.b16 %v2178, %v2178
      %v2227 = vpack.c.b16 %v2179, %v2179
      %vm2260 = vcmask 293888
      %v2262 = vsel %vm2260, %v2013, 0
      %vm2264 = vcmask 1041408
      %v2266 = vsel %vm2264, %v2212, 0
      %v2269 = vsel %vm2264, %v2213, 0
      %v2272 = vsel %vm2264, %v2214, 0
      %v2275 = vsel %vm2264, %v2215, 0
      %v2278 = vsel %vm2264, %v2216, 0
      %v2281 = vsel %vm2264, %v2217, 0
      %v2284 = vsel %vm2264, %v2218, 0
      %v2287 = vsel %vm2264, %v2219, 0
      %v2290 = vsel %vm2264, %v2220, 0
      %v2293 = vsel %vm2264, %v2221, 0
      %v2296 = vsel %vm2264, %v2222, 0
      %v2299 = vsel %vm2264, %v2223, 0
      %v2302 = vsel %vm2264, %v2224, 0
      %v2305 = vsel %vm2264, %v2225, 0
      %v2308 = vsel %vm2264, %v2226, 0
      %v2311 = vsel %vm2264, %v2227, 0
      %2313 = vmatprep.subr.bf16.mxu0 %v2181
      %2314 = vmatpush1.bf16.msra.mxu0 %v2180
      %2315 = vmatprep.subr.bf16.mxu0 %v2197
      %2316 = vmatpush1.bf16.msra.mxu0 %v2196
      %2317 = vmatprep.subr.bf16.mxu0 %v2269
      %2318 = vmatpush1.bf16.msra.mxu0 %v2266
      %2319 = vmatprep.subr.bf16.mxu0 0
      %2320 = vmatpush1.bf16.msra.mxu0 0
      %2321 = vmatprep.subr.bf16.mxu0 0
      %2322 = vmatpush1.bf16.msra.mxu0 0
      %2323 = vmatprep.subr.bf16.mxu0 0
      %2324 = vmatpush1.bf16.msra.mxu0 0
      %2325 = vmatprep.subr.bf16.mxu0 0
      %2326 = vmatpush1.bf16.msra.mxu0 0
      %2327 = vmatprep.subr.bf16.mxu0 0
      %2328 = vmatpush1.bf16.msra.mxu0 0
      %2329 = vmatprep.subr.bf16.mxu0 0
      %2330 = vmatpush1.bf16.msra.mxu0 0
      %2331 = vmatprep.subr.bf16.mxu0 0
      %2332 = vmatpush1.bf16.msra.mxu0 0
      %2333 = vmatprep.subr.bf16.mxu0 0
      %2334 = vmatpush1.bf16.msra.mxu0 0
      %2335 = vmatprep.subr.bf16.mxu0 0
      %2336 = vmatpush1.bf16.msra.mxu0 0
      %2337 = vmatprep.subr.bf16.mxu0 0
      %2338 = vmatpush1.bf16.msra.mxu0 0
      %2339 = vmatprep.subr.bf16.mxu0 0
      %2340 = vmatpush1.bf16.msra.mxu0 0
      %2341 = vmatprep.subr.bf16.mxu0 0
      %2342 = vmatpush1.bf16.msra.mxu0 0
      %2343 = vmatprep.subr.bf16.mxu0 0
      %2344 = vmatpush1.bf16.msra.mxu0 0
      %2345 = vmatprep.mubr.bf16.mxu0 0
      %2346 = vmatmul.mubr.bf16.gmra.mrb[0].mxu0 %v2262
      %v2347 = vpop.f32.mrb[0].mxu0
      %v2348 = vadd.f32 %v2058, %v2347
      %v2349 = vpop.f32.mrb[0].mxu0
      %v2350 = vadd.f32 %v2058, %v2349
      %v2351 = vpop.f32.mrb[0].mxu0
      %v2352 = vpop.f32.mrb[0].mxu0
      %2353 = vdwg.mxu0
      %2354 = vmatprep.subr.bf16.mxu0 %v2183
      %2355 = vmatpush1.bf16.msra.mxu0 %v2182
      %2356 = vmatprep.subr.bf16.mxu0 %v2199
      %2357 = vmatpush1.bf16.msra.mxu0 %v2198
      %2358 = vmatprep.subr.bf16.mxu0 %v2275
      %2359 = vmatpush1.bf16.msra.mxu0 %v2272
      %2360 = vmatprep.subr.bf16.mxu0 0
      %2361 = vmatpush1.bf16.msra.mxu0 0
      %2362 = vmatprep.subr.bf16.mxu0 0
      %2363 = vmatpush1.bf16.msra.mxu0 0
      %2364 = vmatprep.subr.bf16.mxu0 0
      %2365 = vmatpush1.bf16.msra.mxu0 0
      %2366 = vmatprep.subr.bf16.mxu0 0
      %2367 = vmatpush1.bf16.msra.mxu0 0
      %2368 = vmatprep.subr.bf16.mxu0 0
      %2369 = vmatpush1.bf16.msra.mxu0 0
      %2370 = vmatprep.subr.bf16.mxu0 0
      %2371 = vmatpush1.bf16.msra.mxu0 0
      %2372 = vmatprep.subr.bf16.mxu0 0
      %2373 = vmatpush1.bf16.msra.mxu0 0
      %2374 = vmatprep.subr.bf16.mxu0 0
      %2375 = vmatpush1.bf16.msra.mxu0 0
      %2376 = vmatprep.subr.bf16.mxu0 0
      %2377 = vmatpush1.bf16.msra.mxu0 0
      %2378 = vmatprep.subr.bf16.mxu0 0
      %2379 = vmatpush1.bf16.msra.mxu0 0
      %2380 = vmatprep.subr.bf16.mxu0 0
      %2381 = vmatpush1.bf16.msra.mxu0 0
      %2382 = vmatprep.subr.bf16.mxu0 0
      %2383 = vmatpush1.bf16.msra.mxu0 0
      %2384 = vmatprep.subr.bf16.mxu0 0
      %2385 = vmatpush1.bf16.msra.mxu0 0
      %2386 = vmatprep.mubr.bf16.mxu0 0
      %2387 = vmatmul.mubr.bf16.gmra.mrb[0].mxu0 %v2262
      %v2388 = vpop.f32.mrb[0].mxu0
      %v2389 = vadd.f32 %v2058, %v2388
      %v2390 = vpop.f32.mrb[0].mxu0
      %v2391 = vadd.f32 %v2058, %v2390
      %v2392 = vpop.f32.mrb[0].mxu0
      %v2393 = vpop.f32.mrb[0].mxu0
      %2394 = vdwg.mxu0
      %2395 = vmatprep.subr.bf16.mxu0 %v2185
      %2396 = vmatpush1.bf16.msra.mxu0 %v2184
      %2397 = vmatprep.subr.bf16.mxu0 %v2201
      %2398 = vmatpush1.bf16.msra.mxu0 %v2200
      %2399 = vmatprep.subr.bf16.mxu0 %v2281
      %2400 = vmatpush1.bf16.msra.mxu0 %v2278
      %2401 = vmatprep.subr.bf16.mxu0 0
      %2402 = vmatpush1.bf16.msra.mxu0 0
      %2403 = vmatprep.subr.bf16.mxu0 0
      %2404 = vmatpush1.bf16.msra.mxu0 0
      %2405 = vmatprep.subr.bf16.mxu0 0
      %2406 = vmatpush1.bf16.msra.mxu0 0
      %2407 = vmatprep.subr.bf16.mxu0 0
      %2408 = vmatpush1.bf16.msra.mxu0 0
      %2409 = vmatprep.subr.bf16.mxu0 0
      %2410 = vmatpush1.bf16.msra.mxu0 0
      %2411 = vmatprep.subr.bf16.mxu0 0
      %2412 = vmatpush1.bf16.msra.mxu0 0
      %2413 = vmatprep.subr.bf16.mxu0 0
      %2414 = vmatpush1.bf16.msra.mxu0 0
      %2415 = vmatprep.subr.bf16.mxu0 0
      %2416 = vmatpush1.bf16.msra.mxu0 0
      %2417 = vmatprep.subr.bf16.mxu0 0
      %2418 = vmatpush1.bf16.msra.mxu0 0
      %2419 = vmatprep.subr.bf16.mxu0 0
      %2420 = vmatpush1.bf16.msra.mxu0 0
      %2421 = vmatprep.subr.bf16.mxu0 0
      %2422 = vmatpush1.bf16.msra.mxu0 0
      %2423 = vmatprep.subr.bf16.mxu0 0
      %2424 = vmatpush1.bf16.msra.mxu0 0
      %2425 = vmatprep.subr.bf16.mxu0 0
      %2426 = vmatpush1.bf16.msra.mxu0 0
      %2427 = vmatprep.mubr.bf16.mxu0 0
      %2428 = vmatmul.mubr.bf16.gmra.mrb[0].mxu0 %v2262
      %v2429 = vpop.f32.mrb[0].mxu0
      %v2430 = vadd.f32 %v2058, %v2429
      %v2431 = vpop.f32.mrb[0].mxu0
      %v2432 = vadd.f32 %v2058, %v2431
      %v2433 = vpop.f32.mrb[0].mxu0
      %v2434 = vpop.f32.mrb[0].mxu0
      %2435 = vdwg.mxu0
      %2436 = vmatprep.subr.bf16.mxu0 %v2187
      %2437 = vmatpush1.bf16.msra.mxu0 %v2186
      %2438 = vmatprep.subr.bf16.mxu0 %v2203
      %2439 = vmatpush1.bf16.msra.mxu0 %v2202
      %2440 = vmatprep.subr.bf16.mxu0 %v2287
      %2441 = vmatpush1.bf16.msra.mxu0 %v2284
      %2442 = vmatprep.subr.bf16.mxu0 0
      %2443 = vmatpush1.bf16.msra.mxu0 0
      %2444 = vmatprep.subr.bf16.mxu0 0
      %2445 = vmatpush1.bf16.msra.mxu0 0
      %2446 = vmatprep.subr.bf16.mxu0 0
      %2447 = vmatpush1.bf16.msra.mxu0 0
      %2448 = vmatprep.subr.bf16.mxu0 0
      %2449 = vmatpush1.bf16.msra.mxu0 0
      %2450 = vmatprep.subr.bf16.mxu0 0
      %2451 = vmatpush1.bf16.msra.mxu0 0
      %2452 = vmatprep.subr.bf16.mxu0 0
      %2453 = vmatpush1.bf16.msra.mxu0 0
      %2454 = vmatprep.subr.bf16.mxu0 0
      %2455 = vmatpush1.bf16.msra.mxu0 0
      %2456 = vmatprep.subr.bf16.mxu0 0
      %2457 = vmatpush1.bf16.msra.mxu0 0
      %2458 = vmatprep.subr.bf16.mxu0 0
      %2459 = vmatpush1.bf16.msra.mxu0 0
      %2460 = vmatprep.subr.bf16.mxu0 0
      %2461 = vmatpush1.bf16.msra.mxu0 0
      %2462 = vmatprep.subr.bf16.mxu0 0
      %2463 = vmatpush1.bf16.msra.mxu0 0
      %2464 = vmatprep.subr.bf16.mxu0 0
      %2465 = vmatpush1.bf16.msra.mxu0 0
      %2466 = vmatprep.subr.bf16.mxu0 0
      %2467 = vmatpush1.bf16.msra.mxu0 0
      %2468 = vmatprep.mubr.bf16.mxu0 0
      %2469 = vmatmul.mubr.bf16.gmra.mrb[0].mxu0 %v2262
      %v2470 = vpop.f32.mrb[0].mxu0
      %v2471 = vadd.f32 %v2058, %v2470
      %v2472 = vpop.f32.mrb[0].mxu0
      %v2473 = vadd.f32 %v2058, %v2472
      %v2474 = vpop.f32.mrb[0].mxu0
      %v2475 = vpop.f32.mrb[0].mxu0
      %2476 = vdwg.mxu0
      %2477 = vmatprep.subr.bf16.mxu0 %v2189
      %2478 = vmatpush1.bf16.msra.mxu0 %v2188
      %2479 = vmatprep.subr.bf16.mxu0 %v2205
      %2480 = vmatpush1.bf16.msra.mxu0 %v2204
      %2481 = vmatprep.subr.bf16.mxu0 %v2293
      %2482 = vmatpush1.bf16.msra.mxu0 %v2290
      %2483 = vmatprep.subr.bf16.mxu0 0
      %2484 = vmatpush1.bf16.msra.mxu0 0
      %2485 = vmatprep.subr.bf16.mxu0 0
      %2486 = vmatpush1.bf16.msra.mxu0 0
      %2487 = vmatprep.subr.bf16.mxu0 0
      %2488 = vmatpush1.bf16.msra.mxu0 0
      %2489 = vmatprep.subr.bf16.mxu0 0
      %2490 = vmatpush1.bf16.msra.mxu0 0
      %2491 = vmatprep.subr.bf16.mxu0 0
      %2492 = vmatpush1.bf16.msra.mxu0 0
      %2493 = vmatprep.subr.bf16.mxu0 0
      %2494 = vmatpush1.bf16.msra.mxu0 0
      %2495 = vmatprep.subr.bf16.mxu0 0
      %2496 = vmatpush1.bf16.msra.mxu0 0
      %2497 = vmatprep.subr.bf16.mxu0 0
      %2498 = vmatpush1.bf16.msra.mxu0 0
      %2499 = vmatprep.subr.bf16.mxu0 0
      %2500 = vmatpush1.bf16.msra.mxu0 0
      %2501 = vmatprep.subr.bf16.mxu0 0
      %2502 = vmatpush1.bf16.msra.mxu0 0
      %2503 = vmatprep.subr.bf16.mxu0 0
      %2504 = vmatpush1.bf16.msra.mxu0 0
      %2505 = vmatprep.subr.bf16.mxu0 0
      %2506 = vmatpush1.bf16.msra.mxu0 0
      %2507 = vmatprep.subr.bf16.mxu0 0
      %2508 = vmatpush1.bf16.msra.mxu0 0
      %2509 = vmatprep.mubr.bf16.mxu0 0
      %2510 = vmatmul.mubr.bf16.gmra.mrb[0].mxu0 %v2262
      %v2511 = vpop.f32.mrb[0].mxu0
      %v2512 = vadd.f32 %v2058, %v2511
      %v2513 = vpop.f32.mrb[0].mxu0
      %v2514 = vadd.f32 %v2058, %v2513
      %v2515 = vpop.f32.mrb[0].mxu0
      %v2516 = vpop.f32.mrb[0].mxu0
      %2517 = vdwg.mxu0
      %2518 = vmatprep.subr.bf16.mxu0 %v2191
      %2519 = vmatpush1.bf16.msra.mxu0 %v2190
      %2520 = vmatprep.subr.bf16.mxu0 %v2207
      %2521 = vmatpush1.bf16.msra.mxu0 %v2206
      %2522 = vmatprep.subr.bf16.mxu0 %v2299
      %2523 = vmatpush1.bf16.msra.mxu0 %v2296
      %2524 = vmatprep.subr.bf16.mxu0 0
      %2525 = vmatpush1.bf16.msra.mxu0 0
      %2526 = vmatprep.subr.bf16.mxu0 0
      %2527 = vmatpush1.bf16.msra.mxu0 0
      %2528 = vmatprep.subr.bf16.mxu0 0
      %2529 = vmatpush1.bf16.msra.mxu0 0
      %2530 = vmatprep.subr.bf16.mxu0 0
      %2531 = vmatpush1.bf16.msra.mxu0 0
      %2532 = vmatprep.subr.bf16.mxu0 0
      %2533 = vmatpush1.bf16.msra.mxu0 0
      %2534 = vmatprep.subr.bf16.mxu0 0
      %2535 = vmatpush1.bf16.msra.mxu0 0
      %2536 = vmatprep.subr.bf16.mxu0 0
      %2537 = vmatpush1.bf16.msra.mxu0 0
      %2538 = vmatprep.subr.bf16.mxu0 0
      %2539 = vmatpush1.bf16.msra.mxu0 0
      %2540 = vmatprep.subr.bf16.mxu0 0
      %2541 = vmatpush1.bf16.msra.mxu0 0
      %2542 = vmatprep.subr.bf16.mxu0 0
      %2543 = vmatpush1.bf16.msra.mxu0 0
      %2544 = vmatprep.subr.bf16.mxu0 0
      %2545 = vmatpush1.bf16.msra.mxu0 0
      %2546 = vmatprep.subr.bf16.mxu0 0
      %2547 = vmatpush1.bf16.msra.mxu0 0
      %2548 = vmatprep.subr.bf16.mxu0 0
      %2549 = vmatpush1.bf16.msra.mxu0 0
      %2550 = vmatprep.mubr.bf16.mxu0 0
      %2551 = vmatmul.mubr.bf16.gmra.mrb[0].mxu0 %v2262
      %v2552 = vpop.f32.mrb[0].mxu0
      %v2553 = vadd.f32 %v2058, %v2552
      %v2554 = vpop.f32.mrb[0].mxu0
      %v2555 = vadd.f32 %v2058, %v2554
      %v2556 = vpop.f32.mrb[0].mxu0
      %v2557 = vpop.f32.mrb[0].mxu0
      %2558 = vdwg.mxu0
      %2559 = vmatprep.subr.bf16.mxu0 %v2193
      %2560 = vmatpush1.bf16.msra.mxu0 %v2192
      %2561 = vmatprep.subr.bf16.mxu0 %v2209
      %2562 = vmatpush1.bf16.msra.mxu0 %v2208
      %2563 = vmatprep.subr.bf16.mxu0 %v2305
      %2564 = vmatpush1.bf16.msra.mxu0 %v2302
      %2565 = vmatprep.subr.bf16.mxu0 0
      %2566 = vmatpush1.bf16.msra.mxu0 0
      %2567 = vmatprep.subr.bf16.mxu0 0
      %2568 = vmatpush1.bf16.msra.mxu0 0
      %2569 = vmatprep.subr.bf16.mxu0 0
      %2570 = vmatpush1.bf16.msra.mxu0 0
      %2571 = vmatprep.subr.bf16.mxu0 0
      %2572 = vmatpush1.bf16.msra.mxu0 0
      %2573 = vmatprep.subr.bf16.mxu0 0
      %2574 = vmatpush1.bf16.msra.mxu0 0
      %2575 = vmatprep.subr.bf16.mxu0 0
      %2576 = vmatpush1.bf16.msra.mxu0 0
      %2577 = vmatprep.subr.bf16.mxu0 0
      %2578 = vmatpush1.bf16.msra.mxu0 0
      %2579 = vmatprep.subr.bf16.mxu0 0
      %2580 = vmatpush1.bf16.msra.mxu0 0
      %2581 = vmatprep.subr.bf16.mxu0 0
      %2582 = vmatpush1.bf16.msra.mxu0 0
      %2583 = vmatprep.subr.bf16.mxu0 0
      %2584 = vmatpush1.bf16.msra.mxu0 0
      %2585 = vmatprep.subr.bf16.mxu0 0
      %2586 = vmatpush1.bf16.msra.mxu0 0
      %2587 = vmatprep.subr.bf16.mxu0 0
      %2588 = vmatpush1.bf16.msra.mxu0 0
      %2589 = vmatprep.subr.bf16.mxu0 0
      %2590 = vmatpush1.bf16.msra.mxu0 0
      %2591 = vmatprep.mubr.bf16.mxu0 0
      %2592 = vmatmul.mubr.bf16.gmra.mrb[0].mxu0 %v2262
      %v2593 = vpop.f32.mrb[0].mxu0
      %v2594 = vadd.f32 %v2058, %v2593
      %v2595 = vpop.f32.mrb[0].mxu0
      %v2596 = vadd.f32 %v2058, %v2595
      %v2597 = vpop.f32.mrb[0].mxu0
      %v2598 = vpop.f32.mrb[0].mxu0
      %2599 = vdwg.mxu0
      %2600 = vmatprep.subr.bf16.mxu0 %v2195
      %2601 = vmatpush1.bf16.msra.mxu0 %v2194
      %2602 = vmatprep.subr.bf16.mxu0 %v2211
      %2603 = vmatpush1.bf16.msra.mxu0 %v2210
      %2604 = vmatprep.subr.bf16.mxu0 %v2311
      %2605 = vmatpush1.bf16.msra.mxu0 %v2308
      %2606 = vmatprep.subr.bf16.mxu0 0
      %2607 = vmatpush1.bf16.msra.mxu0 0
      %2608 = vmatprep.subr.bf16.mxu0 0
      %2609 = vmatpush1.bf16.msra.mxu0 0
      %2610 = vmatprep.subr.bf16.mxu0 0
      %2611 = vmatpush1.bf16.msra.mxu0 0
      %2612 = vmatprep.subr.bf16.mxu0 0
      %2613 = vmatpush1.bf16.msra.mxu0 0
      %2614 = vmatprep.subr.bf16.mxu0 0
      %2615 = vmatpush1.bf16.msra.mxu0 0
      %2616 = vmatprep.subr.bf16.mxu0 0
      %2617 = vmatpush1.bf16.msra.mxu0 0
      %2618 = vmatprep.subr.bf16.mxu0 0
      %2619 = vmatpush1.bf16.msra.mxu0 0
      %2620 = vmatprep.subr.bf16.mxu0 0
      %2621 = vmatpush1.bf16.msra.mxu0 0
      %2622 = vmatprep.subr.bf16.mxu0 0
      %2623 = vmatpush1.bf16.msra.mxu0 0
      %2624 = vmatprep.subr.bf16.mxu0 0
      %2625 = vmatpush1.bf16.msra.mxu0 0
      %2626 = vmatprep.subr.bf16.mxu0 0
      %2627 = vmatpush1.bf16.msra.mxu0 0
      %2628 = vmatprep.subr.bf16.mxu0 0
      %2629 = vmatpush1.bf16.msra.mxu0 0
      %2630 = vmatprep.subr.bf16.mxu0 0
      %2631 = vmatpush1.bf16.msra.mxu0 0
      %2632 = vmatprep.mubr.bf16.mxu0 0
      %2633 = vmatmul.mubr.bf16.gmra.mrb[0].mxu0 %v2262
      %v2634 = vpop.f32.mrb[0].mxu0
      %v2635 = vadd.f32 %v2058, %v2634
      %v2636 = vpop.f32.mrb[0].mxu0
      %v2637 = vadd.f32 %v2058, %v2636
      %v2638 = vpop.f32.mrb[0].mxu0
      %v2639 = vpop.f32.mrb[0].mxu0
      %2640 = vdwg.mxu0
      %vm2641 = vcmask 130048
      %2642 = vst.msk [vmem:[%s192] sm:$0xff] %vm2641, %v2348
      %2644 = vrot.lane.b32.xlu0 %v2350, 16
      %v2645 = vpop.permute.xlu0 %2644
      %vm2647 = vcmask 261248
      %2648 = vst.msk [vmem:[%s192] sm:$0xff] %vm2647, %v2645
      %2650 = vrot.lane.b32.xlu0 %v2389, 32
      %v2651 = vpop.permute.xlu0 %2650
      %vm2653 = vcmask 392448
      %2654 = vst.msk [vmem:[%s192] sm:$0xff] %vm2653, %v2651
      %2656 = vrot.lane.b32.xlu0 %v2391, 48
      %v2657 = vpop.permute.xlu0 %2656
      %vm2659 = vcmask 523648
      %2660 = vst.msk [vmem:[%s192] sm:$0xff] %vm2659, %v2657
      %2662 = vrot.lane.b32.xlu0 %v2430, 64
      %v2663 = vpop.permute.xlu0 %2662
      %vm2665 = vcmask 654848
      %2666 = vst.msk [vmem:[%s192] sm:$0xff] %vm2665, %v2663
      %2668 = vrot.lane.b32.xlu0 %v2432, 80
      %v2669 = vpop.permute.xlu0 %2668
      %vm2671 = vcmask 786048
      %2672 = vst.msk [vmem:[%s192] sm:$0xff] %vm2671, %v2669
      %2674 = vrot.lane.b32.xlu0 %v2471, 96
      %v2675 = vpop.permute.xlu0 %2674
      %vm2677 = vcmask 917248
      %2678 = vst.msk [vmem:[%s192] sm:$0xff] %vm2677, %v2675
      %2680 = vrot.lane.b32.xlu0 %v2473, 112
      %v2681 = vpop.permute.xlu0 %2680
      %vm2683 = vcmask 1048448
      %2684 = vst.msk [vmem:[%s192] sm:$0xff] %vm2683, %v2681
      %2685 = vst.msk [vmem:[%s192 + $0x8] sm:$0xff] %vm2641, %v2512
      %2687 = vrot.lane.b32.xlu0 %v2514, 16
      %v2688 = vpop.permute.xlu0 %2687
      %2690 = vst.msk [vmem:[%s192 + $0x8] sm:$0xff] %vm2647, %v2688
      %2692 = vrot.lane.b32.xlu0 %v2553, 32
      %v2693 = vpop.permute.xlu0 %2692
      %2695 = vst.msk [vmem:[%s192 + $0x8] sm:$0xff] %vm2653, %v2693
      %2697 = vrot.lane.b32.xlu0 %v2555, 48
      %v2698 = vpop.permute.xlu0 %2697
      %2700 = vst.msk [vmem:[%s192 + $0x8] sm:$0xff] %vm2659, %v2698
      %2702 = vrot.lane.b32.xlu0 %v2594, 64
      %v2703 = vpop.permute.xlu0 %2702
      %2705 = vst.msk [vmem:[%s192 + $0x8] sm:$0xff] %vm2665, %v2703
      %2707 = vrot.lane.b32.xlu0 %v2596, 80
      %v2708 = vpop.permute.xlu0 %2707
      %2710 = vst.msk [vmem:[%s192 + $0x8] sm:$0xff] %vm2671, %v2708
      %2712 = vrot.lane.b32.xlu0 %v2635, 96
      %v2713 = vpop.permute.xlu0 %2712
      %2715 = vst.msk [vmem:[%s192 + $0x8] sm:$0xff] %vm2677, %v2713
      %2717 = vrot.lane.b32.xlu0 %v2637, 112
      %v2718 = vpop.permute.xlu0 %2717
      %2720 = vst.msk [vmem:[%s192 + $0x8] sm:$0xff] %vm2683, %v2718
      %s2721 = smul.u32 2, %s19
      %p2722 = scmp.lt.s32.totalorder %s18, 1
      %s2723 = scalar_select %p2722, %s18, 1
      %p2724 = scmp.lt.s32.totalorder %s2721, 1
      %s2725 = scalar_select %p2724, %s2721, 1
      %s2726 = smul.addr %s2723, 2
      %s2727 = sadd.s32 %s2725, %s2726
      %s2728 = smul.addr %s2727, 8
      %s2729 = scalar_lea.vmem %s3, %s2728
      // Predicated region
      $region33: #{conv_layer_forward.1} parent=31 // pred_check
        %p2730 = pneg %p114
      $region34: #{conv_layer_forward.1} parent=31 // pred_check_branch
        %2732 = sbr.rel (%p2730) target = $region36
      $region35: #{conv_layer_forward.1} parent=31 // pred_region
        %s2733 = smul.u32 2, %s19
      $region36: #{conv_layer_forward.1} parent=31 // pred_fallthru
        _
    $region32: #{conv_layer_forward.1} parent=5 // pred_fallthru
      _
    %p2734 = scmp.le.s32.totalorder 2, %s9
    // Predicated region
    $region37: #{conv_layer_forward.1} parent=5 // pred_check
      %p2735 = pneg %p2734
    $region38: #{conv_layer_forward.1} parent=5 // pred_check_branch
      %2737 = sbr.rel (%p2735) target = $region40
    $region39: #{conv_layer_forward.1} parent=5 // pred_region
      %s2738 = ssub.s32 %s9, 2
      // Predicated region
      $region41: #{conv_layer_forward.1} parent=39 // pred_check
        %p2739 = pneg %p120
      $region42: #{conv_layer_forward.1} parent=39 // pred_check_branch
        %2741 = sbr.rel (%p2739) target = $region44
      $region43: #{conv_layer_forward.1} parent=39 // pred_region
        %s2742 = smul.u32 2, %s21
        %p2743 = scmp.lt.s32.totalorder %s20, 1
        %s2744 = scalar_select %p2743, %s20, 1
        %p2745 = scmp.lt.s32.totalorder %s2742, 1
        %s2746 = scalar_select %p2745, %s2742, 1
        %s2747 = smul.addr %s2744, 2
        %s2748 = sadd.s32 %s2746, %s2747
        %s2749 = smul.addr %s2748, 8
        %s2750 = scalar_lea.vmem %s3, %s2749
      $region44: #{conv_layer_forward.1} parent=39 // pred_fallthru
        _
    $region40: #{conv_layer_forward.1} parent=5 // pred_fallthru
      _
  $region6: #{conv_layer_forward.1} parent=0 // loop_footer
    %s13 = sadd.s32 1, %s9
  $region7: #{conv_layer_forward.1} parent=0 // loop_footer_branch
    %8 = sbr.rel target = $region3
  $region8: #{conv_layer_forward.1} parent=0 // loop_exit
    _

</llo_original>
